<compile_context>
chip_gen: v5e
topology: v5e:2x2
jax: 0.10.0
libtpu: 0.0.40
codegen_flags: <defaults>
</compile_context>

<pallas_src>
import functools

import jax
import jax.numpy as jnp
import numpy as np
from jax.experimental import pallas as pl
from jax.experimental.pallas import tpu as pltpu


def gat_kernel(x_all_ref, x_q_ref, wt_ref, atti_ref, attj_ref, bias_ref,
               idxt_ref, out_ref, hj_buf, aj_buf, *, negative_slope):
    # Per grid step (b, q):
    #   x_all_ref : [1, Cin, N]    all source nodes of this batch element
    #   x_q_ref   : [1, Cin, NT]   query-node tile (same array, tiled BlockSpec)
    #   wt_ref    : [Cout, Cin]    1x1-conv weight, channels-major
    #   atti_ref  : [1, Cout]      att[:, :Cout]   (center term)
    #   attj_ref  : [1, Cout]      att[:, Cout:]   (neighbor term)
    #   bias_ref  : [Cout, 1]
    #   idxt_ref  : [1, K, NT]     neighbor ids (K-major) for the query tile
    #   out_ref   : [1, Cout, NT]
    #   hj_buf    : VMEM [K, Cout, NT] bf16  gathered neighbor features
    #   aj_buf    : VMEM [K, NT]       f32   gathered neighbor scores
    N = x_all_ref.shape[2]
    K = idxt_ref.shape[1]

    wt = wt_ref[...]                                                     # [C, Cin]

    # 1x1 conv (no bias) + ReLU for all N source nodes, channels-major [C, N].
    h_all = jnp.maximum(
        jnp.dot(wt, x_all_ref[0], preferred_element_type=jnp.float32), 0.0)
    # Neighbor-side score per source node: s_j[n] = <att_j, h_n>  (MXU).
    s_j = jnp.dot(attj_ref[...], h_all, preferred_element_type=jnp.float32)  # [1, N]

    # Query-tile features recomputed from the tiled x view (cheap; avoids any
    # dynamic value slicing) and the center score a_i = <att_i, h_q> (MXU).
    h_q = jnp.maximum(
        jnp.dot(wt, x_q_ref[0], preferred_element_type=jnp.float32), 0.0)    # [C, NT]
    a_i = jnp.dot(atti_ref[...], h_q, preferred_element_type=jnp.float32)    # [1, NT]

    # bf16 operands for the gather matmuls (one-hot selection is exact in bf16).
    h_bf = h_all.astype(jnp.bfloat16)                                    # [C, N]
    s_bf = s_j.astype(jnp.bfloat16)                                      # [1, N]

    idxt = idxt_ref[0]                                                   # [K, NT]
    row_ids = jax.lax.broadcasted_iota(jnp.int32, (N, idxt.shape[1]), 0)  # src id / row

    # Per-k one-hot gather: one [N, NT] selection matrix at a time
    # (never materializes the previous [N, K, N] tensor).
    for k in range(K):                           # K is small & static -> unrolled
        sel = jnp.where(row_ids == idxt[k:k + 1, :], 1.0, 0.0
                        ).astype(jnp.bfloat16)                           # [N, NT]
        hj_k = jnp.dot(h_bf, sel, preferred_element_type=jnp.float32)    # [C, NT]
        aj_k = jnp.dot(s_bf, sel, preferred_element_type=jnp.float32)    # [1, NT]
        hj_buf[k] = hj_k.astype(hj_buf.dtype)        # exact: values are bf16
        aj_buf[k:k + 1, :] = aj_k

    # leaky_relu + softmax over the K neighbors (f32 elementwise; v5e-safe).
    e = a_i + aj_buf[...]                                                # [K, NT]
    e = jnp.where(e >= 0, e, negative_slope * e)
    e = e - jnp.max(e, axis=0, keepdims=True)
    p = jnp.exp(e)
    inv = pl.reciprocal(jnp.sum(p, axis=0, keepdims=True), approx=True)  # EUP
    alpha = p * inv                                                      # [K, NT]

    # Weighted max-aggregation over K with a running maximum.
    acc = hj_buf[0].astype(jnp.float32) * alpha[0:1, :]
    for k in range(1, K):
        acc = jnp.maximum(acc, hj_buf[k].astype(jnp.float32) * alpha[k:k + 1, :])

    out_ref[0] = (acc + bias_ref[...]).astype(out_ref.dtype)


def gat_conv2d_forward(x_nchw, edge_index, w_t, att_i, att_j, bias,
                       *, negative_slope=0.2, q_tile=128):
    """Dense single-head GATConv2d forward (eval mode, aggr='max').

    x_nchw:      [B, Cin, N, 1] f32 (NCHW with W=1; N graph nodes)
    edge_index:  [2, B, N, K] int; only edge_index[0] (neighbor ids) is used
    w_t:         [Cout, Cin]   (PyTorch Conv2d weight [Cout, Cin, 1, 1] squeezed)
    att_i/att_j: [1, Cout]     (split of att [1, 2*Cout, 1, 1])
    bias:        [Cout, 1]
    Returns [B, Cout, N, 1] f32 (NCHW).
    """
    B, C_in, N, w_dim = x_nchw.shape
    assert w_dim == 1
    C_out = w_t.shape[0]
    K = edge_index.shape[-1]

    # Channels-major views: no transposes needed on x or on the output.
    x_bcn = x_nchw[..., 0]                                              # [B, Cin, N]
    idx_t = jnp.transpose(edge_index[0], (0, 2, 1)).astype(jnp.int32)   # [B, K, N]

    # Query-node tile (lane dim of the output). Must be a multiple of 128 or N.
    if N % 128 == 0 and q_tile % 128 == 0 and N % q_tile == 0:
        NT = min(q_tile, N)
    else:
        NT = N

    kernel = functools.partial(gat_kernel, negative_slope=negative_slope)

    out_bcn = pl.pallas_call(
        kernel,
        out_shape=jax.ShapeDtypeStruct((B, C_out, N), x_nchw.dtype),
        grid_spec=pltpu.PrefetchScalarGridSpec(
            num_scalar_prefetch=0,
            grid=(B, N // NT),
            in_specs=[
                pl.BlockSpec((1, C_in, N), lambda b, q: (b, 0, 0)),    # all nodes
                pl.BlockSpec((1, C_in, NT), lambda b, q: (b, 0, q)),   # query tile
                pl.BlockSpec((C_out, C_in), lambda b, q: (0, 0)),
                pl.BlockSpec((1, C_out), lambda b, q: (0, 0)),
                pl.BlockSpec((1, C_out), lambda b, q: (0, 0)),
                pl.BlockSpec((C_out, 1), lambda b, q: (0, 0)),
                pl.BlockSpec((1, K, NT), lambda b, q: (b, 0, q)),
            ],
            out_specs=pl.BlockSpec((1, C_out, NT), lambda b, q: (b, 0, q)),
            scratch_shapes=[
                pltpu.VMEM((K, C_out, NT), jnp.bfloat16),   # gathered neighbor feats
                pltpu.VMEM((K, NT), jnp.float32),           # gathered neighbor scores
            ],
        ),
        compiler_params=pltpu.CompilerParams(
            dimension_semantics=("parallel", "parallel"),
            vmem_limit_bytes=32 * 1024 * 1024,
        ),
    )(x_bcn, x_bcn, w_t, att_i, att_j, bias, idx_t)

    return out_bcn[..., None]                                           # [B, Cout, N, 1]


def reference_forward(x_nchw, edge_index, w_t, att_i, att_j, bias,
                      negative_slope=0.2):
    """Pure-JAX f32 reference mirroring the PyTorch forward (aggr='max', eval)."""
    x = x_nchw[..., 0]                                              # [B, Cin, N]
    h = jnp.maximum(jnp.einsum('oc,bcn->bon', w_t, x), 0.0)         # [B, C, N]
    idx = edge_index[0]                                             # [B, N, K]
    hj = jax.vmap(lambda hb, ib: hb[:, ib])(h, idx)                 # [B, C, N, K]
    ai = jnp.einsum('c,bcn->bn', att_i[0], h)[:, :, None]           # [B, N, 1]
    aj = jnp.einsum('c,bcnk->bnk', att_j[0], hj)                    # [B, N, K]
    e = ai + aj
    e = jnp.where(e >= 0, e, negative_slope * e)
    alpha = jax.nn.softmax(e, axis=-1)                              # [B, N, K]
    out = jnp.max(hj * alpha[:, None, :, :], axis=-1) + bias[None]  # [B, C, N]
    return out[..., None]                                           # [B, C, N, 1]


if __name__ == "__main__":
    B, C_in, C_out, N, K = 2, 16, 32, 256, 9

    key = jax.random.PRNGKey(0)
    k_x, k_w, k_att, k_idx, k_b = jax.random.split(key, 5)

    # Parameters (shapes derived from the module __init__):
    #   Conv2d weight [Cout, Cin, 1, 1] -> [Cout, Cin]
    #   att           [1, 2*Cout, 1, 1] -> att_i / att_j [1, Cout]
    #   bias          [1, Cout, 1, 1]   -> [Cout, 1]
    w_t = (jax.random.normal(k_w, (C_out, C_in), jnp.float32)
           * np.sqrt(2.0 / (C_in + C_out)))
    att = jax.random.uniform(k_att, (2 * C_out,), jnp.float32,
                             minval=-0.3, maxval=0.3)
    att_i = att[:C_out].reshape(1, C_out)
    att_j = att[C_out:].reshape(1, C_out)
    bias = 0.1 * jax.random.normal(k_b, (C_out, 1), jnp.float32)

    # Inputs: x NCHW [B, Cin, N, 1], edge_index [2, B, N, K]
    x = jax.random.normal(k_x, (B, C_in, N, 1), jnp.float32)
    edge_index = jax.random.randint(k_idx, (2, B, N, K), 0, N, jnp.int32)

    out = gat_conv2d_forward(x, edge_index, w_t, att_i, att_j, bias)
    out = jax.block_until_ready(out)

    ref = reference_forward(x, edge_index, w_t, att_i, att_j, bias)
    assert out.shape == (B, C_out, N, 1), out.shape
    # Tolerance loosened vs. the f32 reference because the gather matmul uses
    # bf16 operands and the softmax uses an approximate (EUP) reciprocal.
    np.testing.assert_allclose(np.asarray(out), np.asarray(ref),
                               rtol=2e-2, atol=2e-2)
    print("KERNEL_OK")
</pallas_src>

<mosaic_0001>
module attributes {stable_mosaic.version = 11 : i64} {
  func.func @gat_kernel(%arg0: i32, %arg1: i32, %arg2: memref<1x16x256xf32, #tpu.memory_space<vmem>>, %arg3: memref<1x16x128xf32, #tpu.memory_space<vmem>>, %arg4: memref<32x16xf32, #tpu.memory_space<vmem>>, %arg5: memref<1x32xf32, #tpu.memory_space<vmem>>, %arg6: memref<1x32xf32, #tpu.memory_space<vmem>>, %arg7: memref<32x1xf32, #tpu.memory_space<vmem>>, %arg8: memref<1x9x128xi32, #tpu.memory_space<vmem>>, %arg9: memref<1x32x128xf32, #tpu.memory_space<vmem>>, %arg10: memref<9x32x128xbf16, #tpu.memory_space<vmem>>, %arg11: memref<9x128xf32, #tpu.memory_space<vmem>>) attributes {dimension_semantics = [#tpu.dimension_semantics<parallel>, #tpu.dimension_semantics<parallel>], iteration_bounds = array<i64: 2, 2>, scalar_prefetch = 0 : i64, scratch_operands = 2 : i64, tpu.core_type = #tpu.core_type<tc>, window_params = [{transform_indices = @transform_0, window_bounds = array<i64: 1, 16, 256>}, {transform_indices = @transform_1, window_bounds = array<i64: 1, 16, 128>}, {pipeline_mode = #tpu.pipeline_mode<synchronous>, transform_indices = @transform_2, window_bounds = array<i64: 32, 16>}, {pipeline_mode = #tpu.pipeline_mode<synchronous>, transform_indices = @transform_3, window_bounds = array<i64: 1, 32>}, {pipeline_mode = #tpu.pipeline_mode<synchronous>, transform_indices = @transform_4, window_bounds = array<i64: 1, 32>}, {pipeline_mode = #tpu.pipeline_mode<synchronous>, transform_indices = @transform_5, window_bounds = array<i64: 32, 1>}, {transform_indices = @transform_6, window_bounds = array<i64: 1, 9, 128>}, {transform_indices = @transform_7, window_bounds = array<i64: 1, 32, 128>}]} {
    %c0 = arith.constant 0 : index
    %c0_0 = arith.constant 0 : index
    %0 = vector.load %arg4[%c0, %c0_0] : memref<32x16xf32, #tpu.memory_space<vmem>>, vector<32x16xf32>
    %c0_1 = arith.constant 0 : index
    %c0_2 = arith.constant 0 : index
    %c0_3 = arith.constant 0 : index
    %1 = vector.load %arg2[%c0_1, %c0_2, %c0_3] : memref<1x16x256xf32, #tpu.memory_space<vmem>>, vector<1x16x256xf32>
    %2 = vector.shape_cast %1 : vector<1x16x256xf32> to vector<16x256xf32>
    %cst = arith.constant dense<0.000000e+00> : vector<32x256xf32>
    %3 = tpu.matmul %0, %2, %cst {dimension_numbers = #tpu.dot_dimension_numbers<[1], [0], [0], [1], [0, 0, 1, 1], [], []>} : vector<32x16xf32>, vector<16x256xf32>, vector<32x256xf32> -> vector<32x256xf32>
    %cst_4 = arith.constant 0.000000e+00 : f32
    %4 = vector.broadcast %cst_4 : f32 to vector<32x256xf32>
    %5 = arith.maximumf %3, %4 : vector<32x256xf32>
    %c0_5 = arith.constant 0 : index
    %c0_6 = arith.constant 0 : index
    %6 = vector.load %arg6[%c0_5, %c0_6] : memref<1x32xf32, #tpu.memory_space<vmem>>, vector<1x32xf32>
    %cst_7 = arith.constant dense<0.000000e+00> : vector<1x256xf32>
    %7 = tpu.matmul %6, %5, %cst_7 {dimension_numbers = #tpu.dot_dimension_numbers<[1], [0], [0], [1], [0, 0, 1, 1], [], []>} : vector<1x32xf32>, vector<32x256xf32>, vector<1x256xf32> -> vector<1x256xf32>
    %c0_8 = arith.constant 0 : index
    %c0_9 = arith.constant 0 : index
    %c0_10 = arith.constant 0 : index
    %8 = vector.load %arg3[%c0_8, %c0_9, %c0_10] : memref<1x16x128xf32, #tpu.memory_space<vmem>>, vector<1x16x128xf32>
    %9 = vector.shape_cast %8 : vector<1x16x128xf32> to vector<16x128xf32>
    %cst_11 = arith.constant dense<0.000000e+00> : vector<32x128xf32>
    %10 = tpu.matmul %0, %9, %cst_11 {dimension_numbers = #tpu.dot_dimension_numbers<[1], [0], [0], [1], [0, 0, 1, 1], [], []>} : vector<32x16xf32>, vector<16x128xf32>, vector<32x128xf32> -> vector<32x128xf32>
    %cst_12 = arith.constant 0.000000e+00 : f32
    %11 = vector.broadcast %cst_12 : f32 to vector<32x128xf32>
    %12 = arith.maximumf %10, %11 : vector<32x128xf32>
    %c0_13 = arith.constant 0 : index
    %c0_14 = arith.constant 0 : index
    %13 = vector.load %arg5[%c0_13, %c0_14] : memref<1x32xf32, #tpu.memory_space<vmem>>, vector<1x32xf32>
    %cst_15 = arith.constant dense<0.000000e+00> : vector<1x128xf32>
    %14 = tpu.matmul %13, %12, %cst_15 {dimension_numbers = #tpu.dot_dimension_numbers<[1], [0], [0], [1], [0, 0, 1, 1], [], []>} : vector<1x32xf32>, vector<32x128xf32>, vector<1x128xf32> -> vector<1x128xf32>
    %15 = arith.truncf %5 : vector<32x256xf32> to vector<32x256xbf16>
    %16 = arith.truncf %7 : vector<1x256xf32> to vector<1x256xbf16>
    %c0_16 = arith.constant 0 : index
    %c0_17 = arith.constant 0 : index
    %c0_18 = arith.constant 0 : index
    %17 = vector.load %arg8[%c0_16, %c0_17, %c0_18] : memref<1x9x128xi32, #tpu.memory_space<vmem>>, vector<1x9x128xi32>
    %18 = vector.shape_cast %17 : vector<1x9x128xi32> to vector<9x128xi32>
    %19 = tpu.iota {dimensions = array<i32: 0>} : vector<256x128xi32>
    %20 = vector.extract_strided_slice %18 {offsets = [0, 0], sizes = [1, 128], strides = [1, 1]} : vector<9x128xi32> to vector<1x128xi32>
    %21 = vector.broadcast %20 : vector<1x128xi32> to vector<256x128xi32>
    %22 = arith.cmpi eq, %19, %21 : vector<256x128xi32>
    %cst_19 = arith.constant 1.000000e+00 : f32
    %cst_20 = arith.constant 0.000000e+00 : f32
    %23 = vector.broadcast %cst_19 : f32 to vector<256x128xf32>
    %24 = vector.broadcast %cst_20 : f32 to vector<256x128xf32>
    %25 = arith.select %22, %23, %24 : vector<256x128xi1>, vector<256x128xf32>
    %26 = arith.truncf %25 : vector<256x128xf32> to vector<256x128xbf16>
    %cst_21 = arith.constant dense<0.000000e+00> : vector<32x128xf32>
    %27 = tpu.matmul %15, %26, %cst_21 {dimension_numbers = #tpu.dot_dimension_numbers<[1], [0], [0], [1], [0, 0, 1, 1], [], []>} : vector<32x256xbf16>, vector<256x128xbf16>, vector<32x128xf32> -> vector<32x128xf32>
    %cst_22 = arith.constant dense<0.000000e+00> : vector<1x128xf32>
    %28 = tpu.matmul %16, %26, %cst_22 {dimension_numbers = #tpu.dot_dimension_numbers<[1], [0], [0], [1], [0, 0, 1, 1], [], []>} : vector<1x256xbf16>, vector<256x128xbf16>, vector<1x128xf32> -> vector<1x128xf32>
    %29 = arith.truncf %27 : vector<32x128xf32> to vector<32x128xbf16>
    %c0_23 = arith.constant 0 : index
    %c0_24 = arith.constant 0 : index
    %c0_25 = arith.constant 0 : index
    %30 = vector.load %arg10[%c0_23, %c0_24, %c0_25] : memref<9x32x128xbf16, #tpu.memory_space<vmem>>, vector<1x32x128xbf16>
    %31 = vector.shape_cast %30 : vector<1x32x128xbf16> to vector<32x128xbf16>
    %32 = vector.shape_cast %29 : vector<32x128xbf16> to vector<1x32x128xbf16>
    tpu.vector_store %arg10[%c0_23, %c0_24, %c0_25], %32 {strides = array<i32>} : memref<9x32x128xbf16, #tpu.memory_space<vmem>>, vector<1x32x128xbf16>,
    %c0_26 = arith.constant 0 : index
    %c0_27 = arith.constant 0 : index
    %33 = vector.load %arg11[%c0_26, %c0_27] : memref<9x128xf32, #tpu.memory_space<vmem>>, vector<1x128xf32>
    tpu.vector_store %arg11[%c0_26, %c0_27], %28 {strides = array<i32>} : memref<9x128xf32, #tpu.memory_space<vmem>>, vector<1x128xf32>,
    %34 = vector.extract_strided_slice %18 {offsets = [1, 0], sizes = [1, 128], strides = [1, 1]} : vector<9x128xi32> to vector<1x128xi32>
    %35 = vector.broadcast %34 : vector<1x128xi32> to vector<256x128xi32>
    %36 = arith.cmpi eq, %19, %35 : vector<256x128xi32>
    %cst_28 = arith.constant 1.000000e+00 : f32
    %cst_29 = arith.constant 0.000000e+00 : f32
    %37 = vector.broadcast %cst_28 : f32 to vector<256x128xf32>
    %38 = vector.broadcast %cst_29 : f32 to vector<256x128xf32>
    %39 = arith.select %36, %37, %38 : vector<256x128xi1>, vector<256x128xf32>
    %40 = arith.truncf %39 : vector<256x128xf32> to vector<256x128xbf16>
    %cst_30 = arith.constant dense<0.000000e+00> : vector<32x128xf32>
    %41 = tpu.matmul %15, %40, %cst_30 {dimension_numbers = #tpu.dot_dimension_numbers<[1], [0], [0], [1], [0, 0, 1, 1], [], []>} : vector<32x256xbf16>, vector<256x128xbf16>, vector<32x128xf32> -> vector<32x128xf32>
    %cst_31 = arith.constant dense<0.000000e+00> : vector<1x128xf32>
    %42 = tpu.matmul %16, %40, %cst_31 {dimension_numbers = #tpu.dot_dimension_numbers<[1], [0], [0], [1], [0, 0, 1, 1], [], []>} : vector<1x256xbf16>, vector<256x128xbf16>, vector<1x128xf32> -> vector<1x128xf32>
    %43 = arith.truncf %41 : vector<32x128xf32> to vector<32x128xbf16>
    %c1 = arith.constant 1 : index
    %c0_32 = arith.constant 0 : index
    %c0_33 = arith.constant 0 : index
    %44 = vector.load %arg10[%c1, %c0_32, %c0_33] : memref<9x32x128xbf16, #tpu.memory_space<vmem>>, vector<1x32x128xbf16>
    %45 = vector.shape_cast %44 : vector<1x32x128xbf16> to vector<32x128xbf16>
    %46 = vector.shape_cast %43 : vector<32x128xbf16> to vector<1x32x128xbf16>
    tpu.vector_store %arg10[%c1, %c0_32, %c0_33], %46 {strides = array<i32>} : memref<9x32x128xbf16, #tpu.memory_space<vmem>>, vector<1x32x128xbf16>,
    %c1_34 = arith.constant 1 : index
    %c0_35 = arith.constant 0 : index
    %47 = vector.load %arg11[%c1_34, %c0_35] : memref<9x128xf32, #tpu.memory_space<vmem>>, vector<1x128xf32>
    tpu.vector_store %arg11[%c1_34, %c0_35], %42 {strides = array<i32>} : memref<9x128xf32, #tpu.memory_space<vmem>>, vector<1x128xf32>,
    %48 = vector.extract_strided_slice %18 {offsets = [2, 0], sizes = [1, 128], strides = [1, 1]} : vector<9x128xi32> to vector<1x128xi32>
    %49 = vector.broadcast %48 : vector<1x128xi32> to vector<256x128xi32>
    %50 = arith.cmpi eq, %19, %49 : vector<256x128xi32>
    %cst_36 = arith.constant 1.000000e+00 : f32
    %cst_37 = arith.constant 0.000000e+00 : f32
    %51 = vector.broadcast %cst_36 : f32 to vector<256x128xf32>
    %52 = vector.broadcast %cst_37 : f32 to vector<256x128xf32>
    %53 = arith.select %50, %51, %52 : vector<256x128xi1>, vector<256x128xf32>
    %54 = arith.truncf %53 : vector<256x128xf32> to vector<256x128xbf16>
    %cst_38 = arith.constant dense<0.000000e+00> : vector<32x128xf32>
    %55 = tpu.matmul %15, %54, %cst_38 {dimension_numbers = #tpu.dot_dimension_numbers<[1], [0], [0], [1], [0, 0, 1, 1], [], []>} : vector<32x256xbf16>, vector<256x128xbf16>, vector<32x128xf32> -> vector<32x128xf32>
    %cst_39 = arith.constant dense<0.000000e+00> : vector<1x128xf32>
    %56 = tpu.matmul %16, %54, %cst_39 {dimension_numbers = #tpu.dot_dimension_numbers<[1], [0], [0], [1], [0, 0, 1, 1], [], []>} : vector<1x256xbf16>, vector<256x128xbf16>, vector<1x128xf32> -> vector<1x128xf32>
    %57 = arith.truncf %55 : vector<32x128xf32> to vector<32x128xbf16>
    %c2 = arith.constant 2 : index
    %c0_40 = arith.constant 0 : index
    %c0_41 = arith.constant 0 : index
    %58 = vector.load %arg10[%c2, %c0_40, %c0_41] : memref<9x32x128xbf16, #tpu.memory_space<vmem>>, vector<1x32x128xbf16>
    %59 = vector.shape_cast %58 : vector<1x32x128xbf16> to vector<32x128xbf16>
    %60 = vector.shape_cast %57 : vector<32x128xbf16> to vector<1x32x128xbf16>
    tpu.vector_store %arg10[%c2, %c0_40, %c0_41], %60 {strides = array<i32>} : memref<9x32x128xbf16, #tpu.memory_space<vmem>>, vector<1x32x128xbf16>,
    %c2_42 = arith.constant 2 : index
    %c0_43 = arith.constant 0 : index
    %61 = vector.load %arg11[%c2_42, %c0_43] : memref<9x128xf32, #tpu.memory_space<vmem>>, vector<1x128xf32>
    tpu.vector_store %arg11[%c2_42, %c0_43], %56 {strides = array<i32>} : memref<9x128xf32, #tpu.memory_space<vmem>>, vector<1x128xf32>,
    %62 = vector.extract_strided_slice %18 {offsets = [3, 0], sizes = [1, 128], strides = [1, 1]} : vector<9x128xi32> to vector<1x128xi32>
    %63 = vector.broadcast %62 : vector<1x128xi32> to vector<256x128xi32>
    %64 = arith.cmpi eq, %19, %63 : vector<256x128xi32>
    %cst_44 = arith.constant 1.000000e+00 : f32
    %cst_45 = arith.constant 0.000000e+00 : f32
    %65 = vector.broadcast %cst_44 : f32 to vector<256x128xf32>
    %66 = vector.broadcast %cst_45 : f32 to vector<256x128xf32>
    %67 = arith.select %64, %65, %66 : vector<256x128xi1>, vector<256x128xf32>
    %68 = arith.truncf %67 : vector<256x128xf32> to vector<256x128xbf16>
    %cst_46 = arith.constant dense<0.000000e+00> : vector<32x128xf32>
    %69 = tpu.matmul %15, %68, %cst_46 {dimension_numbers = #tpu.dot_dimension_numbers<[1], [0], [0], [1], [0, 0, 1, 1], [], []>} : vector<32x256xbf16>, vector<256x128xbf16>, vector<32x128xf32> -> vector<32x128xf32>
    %cst_47 = arith.constant dense<0.000000e+00> : vector<1x128xf32>
    %70 = tpu.matmul %16, %68, %cst_47 {dimension_numbers = #tpu.dot_dimension_numbers<[1], [0], [0], [1], [0, 0, 1, 1], [], []>} : vector<1x256xbf16>, vector<256x128xbf16>, vector<1x128xf32> -> vector<1x128xf32>
    %71 = arith.truncf %69 : vector<32x128xf32> to vector<32x128xbf16>
    %c3 = arith.constant 3 : index
    %c0_48 = arith.constant 0 : index
    %c0_49 = arith.constant 0 : index
    %72 = vector.load %arg10[%c3, %c0_48, %c0_49] : memref<9x32x128xbf16, #tpu.memory_space<vmem>>, vector<1x32x128xbf16>
    %73 = vector.shape_cast %72 : vector<1x32x128xbf16> to vector<32x128xbf16>
    %74 = vector.shape_cast %71 : vector<32x128xbf16> to vector<1x32x128xbf16>
    tpu.vector_store %arg10[%c3, %c0_48, %c0_49], %74 {strides = array<i32>} : memref<9x32x128xbf16, #tpu.memory_space<vmem>>, vector<1x32x128xbf16>,
    %c3_50 = arith.constant 3 : index
    %c0_51 = arith.constant 0 : index
    %75 = vector.load %arg11[%c3_50, %c0_51] : memref<9x128xf32, #tpu.memory_space<vmem>>, vector<1x128xf32>
    tpu.vector_store %arg11[%c3_50, %c0_51], %70 {strides = array<i32>} : memref<9x128xf32, #tpu.memory_space<vmem>>, vector<1x128xf32>,
    %76 = vector.extract_strided_slice %18 {offsets = [4, 0], sizes = [1, 128], strides = [1, 1]} : vector<9x128xi32> to vector<1x128xi32>
    %77 = vector.broadcast %76 : vector<1x128xi32> to vector<256x128xi32>
    %78 = arith.cmpi eq, %19, %77 : vector<256x128xi32>
    %cst_52 = arith.constant 1.000000e+00 : f32
    %cst_53 = arith.constant 0.000000e+00 : f32
    %79 = vector.broadcast %cst_52 : f32 to vector<256x128xf32>
    %80 = vector.broadcast %cst_53 : f32 to vector<256x128xf32>
    %81 = arith.select %78, %79, %80 : vector<256x128xi1>, vector<256x128xf32>
    %82 = arith.truncf %81 : vector<256x128xf32> to vector<256x128xbf16>
    %cst_54 = arith.constant dense<0.000000e+00> : vector<32x128xf32>
    %83 = tpu.matmul %15, %82, %cst_54 {dimension_numbers = #tpu.dot_dimension_numbers<[1], [0], [0], [1], [0, 0, 1, 1], [], []>} : vector<32x256xbf16>, vector<256x128xbf16>, vector<32x128xf32> -> vector<32x128xf32>
    %cst_55 = arith.constant dense<0.000000e+00> : vector<1x128xf32>
    %84 = tpu.matmul %16, %82, %cst_55 {dimension_numbers = #tpu.dot_dimension_numbers<[1], [0], [0], [1], [0, 0, 1, 1], [], []>} : vector<1x256xbf16>, vector<256x128xbf16>, vector<1x128xf32> -> vector<1x128xf32>
    %85 = arith.truncf %83 : vector<32x128xf32> to vector<32x128xbf16>
    %c4 = arith.constant 4 : index
    %c0_56 = arith.constant 0 : index
    %c0_57 = arith.constant 0 : index
    %86 = vector.load %arg10[%c4, %c0_56, %c0_57] : memref<9x32x128xbf16, #tpu.memory_space<vmem>>, vector<1x32x128xbf16>
    %87 = vector.shape_cast %86 : vector<1x32x128xbf16> to vector<32x128xbf16>
    %88 = vector.shape_cast %85 : vector<32x128xbf16> to vector<1x32x128xbf16>
    tpu.vector_store %arg10[%c4, %c0_56, %c0_57], %88 {strides = array<i32>} : memref<9x32x128xbf16, #tpu.memory_space<vmem>>, vector<1x32x128xbf16>,
    %c4_58 = arith.constant 4 : index
    %c0_59 = arith.constant 0 : index
    %89 = vector.load %arg11[%c4_58, %c0_59] : memref<9x128xf32, #tpu.memory_space<vmem>>, vector<1x128xf32>
    tpu.vector_store %arg11[%c4_58, %c0_59], %84 {strides = array<i32>} : memref<9x128xf32, #tpu.memory_space<vmem>>, vector<1x128xf32>,
    %90 = vector.extract_strided_slice %18 {offsets = [5, 0], sizes = [1, 128], strides = [1, 1]} : vector<9x128xi32> to vector<1x128xi32>
    %91 = vector.broadcast %90 : vector<1x128xi32> to vector<256x128xi32>
    %92 = arith.cmpi eq, %19, %91 : vector<256x128xi32>
    %cst_60 = arith.constant 1.000000e+00 : f32
    %cst_61 = arith.constant 0.000000e+00 : f32
    %93 = vector.broadcast %cst_60 : f32 to vector<256x128xf32>
    %94 = vector.broadcast %cst_61 : f32 to vector<256x128xf32>
    %95 = arith.select %92, %93, %94 : vector<256x128xi1>, vector<256x128xf32>
    %96 = arith.truncf %95 : vector<256x128xf32> to vector<256x128xbf16>
    %cst_62 = arith.constant dense<0.000000e+00> : vector<32x128xf32>
    %97 = tpu.matmul %15, %96, %cst_62 {dimension_numbers = #tpu.dot_dimension_numbers<[1], [0], [0], [1], [0, 0, 1, 1], [], []>} : vector<32x256xbf16>, vector<256x128xbf16>, vector<32x128xf32> -> vector<32x128xf32>
    %cst_63 = arith.constant dense<0.000000e+00> : vector<1x128xf32>
    %98 = tpu.matmul %16, %96, %cst_63 {dimension_numbers = #tpu.dot_dimension_numbers<[1], [0], [0], [1], [0, 0, 1, 1], [], []>} : vector<1x256xbf16>, vector<256x128xbf16>, vector<1x128xf32> -> vector<1x128xf32>
    %99 = arith.truncf %97 : vector<32x128xf32> to vector<32x128xbf16>
    %c5 = arith.constant 5 : index
    %c0_64 = arith.constant 0 : index
    %c0_65 = arith.constant 0 : index
    %100 = vector.load %arg10[%c5, %c0_64, %c0_65] : memref<9x32x128xbf16, #tpu.memory_space<vmem>>, vector<1x32x128xbf16>
    %101 = vector.shape_cast %100 : vector<1x32x128xbf16> to vector<32x128xbf16>
    %102 = vector.shape_cast %99 : vector<32x128xbf16> to vector<1x32x128xbf16>
    tpu.vector_store %arg10[%c5, %c0_64, %c0_65], %102 {strides = array<i32>} : memref<9x32x128xbf16, #tpu.memory_space<vmem>>, vector<1x32x128xbf16>,
    %c5_66 = arith.constant 5 : index
    %c0_67 = arith.constant 0 : index
    %103 = vector.load %arg11[%c5_66, %c0_67] : memref<9x128xf32, #tpu.memory_space<vmem>>, vector<1x128xf32>
    tpu.vector_store %arg11[%c5_66, %c0_67], %98 {strides = array<i32>} : memref<9x128xf32, #tpu.memory_space<vmem>>, vector<1x128xf32>,
    %104 = vector.extract_strided_slice %18 {offsets = [6, 0], sizes = [1, 128], strides = [1, 1]} : vector<9x128xi32> to vector<1x128xi32>
    %105 = vector.broadcast %104 : vector<1x128xi32> to vector<256x128xi32>
    %106 = arith.cmpi eq, %19, %105 : vector<256x128xi32>
    %cst_68 = arith.constant 1.000000e+00 : f32
    %cst_69 = arith.constant 0.000000e+00 : f32
    %107 = vector.broadcast %cst_68 : f32 to vector<256x128xf32>
    %108 = vector.broadcast %cst_69 : f32 to vector<256x128xf32>
    %109 = arith.select %106, %107, %108 : vector<256x128xi1>, vector<256x128xf32>
    %110 = arith.truncf %109 : vector<256x128xf32> to vector<256x128xbf16>
    %cst_70 = arith.constant dense<0.000000e+00> : vector<32x128xf32>
    %111 = tpu.matmul %15, %110, %cst_70 {dimension_numbers = #tpu.dot_dimension_numbers<[1], [0], [0], [1], [0, 0, 1, 1], [], []>} : vector<32x256xbf16>, vector<256x128xbf16>, vector<32x128xf32> -> vector<32x128xf32>
    %cst_71 = arith.constant dense<0.000000e+00> : vector<1x128xf32>
    %112 = tpu.matmul %16, %110, %cst_71 {dimension_numbers = #tpu.dot_dimension_numbers<[1], [0], [0], [1], [0, 0, 1, 1], [], []>} : vector<1x256xbf16>, vector<256x128xbf16>, vector<1x128xf32> -> vector<1x128xf32>
    %113 = arith.truncf %111 : vector<32x128xf32> to vector<32x128xbf16>
    %c6 = arith.constant 6 : index
    %c0_72 = arith.constant 0 : index
    %c0_73 = arith.constant 0 : index
    %114 = vector.load %arg10[%c6, %c0_72, %c0_73] : memref<9x32x128xbf16, #tpu.memory_space<vmem>>, vector<1x32x128xbf16>
    %115 = vector.shape_cast %114 : vector<1x32x128xbf16> to vector<32x128xbf16>
    %116 = vector.shape_cast %113 : vector<32x128xbf16> to vector<1x32x128xbf16>
    tpu.vector_store %arg10[%c6, %c0_72, %c0_73], %116 {strides = array<i32>} : memref<9x32x128xbf16, #tpu.memory_space<vmem>>, vector<1x32x128xbf16>,
    %c6_74 = arith.constant 6 : index
    %c0_75 = arith.constant 0 : index
    %117 = vector.load %arg11[%c6_74, %c0_75] : memref<9x128xf32, #tpu.memory_space<vmem>>, vector<1x128xf32>
    tpu.vector_store %arg11[%c6_74, %c0_75], %112 {strides = array<i32>} : memref<9x128xf32, #tpu.memory_space<vmem>>, vector<1x128xf32>,
    %118 = vector.extract_strided_slice %18 {offsets = [7, 0], sizes = [1, 128], strides = [1, 1]} : vector<9x128xi32> to vector<1x128xi32>
    %119 = vector.broadcast %118 : vector<1x128xi32> to vector<256x128xi32>
    %120 = arith.cmpi eq, %19, %119 : vector<256x128xi32>
    %cst_76 = arith.constant 1.000000e+00 : f32
    %cst_77 = arith.constant 0.000000e+00 : f32
    %121 = vector.broadcast %cst_76 : f32 to vector<256x128xf32>
    %122 = vector.broadcast %cst_77 : f32 to vector<256x128xf32>
    %123 = arith.select %120, %121, %122 : vector<256x128xi1>, vector<256x128xf32>
    %124 = arith.truncf %123 : vector<256x128xf32> to vector<256x128xbf16>
    %cst_78 = arith.constant dense<0.000000e+00> : vector<32x128xf32>
    %125 = tpu.matmul %15, %124, %cst_78 {dimension_numbers = #tpu.dot_dimension_numbers<[1], [0], [0], [1], [0, 0, 1, 1], [], []>} : vector<32x256xbf16>, vector<256x128xbf16>, vector<32x128xf32> -> vector<32x128xf32>
    %cst_79 = arith.constant dense<0.000000e+00> : vector<1x128xf32>
    %126 = tpu.matmul %16, %124, %cst_79 {dimension_numbers = #tpu.dot_dimension_numbers<[1], [0], [0], [1], [0, 0, 1, 1], [], []>} : vector<1x256xbf16>, vector<256x128xbf16>, vector<1x128xf32> -> vector<1x128xf32>
    %127 = arith.truncf %125 : vector<32x128xf32> to vector<32x128xbf16>
    %c7 = arith.constant 7 : index
    %c0_80 = arith.constant 0 : index
    %c0_81 = arith.constant 0 : index
    %128 = vector.load %arg10[%c7, %c0_80, %c0_81] : memref<9x32x128xbf16, #tpu.memory_space<vmem>>, vector<1x32x128xbf16>
    %129 = vector.shape_cast %128 : vector<1x32x128xbf16> to vector<32x128xbf16>
    %130 = vector.shape_cast %127 : vector<32x128xbf16> to vector<1x32x128xbf16>
    tpu.vector_store %arg10[%c7, %c0_80, %c0_81], %130 {strides = array<i32>} : memref<9x32x128xbf16, #tpu.memory_space<vmem>>, vector<1x32x128xbf16>,
    %c7_82 = arith.constant 7 : index
    %c0_83 = arith.constant 0 : index
    %131 = vector.load %arg11[%c7_82, %c0_83] : memref<9x128xf32, #tpu.memory_space<vmem>>, vector<1x128xf32>
    tpu.vector_store %arg11[%c7_82, %c0_83], %126 {strides = array<i32>} : memref<9x128xf32, #tpu.memory_space<vmem>>, vector<1x128xf32>,
    %132 = vector.extract_strided_slice %18 {offsets = [8, 0], sizes = [1, 128], strides = [1, 1]} : vector<9x128xi32> to vector<1x128xi32>
    %133 = vector.broadcast %132 : vector<1x128xi32> to vector<256x128xi32>
    %134 = arith.cmpi eq, %19, %133 : vector<256x128xi32>
    %cst_84 = arith.constant 1.000000e+00 : f32
    %cst_85 = arith.constant 0.000000e+00 : f32
    %135 = vector.broadcast %cst_84 : f32 to vector<256x128xf32>
    %136 = vector.broadcast %cst_85 : f32 to vector<256x128xf32>
    %137 = arith.select %134, %135, %136 : vector<256x128xi1>, vector<256x128xf32>
    %138 = arith.truncf %137 : vector<256x128xf32> to vector<256x128xbf16>
    %cst_86 = arith.constant dense<0.000000e+00> : vector<32x128xf32>
    %139 = tpu.matmul %15, %138, %cst_86 {dimension_numbers = #tpu.dot_dimension_numbers<[1], [0], [0], [1], [0, 0, 1, 1], [], []>} : vector<32x256xbf16>, vector<256x128xbf16>, vector<32x128xf32> -> vector<32x128xf32>
    %cst_87 = arith.constant dense<0.000000e+00> : vector<1x128xf32>
    %140 = tpu.matmul %16, %138, %cst_87 {dimension_numbers = #tpu.dot_dimension_numbers<[1], [0], [0], [1], [0, 0, 1, 1], [], []>} : vector<1x256xbf16>, vector<256x128xbf16>, vector<1x128xf32> -> vector<1x128xf32>
    %141 = arith.truncf %139 : vector<32x128xf32> to vector<32x128xbf16>
    %c8 = arith.constant 8 : index
    %c0_88 = arith.constant 0 : index
    %c0_89 = arith.constant 0 : index
    %142 = vector.load %arg10[%c8, %c0_88, %c0_89] : memref<9x32x128xbf16, #tpu.memory_space<vmem>>, vector<1x32x128xbf16>
    %143 = vector.shape_cast %142 : vector<1x32x128xbf16> to vector<32x128xbf16>
    %144 = vector.shape_cast %141 : vector<32x128xbf16> to vector<1x32x128xbf16>
    tpu.vector_store %arg10[%c8, %c0_88, %c0_89], %144 {strides = array<i32>} : memref<9x32x128xbf16, #tpu.memory_space<vmem>>, vector<1x32x128xbf16>,
    %c8_90 = arith.constant 8 : index
    %c0_91 = arith.constant 0 : index
    %145 = vector.load %arg11[%c8_90, %c0_91] : memref<9x128xf32, #tpu.memory_space<vmem>>, vector<1x128xf32>
    tpu.vector_store %arg11[%c8_90, %c0_91], %140 {strides = array<i32>} : memref<9x128xf32, #tpu.memory_space<vmem>>, vector<1x128xf32>,
    %c0_92 = arith.constant 0 : index
    %c0_93 = arith.constant 0 : index
    %146 = vector.load %arg11[%c0_92, %c0_93] : memref<9x128xf32, #tpu.memory_space<vmem>>, vector<9x128xf32>
    %147 = vector.broadcast %14 : vector<1x128xf32> to vector<9x128xf32>
    %148 = arith.addf %147, %146 : vector<9x128xf32>
    %cst_94 = arith.constant 0.000000e+00 : f32
    %149 = vector.broadcast %cst_94 : f32 to vector<9x128xf32>
    %150 = arith.cmpf oge, %148, %149 : vector<9x128xf32>
    %cst_95 = arith.constant 2.000000e-01 : f32
    %151 = vector.broadcast %cst_95 : f32 to vector<9x128xf32>
    %152 = arith.mulf %151, %148 : vector<9x128xf32>
    %153 = arith.select %150, %148, %152 : vector<9x128xi1>, vector<9x128xf32>
    %cst_96 = arith.constant dense<0xFF800000> : vector<128xf32>
    %154 = vector.multi_reduction <maximumf>, %153, %cst_96 [0] : vector<9x128xf32> to vector<128xf32>
    %155 = vector.shape_cast %154 : vector<128xf32> to vector<1x128xf32>
    %156 = vector.broadcast %155 : vector<1x128xf32> to vector<9x128xf32>
    %157 = arith.subf %153, %156 : vector<9x128xf32>
    %158 = math.exp %157 : vector<9x128xf32>
    %cst_97 = arith.constant dense<0.000000e+00> : vector<128xf32>
    %159 = vector.multi_reduction <add>, %158, %cst_97 [0] : vector<9x128xf32> to vector<128xf32>
    %160 = vector.shape_cast %159 : vector<128xf32> to vector<1x128xf32>
    %161 = tpu.reciprocal %160 {approx = true} : vector<1x128xf32> -> vector<1x128xf32>
    %162 = vector.broadcast %161 : vector<1x128xf32> to vector<9x128xf32>
    %163 = arith.mulf %158, %162 : vector<9x128xf32>
    %c0_98 = arith.constant 0 : index
    %c0_99 = arith.constant 0 : index
    %c0_100 = arith.constant 0 : index
    %164 = vector.load %arg10[%c0_98, %c0_99, %c0_100] : memref<9x32x128xbf16, #tpu.memory_space<vmem>>, vector<1x32x128xbf16>
    %165 = vector.shape_cast %164 : vector<1x32x128xbf16> to vector<32x128xbf16>
    %166 = arith.extf %165 : vector<32x128xbf16> to vector<32x128xf32>
    %167 = vector.extract_strided_slice %163 {offsets = [0, 0], sizes = [1, 128], strides = [1, 1]} : vector<9x128xf32> to vector<1x128xf32>
    %168 = vector.broadcast %167 : vector<1x128xf32> to vector<32x128xf32>
    %169 = arith.mulf %166, %168 : vector<32x128xf32>
    %c1_101 = arith.constant 1 : index
    %c0_102 = arith.constant 0 : index
    %c0_103 = arith.constant 0 : index
    %170 = vector.load %arg10[%c1_101, %c0_102, %c0_103] : memref<9x32x128xbf16, #tpu.memory_space<vmem>>, vector<1x32x128xbf16>
    %171 = vector.shape_cast %170 : vector<1x32x128xbf16> to vector<32x128xbf16>
    %172 = arith.extf %171 : vector<32x128xbf16> to vector<32x128xf32>
    %173 = vector.extract_strided_slice %163 {offsets = [1, 0], sizes = [1, 128], strides = [1, 1]} : vector<9x128xf32> to vector<1x128xf32>
    %174 = vector.broadcast %173 : vector<1x128xf32> to vector<32x128xf32>
    %175 = arith.mulf %172, %174 : vector<32x128xf32>
    %176 = arith.maximumf %169, %175 : vector<32x128xf32>
    %c2_104 = arith.constant 2 : index
    %c0_105 = arith.constant 0 : index
    %c0_106 = arith.constant 0 : index
    %177 = vector.load %arg10[%c2_104, %c0_105, %c0_106] : memref<9x32x128xbf16, #tpu.memory_space<vmem>>, vector<1x32x128xbf16>
    %178 = vector.shape_cast %177 : vector<1x32x128xbf16> to vector<32x128xbf16>
    %179 = arith.extf %178 : vector<32x128xbf16> to vector<32x128xf32>
    %180 = vector.extract_strided_slice %163 {offsets = [2, 0], sizes = [1, 128], strides = [1, 1]} : vector<9x128xf32> to vector<1x128xf32>
    %181 = vector.broadcast %180 : vector<1x128xf32> to vector<32x128xf32>
    %182 = arith.mulf %179, %181 : vector<32x128xf32>
    %183 = arith.maximumf %176, %182 : vector<32x128xf32>
    %c3_107 = arith.constant 3 : index
    %c0_108 = arith.constant 0 : index
    %c0_109 = arith.constant 0 : index
    %184 = vector.load %arg10[%c3_107, %c0_108, %c0_109] : memref<9x32x128xbf16, #tpu.memory_space<vmem>>, vector<1x32x128xbf16>
    %185 = vector.shape_cast %184 : vector<1x32x128xbf16> to vector<32x128xbf16>
    %186 = arith.extf %185 : vector<32x128xbf16> to vector<32x128xf32>
    %187 = vector.extract_strided_slice %163 {offsets = [3, 0], sizes = [1, 128], strides = [1, 1]} : vector<9x128xf32> to vector<1x128xf32>
    %188 = vector.broadcast %187 : vector<1x128xf32> to vector<32x128xf32>
    %189 = arith.mulf %186, %188 : vector<32x128xf32>
    %190 = arith.maximumf %183, %189 : vector<32x128xf32>
    %c4_110 = arith.constant 4 : index
    %c0_111 = arith.constant 0 : index
    %c0_112 = arith.constant 0 : index
    %191 = vector.load %arg10[%c4_110, %c0_111, %c0_112] : memref<9x32x128xbf16, #tpu.memory_space<vmem>>, vector<1x32x128xbf16>
    %192 = vector.shape_cast %191 : vector<1x32x128xbf16> to vector<32x128xbf16>
    %193 = arith.extf %192 : vector<32x128xbf16> to vector<32x128xf32>
    %194 = vector.extract_strided_slice %163 {offsets = [4, 0], sizes = [1, 128], strides = [1, 1]} : vector<9x128xf32> to vector<1x128xf32>
    %195 = vector.broadcast %194 : vector<1x128xf32> to vector<32x128xf32>
    %196 = arith.mulf %193, %195 : vector<32x128xf32>
    %197 = arith.maximumf %190, %196 : vector<32x128xf32>
    %c5_113 = arith.constant 5 : index
    %c0_114 = arith.constant 0 : index
    %c0_115 = arith.constant 0 : index
    %198 = vector.load %arg10[%c5_113, %c0_114, %c0_115] : memref<9x32x128xbf16, #tpu.memory_space<vmem>>, vector<1x32x128xbf16>
    %199 = vector.shape_cast %198 : vector<1x32x128xbf16> to vector<32x128xbf16>
    %200 = arith.extf %199 : vector<32x128xbf16> to vector<32x128xf32>
    %201 = vector.extract_strided_slice %163 {offsets = [5, 0], sizes = [1, 128], strides = [1, 1]} : vector<9x128xf32> to vector<1x128xf32>
    %202 = vector.broadcast %201 : vector<1x128xf32> to vector<32x128xf32>
    %203 = arith.mulf %200, %202 : vector<32x128xf32>
    %204 = arith.maximumf %197, %203 : vector<32x128xf32>
    %c6_116 = arith.constant 6 : index
    %c0_117 = arith.constant 0 : index
    %c0_118 = arith.constant 0 : index
    %205 = vector.load %arg10[%c6_116, %c0_117, %c0_118] : memref<9x32x128xbf16, #tpu.memory_space<vmem>>, vector<1x32x128xbf16>
    %206 = vector.shape_cast %205 : vector<1x32x128xbf16> to vector<32x128xbf16>
    %207 = arith.extf %206 : vector<32x128xbf16> to vector<32x128xf32>
    %208 = vector.extract_strided_slice %163 {offsets = [6, 0], sizes = [1, 128], strides = [1, 1]} : vector<9x128xf32> to vector<1x128xf32>
    %209 = vector.broadcast %208 : vector<1x128xf32> to vector<32x128xf32>
    %210 = arith.mulf %207, %209 : vector<32x128xf32>
    %211 = arith.maximumf %204, %210 : vector<32x128xf32>
    %c7_119 = arith.constant 7 : index
    %c0_120 = arith.constant 0 : index
    %c0_121 = arith.constant 0 : index
    %212 = vector.load %arg10[%c7_119, %c0_120, %c0_121] : memref<9x32x128xbf16, #tpu.memory_space<vmem>>, vector<1x32x128xbf16>
    %213 = vector.shape_cast %212 : vector<1x32x128xbf16> to vector<32x128xbf16>
    %214 = arith.extf %213 : vector<32x128xbf16> to vector<32x128xf32>
    %215 = vector.extract_strided_slice %163 {offsets = [7, 0], sizes = [1, 128], strides = [1, 1]} : vector<9x128xf32> to vector<1x128xf32>
    %216 = vector.broadcast %215 : vector<1x128xf32> to vector<32x128xf32>
    %217 = arith.mulf %214, %216 : vector<32x128xf32>
    %218 = arith.maximumf %211, %217 : vector<32x128xf32>
    %c8_122 = arith.constant 8 : index
    %c0_123 = arith.constant 0 : index
    %c0_124 = arith.constant 0 : index
    %219 = vector.load %arg10[%c8_122, %c0_123, %c0_124] : memref<9x32x128xbf16, #tpu.memory_space<vmem>>, vector<1x32x128xbf16>
    %220 = vector.shape_cast %219 : vector<1x32x128xbf16> to vector<32x128xbf16>
    %221 = arith.extf %220 : vector<32x128xbf16> to vector<32x128xf32>
    %222 = vector.extract_strided_slice %163 {offsets = [8, 0], sizes = [1, 128], strides = [1, 1]} : vector<9x128xf32> to vector<1x128xf32>
    %223 = vector.broadcast %222 : vector<1x128xf32> to vector<32x128xf32>
    %224 = arith.mulf %221, %223 : vector<32x128xf32>
    %225 = arith.maximumf %218, %224 : vector<32x128xf32>
    %c0_125 = arith.constant 0 : index
    %c0_126 = arith.constant 0 : index
    %226 = vector.load %arg7[%c0_125, %c0_126] : memref<32x1xf32, #tpu.memory_space<vmem>>, vector<32x1xf32>
    %227 = vector.broadcast %226 : vector<32x1xf32> to vector<32x128xf32>
    %228 = arith.addf %225, %227 : vector<32x128xf32>
    %c0_127 = arith.constant 0 : index
    %c0_128 = arith.constant 0 : index
    %c0_129 = arith.constant 0 : index
    %229 = vector.load %arg9[%c0_127, %c0_128, %c0_129] : memref<1x32x128xf32, #tpu.memory_space<vmem>>, vector<1x32x128xf32>
    %230 = vector.shape_cast %229 : vector<1x32x128xf32> to vector<32x128xf32>
    %231 = vector.shape_cast %228 : vector<32x128xf32> to vector<1x32x128xf32>
    tpu.vector_store %arg9[%c0_127, %c0_128, %c0_129], %231 {strides = array<i32>} : memref<1x32x128xf32, #tpu.memory_space<vmem>>, vector<1x32x128xf32>,
    return
  }
  func.func @transform_0(%arg0: i32, %arg1: i32) -> (i32, i32, i32) {
    %c0_i32 = arith.constant 0 : i32
    %c0_i32_0 = arith.constant 0 : i32
    %c0_i32_1 = arith.constant 0 : i32
    return %arg0, %c0_i32, %c0_i32_0 : i32, i32, i32
  }
  func.func @transform_1(%arg0: i32, %arg1: i32) -> (i32, i32, i32) {
    %c0_i32 = arith.constant 0 : i32
    %c0_i32_0 = arith.constant 0 : i32
    return %arg0, %c0_i32, %arg1 : i32, i32, i32
  }
  func.func @transform_2(%arg0: i32, %arg1: i32) -> (i32, i32) {
    %c0_i32 = arith.constant 0 : i32
    %c0_i32_0 = arith.constant 0 : i32
    %c0_i32_1 = arith.constant 0 : i32
    return %c0_i32, %c0_i32_0 : i32, i32
  }
  func.func @transform_3(%arg0: i32, %arg1: i32) -> (i32, i32) {
    %c0_i32 = arith.constant 0 : i32
    %c0_i32_0 = arith.constant 0 : i32
    %c0_i32_1 = arith.constant 0 : i32
    return %c0_i32, %c0_i32_0 : i32, i32
  }
  func.func @transform_4(%arg0: i32, %arg1: i32) -> (i32, i32) {
    %c0_i32 = arith.constant 0 : i32
    %c0_i32_0 = arith.constant 0 : i32
    %c0_i32_1 = arith.constant 0 : i32
    return %c0_i32, %c0_i32_0 : i32, i32
  }
  func.func @transform_5(%arg0: i32, %arg1: i32) -> (i32, i32) {
    %c0_i32 = arith.constant 0 : i32
    %c0_i32_0 = arith.constant 0 : i32
    %c0_i32_1 = arith.constant 0 : i32
    return %c0_i32, %c0_i32_0 : i32, i32
  }
  func.func @transform_6(%arg0: i32, %arg1: i32) -> (i32, i32, i32) {
    %c0_i32 = arith.constant 0 : i32
    %c0_i32_0 = arith.constant 0 : i32
    return %arg0, %c0_i32, %arg1 : i32, i32, i32
  }
  func.func @transform_7(%arg0: i32, %arg1: i32) -> (i32, i32, i32) {
    %c0_i32 = arith.constant 0 : i32
    %c0_i32_0 = arith.constant 0 : i32
    return %arg0, %c0_i32, %arg1 : i32, i32, i32
  }
}

</mosaic_0001>

<llo_original>
// kernel: tpu_custom_call.1
$region0: #{tpu_custom_call.1}
  #allocation0 [shape = 'u32[]', space=smem, size = 0x4, offset = 0x4, fixed_abs, tag = 'smem constant byte address 0x4 - core index']
  #allocation1 [shape = 'u32[72,128]{1,0:T(1,128)}', space=vmem, size = 0x9000, scoped, tag = 'internal scratch']
  #allocation2 [shape = 'bf16[9,32,128]{2,1,0:T(8,128)(2,1)}', space=vmem, size = 0x12000, scoped, tag = 'scratch operand']
  #allocation3 [shape = 'f32[9,128]{1,0:T(8,128)}', space=vmem, size = 0x2000, scoped, tag = 'scratch operand']
  %s0 = inlined_call_operand.vmem [shape: f32[2,16,256], index: 0, kind: input, shape index: {}]
  %s1 = inlined_call_operand.vmem [shape: f32[2,16,256], index: 1, kind: input, shape index: {}]
  %s2 = inlined_call_operand.vmem [shape: f32[32,16], index: 2, kind: input, shape index: {}]
  %s3 = inlined_call_operand.vmem [shape: f32[1,32], index: 3, kind: input, shape index: {}]
  %s4 = inlined_call_operand.vmem [shape: f32[1,32], index: 4, kind: input, shape index: {}]
  %s5 = inlined_call_operand.vmem [shape: f32[32,1], index: 5, kind: input, shape index: {}]
  %s6 = inlined_call_operand.vmem [shape: s32[2,9,256], index: 6, kind: input, shape index: {}]
  %s7 = inlined_call_operand.hbm [shape: f32[2,32,256], index: 7, kind: output, shape index: {}]
  %s8 = sld [smem:[#allocation0]]
  $region137: #{tpu_custom_call.1} parent=0
    _
  %s10 = ssub.s32 1, %s8
  %s11 = scalar_select 0, %s10, %s8
  $region1: #{tpu_custom_call.1} parent=0
    #allocation4 [shape = 'u8[16384]{0}', space=vmem, size = 0x4000, scoped, tag = 'input window, operand 1']
    #allocation5 [shape = 'u8[16384]{0}', space=vmem, size = 0x4000, scoped, tag = 'input window, operand 6']
    #allocation6 [shape = 'u8[32768]{0}', space=vmem, size = 0x8000, scoped, tag = 'output window, operand 0']
    #allocation7 [shape = 's32[2]{0}', space=sflag, size = 0x8, scoped, tag = 'scoped memory for tpu_custom_call.1']
    %12 = vsyncpa [#allocation7], 0
    %s13 = scalar_lea.sflag [#allocation7], 1
    %14 = vsyncpa %s13, 0
    loop: start=0, step=1, limit=6
    $region2: #{tpu_custom_call.1} parent=1 // loop_pre_header
      _
    $region3: #{tpu_custom_call.1} parent=1 // loop_header
      %s16 = sphi 0, %s20
      %p17 = scmp.ge.s32.totalorder %s16, 6
      %s23 = sphi 0, %s35
      %s24 = sphi 0, %s31
      %s25 = sphi 0, %s23
      %s26 = sphi 0, %s24
      %s27 = sphi 0, %s25
      %s28 = sphi 0, %s26
      %s38 = sphi 0, %s40
      %s41 = sphi 0, %s38
      %s42 = sphi 0, %s41
      %s58 = sphi 0, %s42
      %s66 = sphi 0, %s68
      %s69 = sphi 0, %s66
      %s70 = sphi 0, %s69
      %s86 = sphi 0, %s70
      %s90 = sphi 0, %s90
      %s92 = sphi 0, %s90
      %s93 = sphi 0, %s92
      %s107 = sphi 0, %s93
      %s111 = sphi 0, %s111
      %s113 = sphi 0, %s111
      %s114 = sphi 0, %s113
      %s128 = sphi 0, %s114
      %s132 = sphi 0, %s132
      %s134 = sphi 0, %s132
      %s135 = sphi 0, %s134
      %s149 = sphi 0, %s135
      %s153 = sphi 0, %s153
      %s155 = sphi 0, %s153
      %s156 = sphi 0, %s155
      %s170 = sphi 0, %s156
      %s178 = sphi 0, %s180
      %s181 = sphi 0, %s178
      %s182 = sphi 0, %s181
      %s198 = sphi 0, %s182
      %s206 = sphi 0, %s208
      %s209 = sphi 0, %s206
      %s210 = sphi 0, %s209
      %s226 = sphi 0, %s210
    $region4: #{tpu_custom_call.1} parent=1 // loop_header_branch
      %19 = sbr.rel (%p17) target = $region8
    $region5: #{tpu_custom_call.1} parent=1 // loop_body
      %s21 = ssub.s32 %s16, 1
      %s22 = ssub.s32 %s16, 2
      %s29 = sadd.s32 1, %s24
      %p30 = scmp.ge.s32.totalorder %s29, 2
      %s31 = scalar_select %p30, 0, %s29
      %s32 = sadd.s32 1, %s23
      %s33 = scalar_select %p30, %s32, %s23
      %p34 = scmp.ge.s32.totalorder %s33, 2
      %s35 = scalar_select %p34, 0, %s33
      %s36 = ssub.s32 %s23, %s35
      %p37 = scmp.eq.s32.totalorder %s36, 0
      %s39 = sadd.s32 %s38, 1
      %s40 = scalar_select %p37, %s38, %s39
      %p43 = pneg %p37
      %p44 = scmp.eq.s32.totalorder %s16, 3
      %p45 = por %p43, %p44
      %p46 = scmp.ne.s32.totalorder %s38, %s41
      %p47 = scmp.eq.s32.totalorder %s16, 0
      %p48 = por %p46, %p47
      %p49 = scmp.ne.s32.totalorder %s38, %s41
      %p50 = scmp.eq.s32.totalorder %s21, 3
      %p51 = por %p49, %p50
      %p52 = scmp.ne.s32.totalorder %s41, %s42
      %p53 = scmp.eq.s32.totalorder %s21, 0
      %p54 = por %p52, %p53
      %p55 = scmp.ne.s32.totalorder %s41, %s42
      %p56 = scmp.eq.s32.totalorder %s22, 3
      %p57 = por %p55, %p56
      %p59 = scmp.ne.s32.totalorder %s42, %s58
      %p60 = scmp.eq.s32.totalorder %s22, 0
      %p61 = por %p59, %p60
      %s62 = ssub.s32 %s23, %s35
      %s63 = ssub.s32 %s24, %s31
      %s64 = sor.u32 %s62, %s63
      %p65 = scmp.eq.s32.totalorder %s64, 0
      %s67 = sadd.s32 %s66, 1
      %s68 = scalar_select %p65, %s66, %s67
      %p71 = pneg %p65
      %p72 = scmp.eq.s32.totalorder %s16, 3
      %p73 = por %p71, %p72
      %p74 = scmp.ne.s32.totalorder %s66, %s69
      %p75 = scmp.eq.s32.totalorder %s16, 0
      %p76 = por %p74, %p75
      %p77 = scmp.ne.s32.totalorder %s66, %s69
      %p78 = scmp.eq.s32.totalorder %s21, 3
      %p79 = por %p77, %p78
      %p80 = scmp.ne.s32.totalorder %s69, %s70
      %p81 = scmp.eq.s32.totalorder %s21, 0
      %p82 = por %p80, %p81
      %p83 = scmp.ne.s32.totalorder %s69, %s70
      %p84 = scmp.eq.s32.totalorder %s22, 3
      %p85 = por %p83, %p84
      %p87 = scmp.ne.s32.totalorder %s70, %s86
      %p88 = scmp.eq.s32.totalorder %s22, 0
      %p89 = por %p87, %p88
      %s91 = sadd.s32 %s90, 1
      %p94 = scmp.eq.s32.totalorder %s16, 3
      %p95 = scmp.ne.s32.totalorder %s90, %s92
      %p96 = scmp.eq.s32.totalorder %s16, 0
      %p97 = por %p95, %p96
      %p98 = scmp.ne.s32.totalorder %s90, %s92
      %p99 = scmp.eq.s32.totalorder %s21, 3
      %p100 = por %p98, %p99
      %p101 = scmp.ne.s32.totalorder %s92, %s93
      %p102 = scmp.eq.s32.totalorder %s21, 0
      %p103 = por %p101, %p102
      %p104 = scmp.ne.s32.totalorder %s92, %s93
      %p105 = scmp.eq.s32.totalorder %s22, 3
      %p106 = por %p104, %p105
      %p108 = scmp.ne.s32.totalorder %s93, %s107
      %p109 = scmp.eq.s32.totalorder %s22, 0
      %p110 = por %p108, %p109
      %s112 = sadd.s32 %s111, 1
      %p115 = scmp.eq.s32.totalorder %s16, 3
      %p116 = scmp.ne.s32.totalorder %s111, %s113
      %p117 = scmp.eq.s32.totalorder %s16, 0
      %p118 = por %p116, %p117
      %p119 = scmp.ne.s32.totalorder %s111, %s113
      %p120 = scmp.eq.s32.totalorder %s21, 3
      %p121 = por %p119, %p120
      %p122 = scmp.ne.s32.totalorder %s113, %s114
      %p123 = scmp.eq.s32.totalorder %s21, 0
      %p124 = por %p122, %p123
      %p125 = scmp.ne.s32.totalorder %s113, %s114
      %p126 = scmp.eq.s32.totalorder %s22, 3
      %p127 = por %p125, %p126
      %p129 = scmp.ne.s32.totalorder %s114, %s128
      %p130 = scmp.eq.s32.totalorder %s22, 0
      %p131 = por %p129, %p130
      %s133 = sadd.s32 %s132, 1
      %p136 = scmp.eq.s32.totalorder %s16, 3
      %p137 = scmp.ne.s32.totalorder %s132, %s134
      %p138 = scmp.eq.s32.totalorder %s16, 0
      %p139 = por %p137, %p138
      %p140 = scmp.ne.s32.totalorder %s132, %s134
      %p141 = scmp.eq.s32.totalorder %s21, 3
      %p142 = por %p140, %p141
      %p143 = scmp.ne.s32.totalorder %s134, %s135
      %p144 = scmp.eq.s32.totalorder %s21, 0
      %p145 = por %p143, %p144
      %p146 = scmp.ne.s32.totalorder %s134, %s135
      %p147 = scmp.eq.s32.totalorder %s22, 3
      %p148 = por %p146, %p147
      %p150 = scmp.ne.s32.totalorder %s135, %s149
      %p151 = scmp.eq.s32.totalorder %s22, 0
      %p152 = por %p150, %p151
      %s154 = sadd.s32 %s153, 1
      %p157 = scmp.eq.s32.totalorder %s16, 3
      %p158 = scmp.ne.s32.totalorder %s153, %s155
      %p159 = scmp.eq.s32.totalorder %s16, 0
      %p160 = por %p158, %p159
      %p161 = scmp.ne.s32.totalorder %s153, %s155
      %p162 = scmp.eq.s32.totalorder %s21, 3
      %p163 = por %p161, %p162
      %p164 = scmp.ne.s32.totalorder %s155, %s156
      %p165 = scmp.eq.s32.totalorder %s21, 0
      %p166 = por %p164, %p165
      %p167 = scmp.ne.s32.totalorder %s155, %s156
      %p168 = scmp.eq.s32.totalorder %s22, 3
      %p169 = por %p167, %p168
      %p171 = scmp.ne.s32.totalorder %s156, %s170
      %p172 = scmp.eq.s32.totalorder %s22, 0
      %p173 = por %p171, %p172
      %s174 = ssub.s32 %s23, %s35
      %s175 = ssub.s32 %s24, %s31
      %s176 = sor.u32 %s174, %s175
      %p177 = scmp.eq.s32.totalorder %s176, 0
      %s179 = sadd.s32 %s178, 1
      %s180 = scalar_select %p177, %s178, %s179
      %p183 = pneg %p177
      %p184 = scmp.eq.s32.totalorder %s16, 3
      %p185 = por %p183, %p184
      %p186 = scmp.ne.s32.totalorder %s178, %s181
      %p187 = scmp.eq.s32.totalorder %s16, 0
      %p188 = por %p186, %p187
      %p189 = scmp.ne.s32.totalorder %s178, %s181
      %p190 = scmp.eq.s32.totalorder %s21, 3
      %p191 = por %p189, %p190
      %p192 = scmp.ne.s32.totalorder %s181, %s182
      %p193 = scmp.eq.s32.totalorder %s21, 0
      %p194 = por %p192, %p193
      %p195 = scmp.ne.s32.totalorder %s181, %s182
      %p196 = scmp.eq.s32.totalorder %s22, 3
      %p197 = por %p195, %p196
      %p199 = scmp.ne.s32.totalorder %s182, %s198
      %p200 = scmp.eq.s32.totalorder %s22, 0
      %p201 = por %p199, %p200
      %s202 = ssub.s32 %s23, %s35
      %s203 = ssub.s32 %s24, %s31
      %s204 = sor.u32 %s202, %s203
      %p205 = scmp.eq.s32.totalorder %s204, 0
      %s207 = sadd.s32 %s206, 1
      %s208 = scalar_select %p205, %s206, %s207
      %p211 = pneg %p205
      %p212 = scmp.eq.s32.totalorder %s16, 3
      %p213 = por %p211, %p212
      %p214 = scmp.ne.s32.totalorder %s206, %s209
      %p215 = scmp.eq.s32.totalorder %s16, 0
      %p216 = por %p214, %p215
      %p217 = scmp.ne.s32.totalorder %s206, %s209
      %p218 = scmp.eq.s32.totalorder %s21, 3
      %p219 = por %p217, %p218
      %p220 = scmp.ne.s32.totalorder %s209, %s210
      %p221 = scmp.eq.s32.totalorder %s21, 0
      %p222 = por %p220, %p221
      %p223 = scmp.ne.s32.totalorder %s209, %s210
      %p224 = scmp.eq.s32.totalorder %s22, 3
      %p225 = por %p223, %p224
      %p227 = scmp.ne.s32.totalorder %s210, %s226
      %p228 = scmp.eq.s32.totalorder %s22, 0
      %p229 = por %p227, %p228
      %p230 = scmp.le.s32.totalorder 1, %s16
      %p231 = scmp.lt.s32.totalorder %s16, 5
      %p232 = pnand %p230, %p231
      %p233 = pneg %p232
      // Predicated region
      $region9: #{tpu_custom_call.1} parent=5 // pred_check
        _
      $region10: #{tpu_custom_call.1} parent=5 // pred_check_branch
        %235 = sbr.rel (%p232) target = $region12
      $region11: #{tpu_custom_call.1} parent=5 // pred_region
        %s236 = ssub.s32 %s16, 1
        // Predicated region
        $region13: #{tpu_custom_call.1} parent=11 // pred_check
          %p237 = pneg %p103
        $region14: #{tpu_custom_call.1} parent=11 // pred_check_branch
          %239 = sbr.rel (%p237) target = $region16
        $region15: #{tpu_custom_call.1} parent=11 // pred_region
          _
        $region16: #{tpu_custom_call.1} parent=11 // pred_fallthru
          _
        // Predicated region
        $region17: #{tpu_custom_call.1} parent=11 // pred_check
          %p240 = pneg %p124
        $region18: #{tpu_custom_call.1} parent=11 // pred_check_branch
          %242 = sbr.rel (%p240) target = $region20
        $region19: #{tpu_custom_call.1} parent=11 // pred_region
          _
        $region20: #{tpu_custom_call.1} parent=11 // pred_fallthru
          _
        // Predicated region
        $region21: #{tpu_custom_call.1} parent=11 // pred_check
          %p243 = pneg %p145
        $region22: #{tpu_custom_call.1} parent=11 // pred_check_branch
          %245 = sbr.rel (%p243) target = $region24
        $region23: #{tpu_custom_call.1} parent=11 // pred_region
          _
        $region24: #{tpu_custom_call.1} parent=11 // pred_fallthru
          _
        // Predicated region
        $region25: #{tpu_custom_call.1} parent=11 // pred_check
          %p246 = pneg %p166
        $region26: #{tpu_custom_call.1} parent=11 // pred_check_branch
          %248 = sbr.rel (%p246) target = $region28
        $region27: #{tpu_custom_call.1} parent=11 // pred_region
          _
        $region28: #{tpu_custom_call.1} parent=11 // pred_fallthru
          _
      $region12: #{tpu_custom_call.1} parent=5 // pred_fallthru
        _
      %p249 = scmp.lt.s32.totalorder %s16, 4
      // Predicated region
      $region29: #{tpu_custom_call.1} parent=5 // pred_check
        %p250 = pneg %p249
      $region30: #{tpu_custom_call.1} parent=5 // pred_check_branch
        %252 = sbr.rel (%p250) target = $region32
      $region31: #{tpu_custom_call.1} parent=5 // pred_region
        // Predicated region
        $region33: #{tpu_custom_call.1} parent=31 // pred_check
          %p253 = pneg %p48
        $region34: #{tpu_custom_call.1} parent=31 // pred_check_branch
          %255 = sbr.rel (%p253) target = $region36
        $region35: #{tpu_custom_call.1} parent=31 // pred_region
          %p256 = scmp.lt.s32.totalorder %s23, 1
          %s257 = scalar_select %p256, %s23, 1
          %s258 = smul.addr %s257, 4
          %s259 = smul.addr %s258, 8
          %s260 = scalar_lea.vmem %s0, %s259
        $region36: #{tpu_custom_call.1} parent=31 // pred_fallthru
          _
        // Predicated region
        $region37: #{tpu_custom_call.1} parent=31 // pred_check
          %p261 = pneg %p76
        $region38: #{tpu_custom_call.1} parent=31 // pred_check_branch
          %263 = sbr.rel (%p261) target = $region40
        $region39: #{tpu_custom_call.1} parent=31 // pred_region
          %s264 = sand.u32 %s66, 1
          %s265 = sand.u32 %s66, 1
          %s266 = smul.addr %s265, 16
          %s267 = scalar_lea.vmem [#allocation4], %s266
          %s268 = smul.addr %s23, 4
          %s269 = sadd.s32 %s24, %s268
          %s270 = smul.addr %s269, 8
          %s271 = scalar_lea.vmem %s1, %s270
          // Predicated region
          $region41: #{tpu_custom_call.1} parent=39 // pred_check
            _
          $region42: #{tpu_custom_call.1} parent=39 // pred_check_branch
            %273 = sbr.rel (0) target = $region44
          $region43: #{tpu_custom_call.1} parent=39 // pred_region
            // Predicated region
            $region45: #{tpu_custom_call.1} parent=43 // pred_check
              _
            $region46: #{tpu_custom_call.1} parent=43 // pred_check_branch
              %275 = sbr.rel (0) target = $region48
            $region47: #{tpu_custom_call.1} parent=43 // pred_region
              // Predicated region
              $region60: #{tpu_custom_call.1} parent=47 // pred_check
                _
              $region61: #{tpu_custom_call.1} parent=47 // pred_check_branch
                %293 = sbr.rel (0) target = $region63
              $region62: #{tpu_custom_call.1} parent=47 // pred_region
                loop: start=0, step=1, limit=1
                $region64: #{tpu_custom_call.1} parent=62 // loop_pre_header
                  _
                $region65: #{tpu_custom_call.1} parent=62 // loop_header
                  %s295 = sphi 0, %s299
                  %p296 = scmp.ge.s32.totalorder %s295, 1
                  %s300 = sphi %s271, %s271
                  %s301 = sphi %s267, %s267
                $region66: #{tpu_custom_call.1} parent=62 // loop_header_branch
                  %298 = sbr.rel (%p296) target = $region70
                $region67: #{tpu_custom_call.1} parent=62 // loop_body
                  %v302 = vld [vmem:[%s300] sm:$0xff]
                  %303 = vst [vmem:[%s301] sm:$0xff] %v302
                  %v304 = vld [vmem:[%s300 + $0x10] sm:$0xff]
                  %305 = vst [vmem:[%s301 + $0x8] sm:$0xff] %v304
                $region68: #{tpu_custom_call.1} parent=62 // loop_footer
                  %s299 = sadd.s32 1, %s295
                $region69: #{tpu_custom_call.1} parent=62 // loop_footer_branch
                  %294 = sbr.rel target = $region65
                $region70: #{tpu_custom_call.1} parent=62 // loop_exit
                  _
              $region63: #{tpu_custom_call.1} parent=47 // pred_fallthru
                _
              // Predicated region
              $region71: #{tpu_custom_call.1} parent=47 // pred_check
                _
              $region72: #{tpu_custom_call.1} parent=47 // pred_check_branch
                %307 = sbr.rel target = $region74
              $region73: #{tpu_custom_call.1} parent=47 // pred_region
                _
              $region74: #{tpu_custom_call.1} parent=47 // pred_fallthru
                _
            $region48: #{tpu_custom_call.1} parent=43 // pred_fallthru
              _
            // Predicated region
            $region49: #{tpu_custom_call.1} parent=43 // pred_check
              _
            $region50: #{tpu_custom_call.1} parent=43 // pred_check_branch
              %277 = sbr.rel target = $region52
            $region51: #{tpu_custom_call.1} parent=43 // pred_region
              %s279 = ssub.s32 256, 1
              loop: start=0, step=1, limit=1
              $region53: #{tpu_custom_call.1} parent=51 // loop_pre_header
                _
              $region54: #{tpu_custom_call.1} parent=51 // loop_header
                %s281 = sphi 0, %s285
                %p282 = scmp.ge.s32.totalorder %s281, 1
                %s286 = sphi %s271, %s271
                %s287 = sphi %s267, %s267
              $region55: #{tpu_custom_call.1} parent=51 // loop_header_branch
                %284 = sbr.rel (%p282) target = $region59
              $region56: #{tpu_custom_call.1} parent=51 // loop_body
                %v288 = vld [vmem:[%s286] sm:%s279]
                %289 = vst [vmem:[%s287] sm:%s279] %v288
                %v290 = vld [vmem:[%s286 + $0x10] sm:%s279]
                %291 = vst [vmem:[%s287 + $0x8] sm:%s279] %v290
              $region57: #{tpu_custom_call.1} parent=51 // loop_footer
                %s285 = sadd.s32 1, %s281
              $region58: #{tpu_custom_call.1} parent=51 // loop_footer_branch
                %280 = sbr.rel target = $region54
              $region59: #{tpu_custom_call.1} parent=51 // loop_exit
                _
            $region52: #{tpu_custom_call.1} parent=43 // pred_fallthru
              _
          $region44: #{tpu_custom_call.1} parent=39 // pred_fallthru
            _
          %308 = vnop
        $region40: #{tpu_custom_call.1} parent=31 // pred_fallthru
          _
        // Predicated region
        $region75: #{tpu_custom_call.1} parent=31 // pred_check
          %p309 = pneg %p188
        $region76: #{tpu_custom_call.1} parent=31 // pred_check_branch
          %311 = sbr.rel (%p309) target = $region78
        $region77: #{tpu_custom_call.1} parent=31 // pred_region
          %s312 = sand.u32 %s178, 1
          %s313 = sand.u32 %s178, 1
          %s314 = smul.addr %s313, 16
          %s315 = scalar_lea.vmem [#allocation5], %s314
          %s316 = smul.addr %s23, 4
          %s317 = sadd.s32 %s24, %s316
          %s318 = smul.addr %s317, 8
          %s319 = scalar_lea.vmem %s6, %s318
          // Predicated region
          $region79: #{tpu_custom_call.1} parent=77 // pred_check
            _
          $region80: #{tpu_custom_call.1} parent=77 // pred_check_branch
            %321 = sbr.rel (0) target = $region82
          $region81: #{tpu_custom_call.1} parent=77 // pred_region
            // Predicated region
            $region83: #{tpu_custom_call.1} parent=81 // pred_check
              _
            $region84: #{tpu_custom_call.1} parent=81 // pred_check_branch
              %323 = sbr.rel (0) target = $region86
            $region85: #{tpu_custom_call.1} parent=81 // pred_region
              // Predicated region
              $region98: #{tpu_custom_call.1} parent=85 // pred_check
                _
              $region99: #{tpu_custom_call.1} parent=85 // pred_check_branch
                %341 = sbr.rel (0) target = $region101
              $region100: #{tpu_custom_call.1} parent=85 // pred_region
                loop: start=0, step=1, limit=1
                $region102: #{tpu_custom_call.1} parent=100 // loop_pre_header
                  _
                $region103: #{tpu_custom_call.1} parent=100 // loop_header
                  %s343 = sphi 0, %s347
                  %p344 = scmp.ge.s32.totalorder %s343, 1
                  %s348 = sphi %s319, %s319
                  %s349 = sphi %s315, %s315
                $region104: #{tpu_custom_call.1} parent=100 // loop_header_branch
                  %346 = sbr.rel (%p344) target = $region108
                $region105: #{tpu_custom_call.1} parent=100 // loop_body
                  %v350 = vld [vmem:[%s348] sm:$0xff]
                  %351 = vst [vmem:[%s349] sm:$0xff] %v350
                  %v352 = vld [vmem:[%s348 + $0x10] sm:$0xff]
                  %353 = vst [vmem:[%s349 + $0x8] sm:$0xff] %v352
                $region106: #{tpu_custom_call.1} parent=100 // loop_footer
                  %s347 = sadd.s32 1, %s343
                $region107: #{tpu_custom_call.1} parent=100 // loop_footer_branch
                  %342 = sbr.rel target = $region103
                $region108: #{tpu_custom_call.1} parent=100 // loop_exit
                  _
              $region101: #{tpu_custom_call.1} parent=85 // pred_fallthru
                _
              // Predicated region
              $region109: #{tpu_custom_call.1} parent=85 // pred_check
                _
              $region110: #{tpu_custom_call.1} parent=85 // pred_check_branch
                %355 = sbr.rel target = $region112
              $region111: #{tpu_custom_call.1} parent=85 // pred_region
                _
              $region112: #{tpu_custom_call.1} parent=85 // pred_fallthru
                _
            $region86: #{tpu_custom_call.1} parent=81 // pred_fallthru
              _
            // Predicated region
            $region87: #{tpu_custom_call.1} parent=81 // pred_check
              _
            $region88: #{tpu_custom_call.1} parent=81 // pred_check_branch
              %325 = sbr.rel target = $region90
            $region89: #{tpu_custom_call.1} parent=81 // pred_region
              %s327 = ssub.s32 256, 1
              loop: start=0, step=1, limit=1
              $region91: #{tpu_custom_call.1} parent=89 // loop_pre_header
                _
              $region92: #{tpu_custom_call.1} parent=89 // loop_header
                %s329 = sphi 0, %s333
                %p330 = scmp.ge.s32.totalorder %s329, 1
                %s334 = sphi %s319, %s319
                %s335 = sphi %s315, %s315
              $region93: #{tpu_custom_call.1} parent=89 // loop_header_branch
                %332 = sbr.rel (%p330) target = $region97
              $region94: #{tpu_custom_call.1} parent=89 // loop_body
                %v336 = vld [vmem:[%s334] sm:%s327]
                %337 = vst [vmem:[%s335] sm:%s327] %v336
                %v338 = vld [vmem:[%s334 + $0x10] sm:%s327]
                %339 = vst [vmem:[%s335 + $0x8] sm:%s327] %v338
              $region95: #{tpu_custom_call.1} parent=89 // loop_footer
                %s333 = sadd.s32 1, %s329
              $region96: #{tpu_custom_call.1} parent=89 // loop_footer_branch
                %328 = sbr.rel target = $region92
              $region97: #{tpu_custom_call.1} parent=89 // loop_exit
                _
            $region90: #{tpu_custom_call.1} parent=81 // pred_fallthru
              _
          $region82: #{tpu_custom_call.1} parent=77 // pred_fallthru
            _
          %356 = vnop
        $region78: #{tpu_custom_call.1} parent=31 // pred_fallthru
          _
      $region32: #{tpu_custom_call.1} parent=5 // pred_fallthru
        _
      %p357 = scmp.le.s32.totalorder 1, %s16
      %p358 = scmp.lt.s32.totalorder %s16, 5
      %p359 = pnand %p357, %p358
      %p360 = pneg %p359
      // Predicated region
      $region113: #{tpu_custom_call.1} parent=5 // pred_check
        _
      $region114: #{tpu_custom_call.1} parent=5 // pred_check_branch
        %362 = sbr.rel (%p359) target = $region116
      $region115: #{tpu_custom_call.1} parent=5 // pred_region
        %s363 = ssub.s32 %s16, 1
        %s364 = sand.u32 %s69, 1
        %s365 = sand.u32 %s69, 1
        %s366 = smul.addr %s365, 16
        %s367 = scalar_lea.vmem [#allocation4], %s366
        // Predicated region
        $region117: #{tpu_custom_call.1} parent=115 // pred_check
          %p368 = pneg %p82
        $region118: #{tpu_custom_call.1} parent=115 // pred_check_branch
          %370 = sbr.rel (%p368) target = $region120
        $region119: #{tpu_custom_call.1} parent=115 // pred_region
          _
        $region120: #{tpu_custom_call.1} parent=115 // pred_fallthru
          _
        %s371 = sand.u32 %s181, 1
        %s372 = sand.u32 %s181, 1
        %s373 = smul.addr %s372, 16
        %s374 = scalar_lea.vmem [#allocation5], %s373
        // Predicated region
        $region121: #{tpu_custom_call.1} parent=115 // pred_check
          %p375 = pneg %p194
        $region122: #{tpu_custom_call.1} parent=115 // pred_check_branch
          %377 = sbr.rel (%p375) target = $region124
        $region123: #{tpu_custom_call.1} parent=115 // pred_region
          _
        $region124: #{tpu_custom_call.1} parent=115 // pred_fallthru
          _
        %p378 = scmp.lt.s32.totalorder %s25, 1
        %s379 = scalar_select %p378, %s25, 1
        %s380 = smul.addr %s379, 4
        %s381 = smul.addr %s380, 8
        %s382 = scalar_lea.vmem %s0, %s381
        %p383 = pneg %p54
        %p384 = pneg %p51
        %s385 = sand.u32 %s69, 1
        %s386 = sand.u32 %s69, 1
        %s387 = smul.addr %s386, 16
        %s388 = scalar_lea.vmem [#allocation4], %s387
        %p389 = pneg %p82
        %p390 = pneg %p79
        %p391 = pneg %p103
        %p392 = pneg %p100
        %p393 = pneg %p124
        %p394 = pneg %p121
        %p395 = pneg %p145
        %p396 = pneg %p142
        %p397 = pneg %p166
        %p398 = pneg %p163
        %s399 = sand.u32 %s181, 1
        %s400 = sand.u32 %s181, 1
        %s401 = smul.addr %s400, 16
        %s402 = scalar_lea.vmem [#allocation5], %s401
        %p403 = pneg %p194
        %p404 = pneg %p191
        %p405 = pneg %p222
        %p406 = pneg %p219
        %s407 = sand.u32 %s209, 1
        %s408 = scalar_lea.sflag [#allocation7], %s407
        %s409 = sand.u32 %s209, 1
        %s410 = smul.addr %s409, 32
        %s411 = scalar_lea.vmem [#allocation6], %s410
        %p412 = scmp.lt.s32.totalorder %s25, 1
        %s413 = scalar_select %p412, %s25, 1
        %s414 = smul.addr %s413, 4
        %s415 = smul.addr %s414, 8
        %s416 = scalar_lea.vmem %s0, %s415
        %v417 = vld [vmem:[%s2] sm:$0xff]
        %v418 = vld [vmem:[%s2 + $0x8] sm:$0xff]
        %v419 = vld [vmem:[%s2 + $0x10] sm:$0xff]
        %v420 = vld [vmem:[%s2 + $0x18] sm:$0xff]
        %v421 = vld [vmem:[%s416] sm:$0xff]
        %v422 = vld [vmem:[%s416 + $0x8] sm:$0xff]
        %v423 = vld [vmem:[%s416 + $0x10] sm:$0xff]
        %v424 = vld [vmem:[%s416 + $0x18] sm:$0xff]
        %vm425 = vcmask 130048
        %v427 = vsel %vm425, %v417, 0
        %v430 = vsel %vm425, %v418, 0
        %v433 = vsel %vm425, %v419, 0
        %v436 = vsel %vm425, %v420, 0
        %438 = vmatpush.msra.mxu0 0.0
        %439 = vmatpush.msra.mxu0 0.0
        %440 = vmatpush.msra.mxu0 0.0
        %441 = vmatpush.msra.mxu0 0.0
        %442 = vmatpush.msra.mxu0 0.0
        %443 = vmatpush.msra.mxu0 0.0
        %444 = vmatpush.msra.mxu0 0.0
        %445 = vmatpush.msra.mxu0 0.0
        %446 = vmatpush.msra.mxu0 0.0
        %447 = vmatpush.msra.mxu0 0.0
        %448 = vmatpush.msra.mxu0 0.0
        %449 = vmatpush.msra.mxu0 0.0
        %450 = vmatpush.msra.mxu0 0.0
        %451 = vmatpush.msra.mxu0 0.0
        %452 = vmatpush.msra.mxu0 %v423
        %453 = vmatpush.msra.mxu0 %v421
        %454 = vmatmul.f32.gmra.mxu0 %v427
        %v455 = vpop.f32.mrf.mxu0
        %v456 = vadd.f32 0.0, %v455
        %457 = vmatmul.f32.gmra.mxu0 %v430
        %v458 = vpop.f32.mrf.mxu0
        %v459 = vadd.f32 0.0, %v458
        %460 = vmatmul.f32.gmra.mxu0 %v433
        %v461 = vpop.f32.mrf.mxu0
        %v462 = vadd.f32 0.0, %v461
        %463 = vmatmul.f32.gmra.mxu0 %v436
        %v464 = vpop.f32.mrf.mxu0
        %v465 = vadd.f32 0.0, %v464
        %466 = vdwg.mxu0
        %467 = vmatpush.msra.mxu0 0.0
        %468 = vmatpush.msra.mxu0 0.0
        %469 = vmatpush.msra.mxu0 0.0
        %470 = vmatpush.msra.mxu0 0.0
        %471 = vmatpush.msra.mxu0 0.0
        %472 = vmatpush.msra.mxu0 0.0
        %473 = vmatpush.msra.mxu0 0.0
        %474 = vmatpush.msra.mxu0 0.0
        %475 = vmatpush.msra.mxu0 0.0
        %476 = vmatpush.msra.mxu0 0.0
        %477 = vmatpush.msra.mxu0 0.0
        %478 = vmatpush.msra.mxu0 0.0
        %479 = vmatpush.msra.mxu0 0.0
        %480 = vmatpush.msra.mxu0 0.0
        %481 = vmatpush.msra.mxu0 %v424
        %482 = vmatpush.msra.mxu0 %v422
        %483 = vmatmul.f32.gmra.mxu0 %v427
        %v484 = vpop.f32.mrf.mxu0
        %v485 = vadd.f32 0.0, %v484
        %486 = vmatmul.f32.gmra.mxu0 %v430
        %v487 = vpop.f32.mrf.mxu0
        %v488 = vadd.f32 0.0, %v487
        %489 = vmatmul.f32.gmra.mxu0 %v433
        %v490 = vpop.f32.mrf.mxu0
        %v491 = vadd.f32 0.0, %v490
        %492 = vmatmul.f32.gmra.mxu0 %v436
        %v493 = vpop.f32.mrf.mxu0
        %v494 = vadd.f32 0.0, %v493
        %495 = vdwg.mxu0
        %v496 = vmax.f32 %v456, 0.0
        %v497 = vmax.f32 %v485, 0.0
        %v498 = vmax.f32 %v459, 0.0
        %v499 = vmax.f32 %v488, 0.0
        %v500 = vmax.f32 %v462, 0.0
        %v501 = vmax.f32 %v491, 0.0
        %v502 = vmax.f32 %v465, 0.0
        %v503 = vmax.f32 %v494, 0.0
        %v504 = vld [vmem:[%s4] sm:$0x1]
        %vm505 = vcmask 261120
        %v507 = vsel %vm505, %v504, 0
        %509 = vmatpush.msra.mxu0 0.0
        %510 = vmatpush.msra.mxu0 0.0
        %511 = vmatpush.msra.mxu0 0.0
        %512 = vmatpush.msra.mxu0 0.0
        %513 = vmatpush.msra.mxu0 0.0
        %514 = vmatpush.msra.mxu0 0.0
        %515 = vmatpush.msra.mxu0 0.0
        %516 = vmatpush.msra.mxu0 0.0
        %517 = vmatpush.msra.mxu0 0.0
        %518 = vmatpush.msra.mxu0 0.0
        %519 = vmatpush.msra.mxu0 0.0
        %520 = vmatpush.msra.mxu0 0.0
        %521 = vmatpush.msra.mxu0 %v502
        %522 = vmatpush.msra.mxu0 %v500
        %523 = vmatpush.msra.mxu0 %v498
        %524 = vmatpush.msra.mxu0 %v496
        %525 = vmatmul.f32.gmra.mxu0 %v507
        %v526 = vpop.f32.mrf.mxu0
        %v527 = vadd.f32 0.0, %v526
        %528 = vdwg.mxu0
        %529 = vmatpush.msra.mxu0 0.0
        %530 = vmatpush.msra.mxu0 0.0
        %531 = vmatpush.msra.mxu0 0.0
        %532 = vmatpush.msra.mxu0 0.0
        %533 = vmatpush.msra.mxu0 0.0
        %534 = vmatpush.msra.mxu0 0.0
        %535 = vmatpush.msra.mxu0 0.0
        %536 = vmatpush.msra.mxu0 0.0
        %537 = vmatpush.msra.mxu0 0.0
        %538 = vmatpush.msra.mxu0 0.0
        %539 = vmatpush.msra.mxu0 0.0
        %540 = vmatpush.msra.mxu0 0.0
        %541 = vmatpush.msra.mxu0 %v503
        %542 = vmatpush.msra.mxu0 %v501
        %543 = vmatpush.msra.mxu0 %v499
        %544 = vmatpush.msra.mxu0 %v497
        %545 = vmatmul.f32.gmra.mxu0 %v507
        %v546 = vpop.f32.mrf.mxu0
        %v547 = vadd.f32 0.0, %v546
        %548 = vdwg.mxu0
        %v549 = vld [vmem:[%s367] sm:$0xff]
        %v550 = vld [vmem:[%s367 + $0x8] sm:$0xff]
        %551 = vmatpush.msra.mxu0 0.0
        %552 = vmatpush.msra.mxu0 0.0
        %553 = vmatpush.msra.mxu0 0.0
        %554 = vmatpush.msra.mxu0 0.0
        %555 = vmatpush.msra.mxu0 0.0
        %556 = vmatpush.msra.mxu0 0.0
        %557 = vmatpush.msra.mxu0 0.0
        %558 = vmatpush.msra.mxu0 0.0
        %559 = vmatpush.msra.mxu0 0.0
        %560 = vmatpush.msra.mxu0 0.0
        %561 = vmatpush.msra.mxu0 0.0
        %562 = vmatpush.msra.mxu0 0.0
        %563 = vmatpush.msra.mxu0 0.0
        %564 = vmatpush.msra.mxu0 0.0
        %565 = vmatpush.msra.mxu0 %v550
        %566 = vmatpush.msra.mxu0 %v549
        %567 = vmatmul.f32.gmra.mxu0 %v427
        %v568 = vpop.f32.mrf.mxu0
        %v569 = vadd.f32 0.0, %v568
        %570 = vmatmul.f32.gmra.mxu0 %v430
        %v571 = vpop.f32.mrf.mxu0
        %v572 = vadd.f32 0.0, %v571
        %573 = vmatmul.f32.gmra.mxu0 %v433
        %v574 = vpop.f32.mrf.mxu0
        %v575 = vadd.f32 0.0, %v574
        %576 = vmatmul.f32.gmra.mxu0 %v436
        %v577 = vpop.f32.mrf.mxu0
        %v578 = vadd.f32 0.0, %v577
        %579 = vdwg.mxu0
        %v580 = vmax.f32 %v569, 0.0
        %v581 = vmax.f32 %v572, 0.0
        %v582 = vmax.f32 %v575, 0.0
        %v583 = vmax.f32 %v578, 0.0
        %v584 = vld [vmem:[%s3] sm:$0x1]
        %v586 = vsel %vm505, %v584, 0
        %588 = vmatpush.msra.mxu0 0.0
        %589 = vmatpush.msra.mxu0 0.0
        %590 = vmatpush.msra.mxu0 0.0
        %591 = vmatpush.msra.mxu0 0.0
        %592 = vmatpush.msra.mxu0 0.0
        %593 = vmatpush.msra.mxu0 0.0
        %594 = vmatpush.msra.mxu0 0.0
        %595 = vmatpush.msra.mxu0 0.0
        %596 = vmatpush.msra.mxu0 0.0
        %597 = vmatpush.msra.mxu0 0.0
        %598 = vmatpush.msra.mxu0 0.0
        %599 = vmatpush.msra.mxu0 0.0
        %600 = vmatpush.msra.mxu0 %v583
        %601 = vmatpush.msra.mxu0 %v582
        %602 = vmatpush.msra.mxu0 %v581
        %603 = vmatpush.msra.mxu0 %v580
        %604 = vmatmul.f32.gmra.mxu0 %v586
        %v605 = vpop.f32.mrf.mxu0
        %v606 = vadd.f32 0.0, %v605
        %607 = vdwg.mxu0
        %v608 = vpack.c.bf16 %v498, %v496
        %v609 = vpack.c.bf16 %v499, %v497
        %v610 = vpack.c.bf16 %v502, %v500
        %v611 = vpack.c.bf16 %v503, %v501
        %v612 = vpack.c.bf16 %v527, %v527
        %v613 = vpack.c.bf16 %v547, %v547
        %v614 = vld [vmem:[%s374] sm:$0xff]
        %v615 = vld [vmem:[%s374 + $0x8] sm:$0x1]
        %v616 = vlaneseq
        %v617 = vshrl.u32 %v616, 7
        %v618 = vadd.s32 %v617, 8
        %v619 = vadd.s32 %v617, 16
        %v620 = vadd.s32 %v617, 24
        %v621 = vadd.s32 %v617, 32
        %v622 = vadd.s32 %v617, 40
        %v623 = vadd.s32 %v617, 48
        %v624 = vadd.s32 %v617, 56
        %v625 = vadd.s32 %v617, 64
        %v626 = vadd.s32 %v617, 72
        %v627 = vadd.s32 %v617, 80
        %v628 = vadd.s32 %v617, 88
        %v629 = vadd.s32 %v617, 96
        %v630 = vadd.s32 %v617, 104
        %v631 = vadd.s32 %v617, 112
        %v632 = vadd.s32 %v617, 120
        %v633 = vadd.s32 %v617, 128
        %v634 = vadd.s32 %v617, 136
        %v635 = vadd.s32 %v617, 144
        %v636 = vadd.s32 %v617, 152
        %v637 = vadd.s32 %v617, 160
        %v638 = vadd.s32 %v617, 168
        %v639 = vadd.s32 %v617, 176
        %v640 = vadd.s32 %v617, 184
        %v641 = vadd.s32 %v617, 192
        %v642 = vadd.s32 %v617, 200
        %v643 = vadd.s32 %v617, 208
        %v644 = vadd.s32 %v617, 216
        %v645 = vadd.s32 %v617, 224
        %v646 = vadd.s32 %v617, 232
        %v647 = vadd.s32 %v617, 240
        %v648 = vadd.s32 %v617, 248
        %v649 = vperm.slane %v614, 0
        %vm650 = vcmp.eq.s32.totalorder %v617, %v649
        %vm651 = vcmp.eq.s32.totalorder %v618, %v649
        %vm652 = vcmp.eq.s32.totalorder %v619, %v649
        %vm653 = vcmp.eq.s32.totalorder %v620, %v649
        %vm654 = vcmp.eq.s32.totalorder %v621, %v649
        %vm655 = vcmp.eq.s32.totalorder %v622, %v649
        %vm656 = vcmp.eq.s32.totalorder %v623, %v649
        %vm657 = vcmp.eq.s32.totalorder %v624, %v649
        %vm658 = vcmp.eq.s32.totalorder %v625, %v649
        %vm659 = vcmp.eq.s32.totalorder %v626, %v649
        %vm660 = vcmp.eq.s32.totalorder %v627, %v649
        %vm661 = vcmp.eq.s32.totalorder %v628, %v649
        %vm662 = vcmp.eq.s32.totalorder %v629, %v649
        %vm663 = vcmp.eq.s32.totalorder %v630, %v649
        %vm664 = vcmp.eq.s32.totalorder %v631, %v649
        %vm665 = vcmp.eq.s32.totalorder %v632, %v649
        %vm666 = vcmp.eq.s32.totalorder %v633, %v649
        %vm667 = vcmp.eq.s32.totalorder %v634, %v649
        %vm668 = vcmp.eq.s32.totalorder %v635, %v649
        %vm669 = vcmp.eq.s32.totalorder %v636, %v649
        %vm670 = vcmp.eq.s32.totalorder %v637, %v649
        %vm671 = vcmp.eq.s32.totalorder %v638, %v649
        %vm672 = vcmp.eq.s32.totalorder %v639, %v649
        %vm673 = vcmp.eq.s32.totalorder %v640, %v649
        %vm674 = vcmp.eq.s32.totalorder %v641, %v649
        %vm675 = vcmp.eq.s32.totalorder %v642, %v649
        %vm676 = vcmp.eq.s32.totalorder %v643, %v649
        %vm677 = vcmp.eq.s32.totalorder %v644, %v649
        %vm678 = vcmp.eq.s32.totalorder %v645, %v649
        %vm679 = vcmp.eq.s32.totalorder %v646, %v649
        %vm680 = vcmp.eq.s32.totalorder %v647, %v649
        %vm681 = vcmp.eq.s32.totalorder %v648, %v649
        %v682 = vsel %vm650, 1.0, 0.0
        %v683 = vsel %vm651, 1.0, 0.0
        %v684 = vsel %vm652, 1.0, 0.0
        %v685 = vsel %vm653, 1.0, 0.0
        %v686 = vsel %vm654, 1.0, 0.0
        %v687 = vsel %vm655, 1.0, 0.0
        %v688 = vsel %vm656, 1.0, 0.0
        %v689 = vsel %vm657, 1.0, 0.0
        %v690 = vsel %vm658, 1.0, 0.0
        %v691 = vsel %vm659, 1.0, 0.0
        %v692 = vsel %vm660, 1.0, 0.0
        %v693 = vsel %vm661, 1.0, 0.0
        %v694 = vsel %vm662, 1.0, 0.0
        %v695 = vsel %vm663, 1.0, 0.0
        %v696 = vsel %vm664, 1.0, 0.0
        %v697 = vsel %vm665, 1.0, 0.0
        %v698 = vsel %vm666, 1.0, 0.0
        %v699 = vsel %vm667, 1.0, 0.0
        %v700 = vsel %vm668, 1.0, 0.0
        %v701 = vsel %vm669, 1.0, 0.0
        %v702 = vsel %vm670, 1.0, 0.0
        %v703 = vsel %vm671, 1.0, 0.0
        %v704 = vsel %vm672, 1.0, 0.0
        %v705 = vsel %vm673, 1.0, 0.0
        %v706 = vsel %vm674, 1.0, 0.0
        %v707 = vsel %vm675, 1.0, 0.0
        %v708 = vsel %vm676, 1.0, 0.0
        %v709 = vsel %vm677, 1.0, 0.0
        %v710 = vsel %vm678, 1.0, 0.0
        %v711 = vsel %vm679, 1.0, 0.0
        %v712 = vsel %vm680, 1.0, 0.0
        %v713 = vsel %vm681, 1.0, 0.0
        %v714 = vpack.c.bf16 %v683, %v682
        %v715 = vpack.c.bf16 %v685, %v684
        %v716 = vpack.c.bf16 %v687, %v686
        %v717 = vpack.c.bf16 %v689, %v688
        %v718 = vpack.c.bf16 %v691, %v690
        %v719 = vpack.c.bf16 %v693, %v692
        %v720 = vpack.c.bf16 %v695, %v694
        %v721 = vpack.c.bf16 %v697, %v696
        %v722 = vpack.c.bf16 %v699, %v698
        %v723 = vpack.c.bf16 %v701, %v700
        %v724 = vpack.c.bf16 %v703, %v702
        %v725 = vpack.c.bf16 %v705, %v704
        %v726 = vpack.c.bf16 %v707, %v706
        %v727 = vpack.c.bf16 %v709, %v708
        %v728 = vpack.c.bf16 %v711, %v710
        %v729 = vpack.c.bf16 %v713, %v712
        %730 = vmatpush.bf16.msra.mxu0 %v721
        %731 = vmatpush.bf16.msra.mxu0 %v720
        %732 = vmatpush.bf16.msra.mxu0 %v719
        %733 = vmatpush.bf16.msra.mxu0 %v718
        %734 = vmatpush.bf16.msra.mxu0 %v717
        %735 = vmatpush.bf16.msra.mxu0 %v716
        %736 = vmatpush.bf16.msra.mxu0 %v715
        %737 = vmatpush.bf16.msra.mxu0 %v714
        %738 = vmatmul.bf16.gmra.mxu0 %v608
        %v739 = vpop.f32.mrf.mxu0
        %v740 = vadd.f32 0.0, %v739
        %v741 = vpop.f32.mrf.mxu0
        %v742 = vadd.f32 0.0, %v741
        %743 = vmatmul.bf16.gmra.mxu0 %v610
        %v744 = vpop.f32.mrf.mxu0
        %v745 = vadd.f32 0.0, %v744
        %v746 = vpop.f32.mrf.mxu0
        %v747 = vadd.f32 0.0, %v746
        %748 = vdwg.mxu0
        %749 = vmatpush.bf16.msra.mxu0 %v729
        %750 = vmatpush.bf16.msra.mxu0 %v728
        %751 = vmatpush.bf16.msra.mxu0 %v727
        %752 = vmatpush.bf16.msra.mxu0 %v726
        %753 = vmatpush.bf16.msra.mxu0 %v725
        %754 = vmatpush.bf16.msra.mxu0 %v724
        %755 = vmatpush.bf16.msra.mxu0 %v723
        %756 = vmatpush.bf16.msra.mxu0 %v722
        %757 = vmatmul.bf16.gmra.mxu0 %v609
        %v758 = vpop.f32.mrf.mxu0
        %v759 = vadd.f32 %v740, %v758
        %v760 = vpop.f32.mrf.mxu0
        %v761 = vadd.f32 %v742, %v760
        %762 = vmatmul.bf16.gmra.mxu0 %v611
        %v763 = vpop.f32.mrf.mxu0
        %v764 = vadd.f32 %v745, %v763
        %v765 = vpop.f32.mrf.mxu0
        %v766 = vadd.f32 %v747, %v765
        %767 = vdwg.mxu0
        %768 = vmatpush.bf16.msra.mxu0 %v721
        %769 = vmatpush.bf16.msra.mxu0 %v720
        %770 = vmatpush.bf16.msra.mxu0 %v719
        %771 = vmatpush.bf16.msra.mxu0 %v718
        %772 = vmatpush.bf16.msra.mxu0 %v717
        %773 = vmatpush.bf16.msra.mxu0 %v716
        %774 = vmatpush.bf16.msra.mxu0 %v715
        %775 = vmatpush.bf16.msra.mxu0 %v714
        %776 = vmatmul.bf16.gmra.mxu0 %v612
        %v777 = vpop.f32.mrf.mxu0
        %v778 = vadd.f32 0.0, %v777
        %v779 = vpop.f32.mrf.mxu0
        %780 = vdwg.mxu0
        %781 = vmatpush.bf16.msra.mxu0 %v729
        %782 = vmatpush.bf16.msra.mxu0 %v728
        %783 = vmatpush.bf16.msra.mxu0 %v727
        %784 = vmatpush.bf16.msra.mxu0 %v726
        %785 = vmatpush.bf16.msra.mxu0 %v725
        %786 = vmatpush.bf16.msra.mxu0 %v724
        %787 = vmatpush.bf16.msra.mxu0 %v723
        %788 = vmatpush.bf16.msra.mxu0 %v722
        %789 = vmatmul.bf16.gmra.mxu0 %v613
        %v790 = vpop.f32.mrf.mxu0
        %v791 = vadd.f32 %v778, %v790
        %v792 = vpop.f32.mrf.mxu0
        %793 = vdwg.mxu0
        %v794 = vpack.c.bf16 %v759, %v759
        %v795 = vpack.c.bf16 %v761, %v761
        %v796 = vpack.c.bf16 %v764, %v764
        %v797 = vpack.c.bf16 %v766, %v766
        %798 = vst [vmem:[#allocation2] sm:$0xf] %v794
        %799 = vst [vmem:[#allocation2 + $0x4] sm:$0xf] %v795
        %800 = vst [vmem:[#allocation2 + $0x8] sm:$0xf] %v796
        %801 = vst [vmem:[#allocation2 + $0xc] sm:$0xf] %v797
        %802 = vst [vmem:[#allocation3] sm:$0x1] %v791
        %v803 = vperm.slane %v614, 1
        %vm804 = vcmp.eq.s32.totalorder %v617, %v803
        %vm805 = vcmp.eq.s32.totalorder %v618, %v803
        %vm806 = vcmp.eq.s32.totalorder %v619, %v803
        %vm807 = vcmp.eq.s32.totalorder %v620, %v803
        %vm808 = vcmp.eq.s32.totalorder %v621, %v803
        %vm809 = vcmp.eq.s32.totalorder %v622, %v803
        %vm810 = vcmp.eq.s32.totalorder %v623, %v803
        %vm811 = vcmp.eq.s32.totalorder %v624, %v803
        %vm812 = vcmp.eq.s32.totalorder %v625, %v803
        %vm813 = vcmp.eq.s32.totalorder %v626, %v803
        %vm814 = vcmp.eq.s32.totalorder %v627, %v803
        %vm815 = vcmp.eq.s32.totalorder %v628, %v803
        %vm816 = vcmp.eq.s32.totalorder %v629, %v803
        %vm817 = vcmp.eq.s32.totalorder %v630, %v803
        %vm818 = vcmp.eq.s32.totalorder %v631, %v803
        %vm819 = vcmp.eq.s32.totalorder %v632, %v803
        %vm820 = vcmp.eq.s32.totalorder %v633, %v803
        %vm821 = vcmp.eq.s32.totalorder %v634, %v803
        %vm822 = vcmp.eq.s32.totalorder %v635, %v803
        %vm823 = vcmp.eq.s32.totalorder %v636, %v803
        %vm824 = vcmp.eq.s32.totalorder %v637, %v803
        %vm825 = vcmp.eq.s32.totalorder %v638, %v803
        %vm826 = vcmp.eq.s32.totalorder %v639, %v803
        %vm827 = vcmp.eq.s32.totalorder %v640, %v803
        %vm828 = vcmp.eq.s32.totalorder %v641, %v803
        %vm829 = vcmp.eq.s32.totalorder %v642, %v803
        %vm830 = vcmp.eq.s32.totalorder %v643, %v803
        %vm831 = vcmp.eq.s32.totalorder %v644, %v803
        %vm832 = vcmp.eq.s32.totalorder %v645, %v803
        %vm833 = vcmp.eq.s32.totalorder %v646, %v803
        %vm834 = vcmp.eq.s32.totalorder %v647, %v803
        %vm835 = vcmp.eq.s32.totalorder %v648, %v803
        %v836 = vsel %vm804, 1.0, 0.0
        %v837 = vsel %vm805, 1.0, 0.0
        %v838 = vsel %vm806, 1.0, 0.0
        %v839 = vsel %vm807, 1.0, 0.0
        %v840 = vsel %vm808, 1.0, 0.0
        %v841 = vsel %vm809, 1.0, 0.0
        %v842 = vsel %vm810, 1.0, 0.0
        %v843 = vsel %vm811, 1.0, 0.0
        %v844 = vsel %vm812, 1.0, 0.0
        %v845 = vsel %vm813, 1.0, 0.0
        %v846 = vsel %vm814, 1.0, 0.0
        %v847 = vsel %vm815, 1.0, 0.0
        %v848 = vsel %vm816, 1.0, 0.0
        %v849 = vsel %vm817, 1.0, 0.0
        %v850 = vsel %vm818, 1.0, 0.0
        %v851 = vsel %vm819, 1.0, 0.0
        %v852 = vsel %vm820, 1.0, 0.0
        %v853 = vsel %vm821, 1.0, 0.0
        %v854 = vsel %vm822, 1.0, 0.0
        %v855 = vsel %vm823, 1.0, 0.0
        %v856 = vsel %vm824, 1.0, 0.0
        %v857 = vsel %vm825, 1.0, 0.0
        %v858 = vsel %vm826, 1.0, 0.0
        %v859 = vsel %vm827, 1.0, 0.0
        %v860 = vsel %vm828, 1.0, 0.0
        %v861 = vsel %vm829, 1.0, 0.0
        %v862 = vsel %vm830, 1.0, 0.0
        %v863 = vsel %vm831, 1.0, 0.0
        %v864 = vsel %vm832, 1.0, 0.0
        %v865 = vsel %vm833, 1.0, 0.0
        %v866 = vsel %vm834, 1.0, 0.0
        %v867 = vsel %vm835, 1.0, 0.0
        %v868 = vpack.c.bf16 %v837, %v836
        %v869 = vpack.c.bf16 %v839, %v838
        %v870 = vpack.c.bf16 %v841, %v840
        %v871 = vpack.c.bf16 %v843, %v842
        %v872 = vpack.c.bf16 %v845, %v844
        %v873 = vpack.c.bf16 %v847, %v846
        %v874 = vpack.c.bf16 %v849, %v848
        %v875 = vpack.c.bf16 %v851, %v850
        %v876 = vpack.c.bf16 %v853, %v852
        %v877 = vpack.c.bf16 %v855, %v854
        %v878 = vpack.c.bf16 %v857, %v856
        %v879 = vpack.c.bf16 %v859, %v858
        %v880 = vpack.c.bf16 %v861, %v860
        %v881 = vpack.c.bf16 %v863, %v862
        %v882 = vpack.c.bf16 %v865, %v864
        %v883 = vpack.c.bf16 %v867, %v866
        %884 = vmatpush.bf16.msra.mxu0 %v875
        %885 = vmatpush.bf16.msra.mxu0 %v874
        %886 = vmatpush.bf16.msra.mxu0 %v873
        %887 = vmatpush.bf16.msra.mxu0 %v872
        %888 = vmatpush.bf16.msra.mxu0 %v871
        %889 = vmatpush.bf16.msra.mxu0 %v870
        %890 = vmatpush.bf16.msra.mxu0 %v869
        %891 = vmatpush.bf16.msra.mxu0 %v868
        %892 = vmatmul.bf16.gmra.mxu0 %v608
        %v893 = vpop.f32.mrf.mxu0
        %v894 = vadd.f32 0.0, %v893
        %v895 = vpop.f32.mrf.mxu0
        %v896 = vadd.f32 0.0, %v895
        %897 = vmatmul.bf16.gmra.mxu0 %v610
        %v898 = vpop.f32.mrf.mxu0
        %v899 = vadd.f32 0.0, %v898
        %v900 = vpop.f32.mrf.mxu0
        %v901 = vadd.f32 0.0, %v900
        %902 = vdwg.mxu0
        %903 = vmatpush.bf16.msra.mxu0 %v883
        %904 = vmatpush.bf16.msra.mxu0 %v882
        %905 = vmatpush.bf16.msra.mxu0 %v881
        %906 = vmatpush.bf16.msra.mxu0 %v880
        %907 = vmatpush.bf16.msra.mxu0 %v879
        %908 = vmatpush.bf16.msra.mxu0 %v878
        %909 = vmatpush.bf16.msra.mxu0 %v877
        %910 = vmatpush.bf16.msra.mxu0 %v876
        %911 = vmatmul.bf16.gmra.mxu0 %v609
        %v912 = vpop.f32.mrf.mxu0
        %v913 = vadd.f32 %v894, %v912
        %v914 = vpop.f32.mrf.mxu0
        %v915 = vadd.f32 %v896, %v914
        %916 = vmatmul.bf16.gmra.mxu0 %v611
        %v917 = vpop.f32.mrf.mxu0
        %v918 = vadd.f32 %v899, %v917
        %v919 = vpop.f32.mrf.mxu0
        %v920 = vadd.f32 %v901, %v919
        %921 = vdwg.mxu0
        %922 = vmatpush.bf16.msra.mxu0 %v875
        %923 = vmatpush.bf16.msra.mxu0 %v874
        %924 = vmatpush.bf16.msra.mxu0 %v873
        %925 = vmatpush.bf16.msra.mxu0 %v872
        %926 = vmatpush.bf16.msra.mxu0 %v871
        %927 = vmatpush.bf16.msra.mxu0 %v870
        %928 = vmatpush.bf16.msra.mxu0 %v869
        %929 = vmatpush.bf16.msra.mxu0 %v868
        %930 = vmatmul.bf16.gmra.mxu0 %v612
        %v931 = vpop.f32.mrf.mxu0
        %v932 = vadd.f32 0.0, %v931
        %v933 = vpop.f32.mrf.mxu0
        %934 = vdwg.mxu0
        %935 = vmatpush.bf16.msra.mxu0 %v883
        %936 = vmatpush.bf16.msra.mxu0 %v882
        %937 = vmatpush.bf16.msra.mxu0 %v881
        %938 = vmatpush.bf16.msra.mxu0 %v880
        %939 = vmatpush.bf16.msra.mxu0 %v879
        %940 = vmatpush.bf16.msra.mxu0 %v878
        %941 = vmatpush.bf16.msra.mxu0 %v877
        %942 = vmatpush.bf16.msra.mxu0 %v876
        %943 = vmatmul.bf16.gmra.mxu0 %v613
        %v944 = vpop.f32.mrf.mxu0
        %v945 = vadd.f32 %v932, %v944
        %v946 = vpop.f32.mrf.mxu0
        %947 = vdwg.mxu0
        %v948 = vpack.c.bf16 %v913, %v913
        %v949 = vpack.c.bf16 %v915, %v915
        %v950 = vpack.c.bf16 %v918, %v918
        %v951 = vpack.c.bf16 %v920, %v920
        %s952 = scalar_lea.vmem [#allocation2], 16
        %953 = vst [vmem:[%s952] sm:$0xf] %v948
        %954 = vst [vmem:[%s952 + $0x4] sm:$0xf] %v949
        %955 = vst [vmem:[%s952 + $0x8] sm:$0xf] %v950
        %956 = vst [vmem:[%s952 + $0xc] sm:$0xf] %v951
        %957 = vst [vmem:[#allocation3 + $0x1] sm:$0x1] %v945
        %v958 = vperm.slane %v614, 2
        %vm959 = vcmp.eq.s32.totalorder %v617, %v958
        %vm960 = vcmp.eq.s32.totalorder %v618, %v958
        %vm961 = vcmp.eq.s32.totalorder %v619, %v958
        %vm962 = vcmp.eq.s32.totalorder %v620, %v958
        %vm963 = vcmp.eq.s32.totalorder %v621, %v958
        %vm964 = vcmp.eq.s32.totalorder %v622, %v958
        %vm965 = vcmp.eq.s32.totalorder %v623, %v958
        %vm966 = vcmp.eq.s32.totalorder %v624, %v958
        %vm967 = vcmp.eq.s32.totalorder %v625, %v958
        %vm968 = vcmp.eq.s32.totalorder %v626, %v958
        %vm969 = vcmp.eq.s32.totalorder %v627, %v958
        %vm970 = vcmp.eq.s32.totalorder %v628, %v958
        %vm971 = vcmp.eq.s32.totalorder %v629, %v958
        %vm972 = vcmp.eq.s32.totalorder %v630, %v958
        %vm973 = vcmp.eq.s32.totalorder %v631, %v958
        %vm974 = vcmp.eq.s32.totalorder %v632, %v958
        %vm975 = vcmp.eq.s32.totalorder %v633, %v958
        %vm976 = vcmp.eq.s32.totalorder %v634, %v958
        %vm977 = vcmp.eq.s32.totalorder %v635, %v958
        %vm978 = vcmp.eq.s32.totalorder %v636, %v958
        %vm979 = vcmp.eq.s32.totalorder %v637, %v958
        %vm980 = vcmp.eq.s32.totalorder %v638, %v958
        %vm981 = vcmp.eq.s32.totalorder %v639, %v958
        %vm982 = vcmp.eq.s32.totalorder %v640, %v958
        %vm983 = vcmp.eq.s32.totalorder %v641, %v958
        %vm984 = vcmp.eq.s32.totalorder %v642, %v958
        %vm985 = vcmp.eq.s32.totalorder %v643, %v958
        %vm986 = vcmp.eq.s32.totalorder %v644, %v958
        %vm987 = vcmp.eq.s32.totalorder %v645, %v958
        %vm988 = vcmp.eq.s32.totalorder %v646, %v958
        %vm989 = vcmp.eq.s32.totalorder %v647, %v958
        %vm990 = vcmp.eq.s32.totalorder %v648, %v958
        %v991 = vsel %vm959, 1.0, 0.0
        %v992 = vsel %vm960, 1.0, 0.0
        %v993 = vsel %vm961, 1.0, 0.0
        %v994 = vsel %vm962, 1.0, 0.0
        %v995 = vsel %vm963, 1.0, 0.0
        %v996 = vsel %vm964, 1.0, 0.0
        %v997 = vsel %vm965, 1.0, 0.0
        %v998 = vsel %vm966, 1.0, 0.0
        %v999 = vsel %vm967, 1.0, 0.0
        %v1000 = vsel %vm968, 1.0, 0.0
        %v1001 = vsel %vm969, 1.0, 0.0
        %v1002 = vsel %vm970, 1.0, 0.0
        %v1003 = vsel %vm971, 1.0, 0.0
        %v1004 = vsel %vm972, 1.0, 0.0
        %v1005 = vsel %vm973, 1.0, 0.0
        %v1006 = vsel %vm974, 1.0, 0.0
        %v1007 = vsel %vm975, 1.0, 0.0
        %v1008 = vsel %vm976, 1.0, 0.0
        %v1009 = vsel %vm977, 1.0, 0.0
        %v1010 = vsel %vm978, 1.0, 0.0
        %v1011 = vsel %vm979, 1.0, 0.0
        %v1012 = vsel %vm980, 1.0, 0.0
        %v1013 = vsel %vm981, 1.0, 0.0
        %v1014 = vsel %vm982, 1.0, 0.0
        %v1015 = vsel %vm983, 1.0, 0.0
        %v1016 = vsel %vm984, 1.0, 0.0
        %v1017 = vsel %vm985, 1.0, 0.0
        %v1018 = vsel %vm986, 1.0, 0.0
        %v1019 = vsel %vm987, 1.0, 0.0
        %v1020 = vsel %vm988, 1.0, 0.0
        %v1021 = vsel %vm989, 1.0, 0.0
        %v1022 = vsel %vm990, 1.0, 0.0
        %v1023 = vpack.c.bf16 %v992, %v991
        %v1024 = vpack.c.bf16 %v994, %v993
        %v1025 = vpack.c.bf16 %v996, %v995
        %v1026 = vpack.c.bf16 %v998, %v997
        %v1027 = vpack.c.bf16 %v1000, %v999
        %v1028 = vpack.c.bf16 %v1002, %v1001
        %v1029 = vpack.c.bf16 %v1004, %v1003
        %v1030 = vpack.c.bf16 %v1006, %v1005
        %v1031 = vpack.c.bf16 %v1008, %v1007
        %v1032 = vpack.c.bf16 %v1010, %v1009
        %v1033 = vpack.c.bf16 %v1012, %v1011
        %v1034 = vpack.c.bf16 %v1014, %v1013
        %v1035 = vpack.c.bf16 %v1016, %v1015
        %v1036 = vpack.c.bf16 %v1018, %v1017
        %v1037 = vpack.c.bf16 %v1020, %v1019
        %v1038 = vpack.c.bf16 %v1022, %v1021
        %1039 = vmatpush.bf16.msra.mxu0 %v1030
        %1040 = vmatpush.bf16.msra.mxu0 %v1029
        %1041 = vmatpush.bf16.msra.mxu0 %v1028
        %1042 = vmatpush.bf16.msra.mxu0 %v1027
        %1043 = vmatpush.bf16.msra.mxu0 %v1026
        %1044 = vmatpush.bf16.msra.mxu0 %v1025
        %1045 = vmatpush.bf16.msra.mxu0 %v1024
        %1046 = vmatpush.bf16.msra.mxu0 %v1023
        %1047 = vmatmul.bf16.gmra.mxu0 %v608
        %v1048 = vpop.f32.mrf.mxu0
        %v1049 = vadd.f32 0.0, %v1048
        %v1050 = vpop.f32.mrf.mxu0
        %v1051 = vadd.f32 0.0, %v1050
        %1052 = vmatmul.bf16.gmra.mxu0 %v610
        %v1053 = vpop.f32.mrf.mxu0
        %v1054 = vadd.f32 0.0, %v1053
        %v1055 = vpop.f32.mrf.mxu0
        %v1056 = vadd.f32 0.0, %v1055
        %1057 = vdwg.mxu0
        %1058 = vmatpush.bf16.msra.mxu0 %v1038
        %1059 = vmatpush.bf16.msra.mxu0 %v1037
        %1060 = vmatpush.bf16.msra.mxu0 %v1036
        %1061 = vmatpush.bf16.msra.mxu0 %v1035
        %1062 = vmatpush.bf16.msra.mxu0 %v1034
        %1063 = vmatpush.bf16.msra.mxu0 %v1033
        %1064 = vmatpush.bf16.msra.mxu0 %v1032
        %1065 = vmatpush.bf16.msra.mxu0 %v1031
        %1066 = vmatmul.bf16.gmra.mxu0 %v609
        %v1067 = vpop.f32.mrf.mxu0
        %v1068 = vadd.f32 %v1049, %v1067
        %v1069 = vpop.f32.mrf.mxu0
        %v1070 = vadd.f32 %v1051, %v1069
        %1071 = vmatmul.bf16.gmra.mxu0 %v611
        %v1072 = vpop.f32.mrf.mxu0
        %v1073 = vadd.f32 %v1054, %v1072
        %v1074 = vpop.f32.mrf.mxu0
        %v1075 = vadd.f32 %v1056, %v1074
        %1076 = vdwg.mxu0
        %1077 = vmatpush.bf16.msra.mxu0 %v1030
        %1078 = vmatpush.bf16.msra.mxu0 %v1029
        %1079 = vmatpush.bf16.msra.mxu0 %v1028
        %1080 = vmatpush.bf16.msra.mxu0 %v1027
        %1081 = vmatpush.bf16.msra.mxu0 %v1026
        %1082 = vmatpush.bf16.msra.mxu0 %v1025
        %1083 = vmatpush.bf16.msra.mxu0 %v1024
        %1084 = vmatpush.bf16.msra.mxu0 %v1023
        %1085 = vmatmul.bf16.gmra.mxu0 %v612
        %v1086 = vpop.f32.mrf.mxu0
        %v1087 = vadd.f32 0.0, %v1086
        %v1088 = vpop.f32.mrf.mxu0
        %1089 = vdwg.mxu0
        %1090 = vmatpush.bf16.msra.mxu0 %v1038
        %1091 = vmatpush.bf16.msra.mxu0 %v1037
        %1092 = vmatpush.bf16.msra.mxu0 %v1036
        %1093 = vmatpush.bf16.msra.mxu0 %v1035
        %1094 = vmatpush.bf16.msra.mxu0 %v1034
        %1095 = vmatpush.bf16.msra.mxu0 %v1033
        %1096 = vmatpush.bf16.msra.mxu0 %v1032
        %1097 = vmatpush.bf16.msra.mxu0 %v1031
        %1098 = vmatmul.bf16.gmra.mxu0 %v613
        %v1099 = vpop.f32.mrf.mxu0
        %v1100 = vadd.f32 %v1087, %v1099
        %v1101 = vpop.f32.mrf.mxu0
        %1102 = vdwg.mxu0
        %v1103 = vpack.c.bf16 %v1068, %v1068
        %v1104 = vpack.c.bf16 %v1070, %v1070
        %v1105 = vpack.c.bf16 %v1073, %v1073
        %v1106 = vpack.c.bf16 %v1075, %v1075
        %s1107 = scalar_lea.vmem [#allocation2], 32
        %1108 = vst [vmem:[%s1107] sm:$0xf] %v1103
        %1109 = vst [vmem:[%s1107 + $0x4] sm:$0xf] %v1104
        %1110 = vst [vmem:[%s1107 + $0x8] sm:$0xf] %v1105
        %1111 = vst [vmem:[%s1107 + $0xc] sm:$0xf] %v1106
        %1112 = vst [vmem:[#allocation3 + $0x2] sm:$0x1] %v1100
        %v1113 = vperm.slane %v614, 3
        %vm1114 = vcmp.eq.s32.totalorder %v617, %v1113
        %vm1115 = vcmp.eq.s32.totalorder %v618, %v1113
        %vm1116 = vcmp.eq.s32.totalorder %v619, %v1113
        %vm1117 = vcmp.eq.s32.totalorder %v620, %v1113
        %vm1118 = vcmp.eq.s32.totalorder %v621, %v1113
        %vm1119 = vcmp.eq.s32.totalorder %v622, %v1113
        %vm1120 = vcmp.eq.s32.totalorder %v623, %v1113
        %vm1121 = vcmp.eq.s32.totalorder %v624, %v1113
        %vm1122 = vcmp.eq.s32.totalorder %v625, %v1113
        %vm1123 = vcmp.eq.s32.totalorder %v626, %v1113
        %vm1124 = vcmp.eq.s32.totalorder %v627, %v1113
        %vm1125 = vcmp.eq.s32.totalorder %v628, %v1113
        %vm1126 = vcmp.eq.s32.totalorder %v629, %v1113
        %vm1127 = vcmp.eq.s32.totalorder %v630, %v1113
        %vm1128 = vcmp.eq.s32.totalorder %v631, %v1113
        %vm1129 = vcmp.eq.s32.totalorder %v632, %v1113
        %vm1130 = vcmp.eq.s32.totalorder %v633, %v1113
        %vm1131 = vcmp.eq.s32.totalorder %v634, %v1113
        %vm1132 = vcmp.eq.s32.totalorder %v635, %v1113
        %vm1133 = vcmp.eq.s32.totalorder %v636, %v1113
        %vm1134 = vcmp.eq.s32.totalorder %v637, %v1113
        %vm1135 = vcmp.eq.s32.totalorder %v638, %v1113
        %vm1136 = vcmp.eq.s32.totalorder %v639, %v1113
        %vm1137 = vcmp.eq.s32.totalorder %v640, %v1113
        %vm1138 = vcmp.eq.s32.totalorder %v641, %v1113
        %vm1139 = vcmp.eq.s32.totalorder %v642, %v1113
        %vm1140 = vcmp.eq.s32.totalorder %v643, %v1113
        %vm1141 = vcmp.eq.s32.totalorder %v644, %v1113
        %vm1142 = vcmp.eq.s32.totalorder %v645, %v1113
        %vm1143 = vcmp.eq.s32.totalorder %v646, %v1113
        %vm1144 = vcmp.eq.s32.totalorder %v647, %v1113
        %vm1145 = vcmp.eq.s32.totalorder %v648, %v1113
        %v1146 = vsel %vm1114, 1.0, 0.0
        %v1147 = vsel %vm1115, 1.0, 0.0
        %v1148 = vsel %vm1116, 1.0, 0.0
        %v1149 = vsel %vm1117, 1.0, 0.0
        %v1150 = vsel %vm1118, 1.0, 0.0
        %v1151 = vsel %vm1119, 1.0, 0.0
        %v1152 = vsel %vm1120, 1.0, 0.0
        %v1153 = vsel %vm1121, 1.0, 0.0
        %v1154 = vsel %vm1122, 1.0, 0.0
        %v1155 = vsel %vm1123, 1.0, 0.0
        %v1156 = vsel %vm1124, 1.0, 0.0
        %v1157 = vsel %vm1125, 1.0, 0.0
        %v1158 = vsel %vm1126, 1.0, 0.0
        %v1159 = vsel %vm1127, 1.0, 0.0
        %v1160 = vsel %vm1128, 1.0, 0.0
        %v1161 = vsel %vm1129, 1.0, 0.0
        %v1162 = vsel %vm1130, 1.0, 0.0
        %v1163 = vsel %vm1131, 1.0, 0.0
        %v1164 = vsel %vm1132, 1.0, 0.0
        %v1165 = vsel %vm1133, 1.0, 0.0
        %v1166 = vsel %vm1134, 1.0, 0.0
        %v1167 = vsel %vm1135, 1.0, 0.0
        %v1168 = vsel %vm1136, 1.0, 0.0
        %v1169 = vsel %vm1137, 1.0, 0.0
        %v1170 = vsel %vm1138, 1.0, 0.0
        %v1171 = vsel %vm1139, 1.0, 0.0
        %v1172 = vsel %vm1140, 1.0, 0.0
        %v1173 = vsel %vm1141, 1.0, 0.0
        %v1174 = vsel %vm1142, 1.0, 0.0
        %v1175 = vsel %vm1143, 1.0, 0.0
        %v1176 = vsel %vm1144, 1.0, 0.0
        %v1177 = vsel %vm1145, 1.0, 0.0
        %v1178 = vpack.c.bf16 %v1147, %v1146
        %v1179 = vpack.c.bf16 %v1149, %v1148
        %v1180 = vpack.c.bf16 %v1151, %v1150
        %v1181 = vpack.c.bf16 %v1153, %v1152
        %v1182 = vpack.c.bf16 %v1155, %v1154
        %v1183 = vpack.c.bf16 %v1157, %v1156
        %v1184 = vpack.c.bf16 %v1159, %v1158
        %v1185 = vpack.c.bf16 %v1161, %v1160
        %v1186 = vpack.c.bf16 %v1163, %v1162
        %v1187 = vpack.c.bf16 %v1165, %v1164
        %v1188 = vpack.c.bf16 %v1167, %v1166
        %v1189 = vpack.c.bf16 %v1169, %v1168
        %v1190 = vpack.c.bf16 %v1171, %v1170
        %v1191 = vpack.c.bf16 %v1173, %v1172
        %v1192 = vpack.c.bf16 %v1175, %v1174
        %v1193 = vpack.c.bf16 %v1177, %v1176
        %1194 = vmatpush.bf16.msra.mxu0 %v1185
        %1195 = vmatpush.bf16.msra.mxu0 %v1184
        %1196 = vmatpush.bf16.msra.mxu0 %v1183
        %1197 = vmatpush.bf16.msra.mxu0 %v1182
        %1198 = vmatpush.bf16.msra.mxu0 %v1181
        %1199 = vmatpush.bf16.msra.mxu0 %v1180
        %1200 = vmatpush.bf16.msra.mxu0 %v1179
        %1201 = vmatpush.bf16.msra.mxu0 %v1178
        %1202 = vmatmul.bf16.gmra.mxu0 %v608
        %v1203 = vpop.f32.mrf.mxu0
        %v1204 = vadd.f32 0.0, %v1203
        %v1205 = vpop.f32.mrf.mxu0
        %v1206 = vadd.f32 0.0, %v1205
        %1207 = vmatmul.bf16.gmra.mxu0 %v610
        %v1208 = vpop.f32.mrf.mxu0
        %v1209 = vadd.f32 0.0, %v1208
        %v1210 = vpop.f32.mrf.mxu0
        %v1211 = vadd.f32 0.0, %v1210
        %1212 = vdwg.mxu0
        %1213 = vmatpush.bf16.msra.mxu0 %v1193
        %1214 = vmatpush.bf16.msra.mxu0 %v1192
        %1215 = vmatpush.bf16.msra.mxu0 %v1191
        %1216 = vmatpush.bf16.msra.mxu0 %v1190
        %1217 = vmatpush.bf16.msra.mxu0 %v1189
        %1218 = vmatpush.bf16.msra.mxu0 %v1188
        %1219 = vmatpush.bf16.msra.mxu0 %v1187
        %1220 = vmatpush.bf16.msra.mxu0 %v1186
        %1221 = vmatmul.bf16.gmra.mxu0 %v609
        %v1222 = vpop.f32.mrf.mxu0
        %v1223 = vadd.f32 %v1204, %v1222
        %v1224 = vpop.f32.mrf.mxu0
        %v1225 = vadd.f32 %v1206, %v1224
        %1226 = vmatmul.bf16.gmra.mxu0 %v611
        %v1227 = vpop.f32.mrf.mxu0
        %v1228 = vadd.f32 %v1209, %v1227
        %v1229 = vpop.f32.mrf.mxu0
        %v1230 = vadd.f32 %v1211, %v1229
        %1231 = vdwg.mxu0
        %1232 = vmatpush.bf16.msra.mxu0 %v1185
        %1233 = vmatpush.bf16.msra.mxu0 %v1184
        %1234 = vmatpush.bf16.msra.mxu0 %v1183
        %1235 = vmatpush.bf16.msra.mxu0 %v1182
        %1236 = vmatpush.bf16.msra.mxu0 %v1181
        %1237 = vmatpush.bf16.msra.mxu0 %v1180
        %1238 = vmatpush.bf16.msra.mxu0 %v1179
        %1239 = vmatpush.bf16.msra.mxu0 %v1178
        %1240 = vmatmul.bf16.gmra.mxu0 %v612
        %v1241 = vpop.f32.mrf.mxu0
        %v1242 = vadd.f32 0.0, %v1241
        %v1243 = vpop.f32.mrf.mxu0
        %1244 = vdwg.mxu0
        %1245 = vmatpush.bf16.msra.mxu0 %v1193
        %1246 = vmatpush.bf16.msra.mxu0 %v1192
        %1247 = vmatpush.bf16.msra.mxu0 %v1191
        %1248 = vmatpush.bf16.msra.mxu0 %v1190
        %1249 = vmatpush.bf16.msra.mxu0 %v1189
        %1250 = vmatpush.bf16.msra.mxu0 %v1188
        %1251 = vmatpush.bf16.msra.mxu0 %v1187
        %1252 = vmatpush.bf16.msra.mxu0 %v1186
        %1253 = vmatmul.bf16.gmra.mxu0 %v613
        %v1254 = vpop.f32.mrf.mxu0
        %v1255 = vadd.f32 %v1242, %v1254
        %v1256 = vpop.f32.mrf.mxu0
        %1257 = vdwg.mxu0
        %v1258 = vpack.c.bf16 %v1223, %v1223
        %v1259 = vpack.c.bf16 %v1225, %v1225
        %v1260 = vpack.c.bf16 %v1228, %v1228
        %v1261 = vpack.c.bf16 %v1230, %v1230
        %s1262 = scalar_lea.vmem [#allocation2], 48
        %1263 = vst [vmem:[%s1262] sm:$0xf] %v1258
        %1264 = vst [vmem:[%s1262 + $0x4] sm:$0xf] %v1259
        %1265 = vst [vmem:[%s1262 + $0x8] sm:$0xf] %v1260
        %1266 = vst [vmem:[%s1262 + $0xc] sm:$0xf] %v1261
        %1267 = vst [vmem:[#allocation3 + $0x3] sm:$0x1] %v1255
        %v1268 = vperm.slane %v614, 4
        %vm1269 = vcmp.eq.s32.totalorder %v617, %v1268
        %vm1270 = vcmp.eq.s32.totalorder %v618, %v1268
        %vm1271 = vcmp.eq.s32.totalorder %v619, %v1268
        %vm1272 = vcmp.eq.s32.totalorder %v620, %v1268
        %vm1273 = vcmp.eq.s32.totalorder %v621, %v1268
        %vm1274 = vcmp.eq.s32.totalorder %v622, %v1268
        %vm1275 = vcmp.eq.s32.totalorder %v623, %v1268
        %vm1276 = vcmp.eq.s32.totalorder %v624, %v1268
        %vm1277 = vcmp.eq.s32.totalorder %v625, %v1268
        %vm1278 = vcmp.eq.s32.totalorder %v626, %v1268
        %vm1279 = vcmp.eq.s32.totalorder %v627, %v1268
        %vm1280 = vcmp.eq.s32.totalorder %v628, %v1268
        %vm1281 = vcmp.eq.s32.totalorder %v629, %v1268
        %vm1282 = vcmp.eq.s32.totalorder %v630, %v1268
        %vm1283 = vcmp.eq.s32.totalorder %v631, %v1268
        %vm1284 = vcmp.eq.s32.totalorder %v632, %v1268
        %vm1285 = vcmp.eq.s32.totalorder %v633, %v1268
        %vm1286 = vcmp.eq.s32.totalorder %v634, %v1268
        %vm1287 = vcmp.eq.s32.totalorder %v635, %v1268
        %vm1288 = vcmp.eq.s32.totalorder %v636, %v1268
        %vm1289 = vcmp.eq.s32.totalorder %v637, %v1268
        %vm1290 = vcmp.eq.s32.totalorder %v638, %v1268
        %vm1291 = vcmp.eq.s32.totalorder %v639, %v1268
        %vm1292 = vcmp.eq.s32.totalorder %v640, %v1268
        %vm1293 = vcmp.eq.s32.totalorder %v641, %v1268
        %vm1294 = vcmp.eq.s32.totalorder %v642, %v1268
        %vm1295 = vcmp.eq.s32.totalorder %v643, %v1268
        %vm1296 = vcmp.eq.s32.totalorder %v644, %v1268
        %vm1297 = vcmp.eq.s32.totalorder %v645, %v1268
        %vm1298 = vcmp.eq.s32.totalorder %v646, %v1268
        %vm1299 = vcmp.eq.s32.totalorder %v647, %v1268
        %vm1300 = vcmp.eq.s32.totalorder %v648, %v1268
        %v1301 = vsel %vm1269, 1.0, 0.0
        %v1302 = vsel %vm1270, 1.0, 0.0
        %v1303 = vsel %vm1271, 1.0, 0.0
        %v1304 = vsel %vm1272, 1.0, 0.0
        %v1305 = vsel %vm1273, 1.0, 0.0
        %v1306 = vsel %vm1274, 1.0, 0.0
        %v1307 = vsel %vm1275, 1.0, 0.0
        %v1308 = vsel %vm1276, 1.0, 0.0
        %v1309 = vsel %vm1277, 1.0, 0.0
        %v1310 = vsel %vm1278, 1.0, 0.0
        %v1311 = vsel %vm1279, 1.0, 0.0
        %v1312 = vsel %vm1280, 1.0, 0.0
        %v1313 = vsel %vm1281, 1.0, 0.0
        %v1314 = vsel %vm1282, 1.0, 0.0
        %v1315 = vsel %vm1283, 1.0, 0.0
        %v1316 = vsel %vm1284, 1.0, 0.0
        %v1317 = vsel %vm1285, 1.0, 0.0
        %v1318 = vsel %vm1286, 1.0, 0.0
        %v1319 = vsel %vm1287, 1.0, 0.0
        %v1320 = vsel %vm1288, 1.0, 0.0
        %v1321 = vsel %vm1289, 1.0, 0.0
        %v1322 = vsel %vm1290, 1.0, 0.0
        %v1323 = vsel %vm1291, 1.0, 0.0
        %v1324 = vsel %vm1292, 1.0, 0.0
        %v1325 = vsel %vm1293, 1.0, 0.0
        %v1326 = vsel %vm1294, 1.0, 0.0
        %v1327 = vsel %vm1295, 1.0, 0.0
        %v1328 = vsel %vm1296, 1.0, 0.0
        %v1329 = vsel %vm1297, 1.0, 0.0
        %v1330 = vsel %vm1298, 1.0, 0.0
        %v1331 = vsel %vm1299, 1.0, 0.0
        %v1332 = vsel %vm1300, 1.0, 0.0
        %v1333 = vpack.c.bf16 %v1302, %v1301
        %v1334 = vpack.c.bf16 %v1304, %v1303
        %v1335 = vpack.c.bf16 %v1306, %v1305
        %v1336 = vpack.c.bf16 %v1308, %v1307
        %v1337 = vpack.c.bf16 %v1310, %v1309
        %v1338 = vpack.c.bf16 %v1312, %v1311
        %v1339 = vpack.c.bf16 %v1314, %v1313
        %v1340 = vpack.c.bf16 %v1316, %v1315
        %v1341 = vpack.c.bf16 %v1318, %v1317
        %v1342 = vpack.c.bf16 %v1320, %v1319
        %v1343 = vpack.c.bf16 %v1322, %v1321
        %v1344 = vpack.c.bf16 %v1324, %v1323
        %v1345 = vpack.c.bf16 %v1326, %v1325
        %v1346 = vpack.c.bf16 %v1328, %v1327
        %v1347 = vpack.c.bf16 %v1330, %v1329
        %v1348 = vpack.c.bf16 %v1332, %v1331
        %1349 = vmatpush.bf16.msra.mxu0 %v1340
        %1350 = vmatpush.bf16.msra.mxu0 %v1339
        %1351 = vmatpush.bf16.msra.mxu0 %v1338
        %1352 = vmatpush.bf16.msra.mxu0 %v1337
        %1353 = vmatpush.bf16.msra.mxu0 %v1336
        %1354 = vmatpush.bf16.msra.mxu0 %v1335
        %1355 = vmatpush.bf16.msra.mxu0 %v1334
        %1356 = vmatpush.bf16.msra.mxu0 %v1333
        %1357 = vmatmul.bf16.gmra.mxu0 %v608
        %v1358 = vpop.f32.mrf.mxu0
        %v1359 = vadd.f32 0.0, %v1358
        %v1360 = vpop.f32.mrf.mxu0
        %v1361 = vadd.f32 0.0, %v1360
        %1362 = vmatmul.bf16.gmra.mxu0 %v610
        %v1363 = vpop.f32.mrf.mxu0
        %v1364 = vadd.f32 0.0, %v1363
        %v1365 = vpop.f32.mrf.mxu0
        %v1366 = vadd.f32 0.0, %v1365
        %1367 = vdwg.mxu0
        %1368 = vmatpush.bf16.msra.mxu0 %v1348
        %1369 = vmatpush.bf16.msra.mxu0 %v1347
        %1370 = vmatpush.bf16.msra.mxu0 %v1346
        %1371 = vmatpush.bf16.msra.mxu0 %v1345
        %1372 = vmatpush.bf16.msra.mxu0 %v1344
        %1373 = vmatpush.bf16.msra.mxu0 %v1343
        %1374 = vmatpush.bf16.msra.mxu0 %v1342
        %1375 = vmatpush.bf16.msra.mxu0 %v1341
        %1376 = vmatmul.bf16.gmra.mxu0 %v609
        %v1377 = vpop.f32.mrf.mxu0
        %v1378 = vadd.f32 %v1359, %v1377
        %v1379 = vpop.f32.mrf.mxu0
        %v1380 = vadd.f32 %v1361, %v1379
        %1381 = vmatmul.bf16.gmra.mxu0 %v611
        %v1382 = vpop.f32.mrf.mxu0
        %v1383 = vadd.f32 %v1364, %v1382
        %v1384 = vpop.f32.mrf.mxu0
        %v1385 = vadd.f32 %v1366, %v1384
        %1386 = vdwg.mxu0
        %1387 = vmatpush.bf16.msra.mxu0 %v1340
        %1388 = vmatpush.bf16.msra.mxu0 %v1339
        %1389 = vmatpush.bf16.msra.mxu0 %v1338
        %1390 = vmatpush.bf16.msra.mxu0 %v1337
        %1391 = vmatpush.bf16.msra.mxu0 %v1336
        %1392 = vmatpush.bf16.msra.mxu0 %v1335
        %1393 = vmatpush.bf16.msra.mxu0 %v1334
        %1394 = vmatpush.bf16.msra.mxu0 %v1333
        %1395 = vmatmul.bf16.gmra.mxu0 %v612
        %v1396 = vpop.f32.mrf.mxu0
        %v1397 = vadd.f32 0.0, %v1396
        %v1398 = vpop.f32.mrf.mxu0
        %1399 = vdwg.mxu0
        %1400 = vmatpush.bf16.msra.mxu0 %v1348
        %1401 = vmatpush.bf16.msra.mxu0 %v1347
        %1402 = vmatpush.bf16.msra.mxu0 %v1346
        %1403 = vmatpush.bf16.msra.mxu0 %v1345
        %1404 = vmatpush.bf16.msra.mxu0 %v1344
        %1405 = vmatpush.bf16.msra.mxu0 %v1343
        %1406 = vmatpush.bf16.msra.mxu0 %v1342
        %1407 = vmatpush.bf16.msra.mxu0 %v1341
        %1408 = vmatmul.bf16.gmra.mxu0 %v613
        %v1409 = vpop.f32.mrf.mxu0
        %v1410 = vadd.f32 %v1397, %v1409
        %v1411 = vpop.f32.mrf.mxu0
        %1412 = vdwg.mxu0
        %v1413 = vpack.c.bf16 %v1378, %v1378
        %v1414 = vpack.c.bf16 %v1380, %v1380
        %v1415 = vpack.c.bf16 %v1383, %v1383
        %v1416 = vpack.c.bf16 %v1385, %v1385
        %s1417 = scalar_lea.vmem [#allocation2], 64
        %1418 = vst [vmem:[%s1417] sm:$0xf] %v1413
        %1419 = vst [vmem:[%s1417 + $0x4] sm:$0xf] %v1414
        %1420 = vst [vmem:[%s1417 + $0x8] sm:$0xf] %v1415
        %1421 = vst [vmem:[%s1417 + $0xc] sm:$0xf] %v1416
        %1422 = vst [vmem:[#allocation3 + $0x4] sm:$0x1] %v1410
        %v1423 = vperm.slane %v614, 5
        %vm1424 = vcmp.eq.s32.totalorder %v617, %v1423
        %vm1425 = vcmp.eq.s32.totalorder %v618, %v1423
        %vm1426 = vcmp.eq.s32.totalorder %v619, %v1423
        %vm1427 = vcmp.eq.s32.totalorder %v620, %v1423
        %vm1428 = vcmp.eq.s32.totalorder %v621, %v1423
        %vm1429 = vcmp.eq.s32.totalorder %v622, %v1423
        %vm1430 = vcmp.eq.s32.totalorder %v623, %v1423
        %vm1431 = vcmp.eq.s32.totalorder %v624, %v1423
        %vm1432 = vcmp.eq.s32.totalorder %v625, %v1423
        %vm1433 = vcmp.eq.s32.totalorder %v626, %v1423
        %vm1434 = vcmp.eq.s32.totalorder %v627, %v1423
        %vm1435 = vcmp.eq.s32.totalorder %v628, %v1423
        %vm1436 = vcmp.eq.s32.totalorder %v629, %v1423
        %vm1437 = vcmp.eq.s32.totalorder %v630, %v1423
        %vm1438 = vcmp.eq.s32.totalorder %v631, %v1423
        %vm1439 = vcmp.eq.s32.totalorder %v632, %v1423
        %vm1440 = vcmp.eq.s32.totalorder %v633, %v1423
        %vm1441 = vcmp.eq.s32.totalorder %v634, %v1423
        %vm1442 = vcmp.eq.s32.totalorder %v635, %v1423
        %vm1443 = vcmp.eq.s32.totalorder %v636, %v1423
        %vm1444 = vcmp.eq.s32.totalorder %v637, %v1423
        %vm1445 = vcmp.eq.s32.totalorder %v638, %v1423
        %vm1446 = vcmp.eq.s32.totalorder %v639, %v1423
        %vm1447 = vcmp.eq.s32.totalorder %v640, %v1423
        %vm1448 = vcmp.eq.s32.totalorder %v641, %v1423
        %vm1449 = vcmp.eq.s32.totalorder %v642, %v1423
        %vm1450 = vcmp.eq.s32.totalorder %v643, %v1423
        %vm1451 = vcmp.eq.s32.totalorder %v644, %v1423
        %vm1452 = vcmp.eq.s32.totalorder %v645, %v1423
        %vm1453 = vcmp.eq.s32.totalorder %v646, %v1423
        %vm1454 = vcmp.eq.s32.totalorder %v647, %v1423
        %vm1455 = vcmp.eq.s32.totalorder %v648, %v1423
        %v1456 = vsel %vm1424, 1.0, 0.0
        %v1457 = vsel %vm1425, 1.0, 0.0
        %v1458 = vsel %vm1426, 1.0, 0.0
        %v1459 = vsel %vm1427, 1.0, 0.0
        %v1460 = vsel %vm1428, 1.0, 0.0
        %v1461 = vsel %vm1429, 1.0, 0.0
        %v1462 = vsel %vm1430, 1.0, 0.0
        %v1463 = vsel %vm1431, 1.0, 0.0
        %v1464 = vsel %vm1432, 1.0, 0.0
        %v1465 = vsel %vm1433, 1.0, 0.0
        %v1466 = vsel %vm1434, 1.0, 0.0
        %v1467 = vsel %vm1435, 1.0, 0.0
        %v1468 = vsel %vm1436, 1.0, 0.0
        %v1469 = vsel %vm1437, 1.0, 0.0
        %v1470 = vsel %vm1438, 1.0, 0.0
        %v1471 = vsel %vm1439, 1.0, 0.0
        %v1472 = vsel %vm1440, 1.0, 0.0
        %v1473 = vsel %vm1441, 1.0, 0.0
        %v1474 = vsel %vm1442, 1.0, 0.0
        %v1475 = vsel %vm1443, 1.0, 0.0
        %v1476 = vsel %vm1444, 1.0, 0.0
        %v1477 = vsel %vm1445, 1.0, 0.0
        %v1478 = vsel %vm1446, 1.0, 0.0
        %v1479 = vsel %vm1447, 1.0, 0.0
        %v1480 = vsel %vm1448, 1.0, 0.0
        %v1481 = vsel %vm1449, 1.0, 0.0
        %v1482 = vsel %vm1450, 1.0, 0.0
        %v1483 = vsel %vm1451, 1.0, 0.0
        %v1484 = vsel %vm1452, 1.0, 0.0
        %v1485 = vsel %vm1453, 1.0, 0.0
        %v1486 = vsel %vm1454, 1.0, 0.0
        %v1487 = vsel %vm1455, 1.0, 0.0
        %v1488 = vpack.c.bf16 %v1457, %v1456
        %v1489 = vpack.c.bf16 %v1459, %v1458
        %v1490 = vpack.c.bf16 %v1461, %v1460
        %v1491 = vpack.c.bf16 %v1463, %v1462
        %v1492 = vpack.c.bf16 %v1465, %v1464
        %v1493 = vpack.c.bf16 %v1467, %v1466
        %v1494 = vpack.c.bf16 %v1469, %v1468
        %v1495 = vpack.c.bf16 %v1471, %v1470
        %v1496 = vpack.c.bf16 %v1473, %v1472
        %v1497 = vpack.c.bf16 %v1475, %v1474
        %v1498 = vpack.c.bf16 %v1477, %v1476
        %v1499 = vpack.c.bf16 %v1479, %v1478
        %v1500 = vpack.c.bf16 %v1481, %v1480
        %v1501 = vpack.c.bf16 %v1483, %v1482
        %v1502 = vpack.c.bf16 %v1485, %v1484
        %v1503 = vpack.c.bf16 %v1487, %v1486
        %1504 = vmatpush.bf16.msra.mxu0 %v1495
        %1505 = vmatpush.bf16.msra.mxu0 %v1494
        %1506 = vmatpush.bf16.msra.mxu0 %v1493
        %1507 = vmatpush.bf16.msra.mxu0 %v1492
        %1508 = vmatpush.bf16.msra.mxu0 %v1491
        %1509 = vmatpush.bf16.msra.mxu0 %v1490
        %1510 = vmatpush.bf16.msra.mxu0 %v1489
        %1511 = vmatpush.bf16.msra.mxu0 %v1488
        %1512 = vmatmul.bf16.gmra.mxu0 %v608
        %v1513 = vpop.f32.mrf.mxu0
        %v1514 = vadd.f32 0.0, %v1513
        %v1515 = vpop.f32.mrf.mxu0
        %v1516 = vadd.f32 0.0, %v1515
        %1517 = vmatmul.bf16.gmra.mxu0 %v610
        %v1518 = vpop.f32.mrf.mxu0
        %v1519 = vadd.f32 0.0, %v1518
        %v1520 = vpop.f32.mrf.mxu0
        %v1521 = vadd.f32 0.0, %v1520
        %1522 = vdwg.mxu0
        %1523 = vmatpush.bf16.msra.mxu0 %v1503
        %1524 = vmatpush.bf16.msra.mxu0 %v1502
        %1525 = vmatpush.bf16.msra.mxu0 %v1501
        %1526 = vmatpush.bf16.msra.mxu0 %v1500
        %1527 = vmatpush.bf16.msra.mxu0 %v1499
        %1528 = vmatpush.bf16.msra.mxu0 %v1498
        %1529 = vmatpush.bf16.msra.mxu0 %v1497
        %1530 = vmatpush.bf16.msra.mxu0 %v1496
        %1531 = vmatmul.bf16.gmra.mxu0 %v609
        %v1532 = vpop.f32.mrf.mxu0
        %v1533 = vadd.f32 %v1514, %v1532
        %v1534 = vpop.f32.mrf.mxu0
        %v1535 = vadd.f32 %v1516, %v1534
        %1536 = vmatmul.bf16.gmra.mxu0 %v611
        %v1537 = vpop.f32.mrf.mxu0
        %v1538 = vadd.f32 %v1519, %v1537
        %v1539 = vpop.f32.mrf.mxu0
        %v1540 = vadd.f32 %v1521, %v1539
        %1541 = vdwg.mxu0
        %1542 = vmatpush.bf16.msra.mxu0 %v1495
        %1543 = vmatpush.bf16.msra.mxu0 %v1494
        %1544 = vmatpush.bf16.msra.mxu0 %v1493
        %1545 = vmatpush.bf16.msra.mxu0 %v1492
        %1546 = vmatpush.bf16.msra.mxu0 %v1491
        %1547 = vmatpush.bf16.msra.mxu0 %v1490
        %1548 = vmatpush.bf16.msra.mxu0 %v1489
        %1549 = vmatpush.bf16.msra.mxu0 %v1488
        %1550 = vmatmul.bf16.gmra.mxu0 %v612
        %v1551 = vpop.f32.mrf.mxu0
        %v1552 = vadd.f32 0.0, %v1551
        %v1553 = vpop.f32.mrf.mxu0
        %1554 = vdwg.mxu0
        %1555 = vmatpush.bf16.msra.mxu0 %v1503
        %1556 = vmatpush.bf16.msra.mxu0 %v1502
        %1557 = vmatpush.bf16.msra.mxu0 %v1501
        %1558 = vmatpush.bf16.msra.mxu0 %v1500
        %1559 = vmatpush.bf16.msra.mxu0 %v1499
        %1560 = vmatpush.bf16.msra.mxu0 %v1498
        %1561 = vmatpush.bf16.msra.mxu0 %v1497
        %1562 = vmatpush.bf16.msra.mxu0 %v1496
        %1563 = vmatmul.bf16.gmra.mxu0 %v613
        %v1564 = vpop.f32.mrf.mxu0
        %v1565 = vadd.f32 %v1552, %v1564
        %v1566 = vpop.f32.mrf.mxu0
        %1567 = vdwg.mxu0
        %v1568 = vpack.c.bf16 %v1533, %v1533
        %v1569 = vpack.c.bf16 %v1535, %v1535
        %v1570 = vpack.c.bf16 %v1538, %v1538
        %v1571 = vpack.c.bf16 %v1540, %v1540
        %s1572 = scalar_lea.vmem [#allocation2], 80
        %1573 = vst [vmem:[%s1572] sm:$0xf] %v1568
        %1574 = vst [vmem:[%s1572 + $0x4] sm:$0xf] %v1569
        %1575 = vst [vmem:[%s1572 + $0x8] sm:$0xf] %v1570
        %1576 = vst [vmem:[%s1572 + $0xc] sm:$0xf] %v1571
        %1577 = vst [vmem:[#allocation3 + $0x5] sm:$0x1] %v1565
        %v1578 = vperm.slane %v614, 6
        %vm1579 = vcmp.eq.s32.totalorder %v617, %v1578
        %vm1580 = vcmp.eq.s32.totalorder %v618, %v1578
        %vm1581 = vcmp.eq.s32.totalorder %v619, %v1578
        %vm1582 = vcmp.eq.s32.totalorder %v620, %v1578
        %vm1583 = vcmp.eq.s32.totalorder %v621, %v1578
        %vm1584 = vcmp.eq.s32.totalorder %v622, %v1578
        %vm1585 = vcmp.eq.s32.totalorder %v623, %v1578
        %vm1586 = vcmp.eq.s32.totalorder %v624, %v1578
        %vm1587 = vcmp.eq.s32.totalorder %v625, %v1578
        %vm1588 = vcmp.eq.s32.totalorder %v626, %v1578
        %vm1589 = vcmp.eq.s32.totalorder %v627, %v1578
        %vm1590 = vcmp.eq.s32.totalorder %v628, %v1578
        %vm1591 = vcmp.eq.s32.totalorder %v629, %v1578
        %vm1592 = vcmp.eq.s32.totalorder %v630, %v1578
        %vm1593 = vcmp.eq.s32.totalorder %v631, %v1578
        %vm1594 = vcmp.eq.s32.totalorder %v632, %v1578
        %vm1595 = vcmp.eq.s32.totalorder %v633, %v1578
        %vm1596 = vcmp.eq.s32.totalorder %v634, %v1578
        %vm1597 = vcmp.eq.s32.totalorder %v635, %v1578
        %vm1598 = vcmp.eq.s32.totalorder %v636, %v1578
        %vm1599 = vcmp.eq.s32.totalorder %v637, %v1578
        %vm1600 = vcmp.eq.s32.totalorder %v638, %v1578
        %vm1601 = vcmp.eq.s32.totalorder %v639, %v1578
        %vm1602 = vcmp.eq.s32.totalorder %v640, %v1578
        %vm1603 = vcmp.eq.s32.totalorder %v641, %v1578
        %vm1604 = vcmp.eq.s32.totalorder %v642, %v1578
        %vm1605 = vcmp.eq.s32.totalorder %v643, %v1578
        %vm1606 = vcmp.eq.s32.totalorder %v644, %v1578
        %vm1607 = vcmp.eq.s32.totalorder %v645, %v1578
        %vm1608 = vcmp.eq.s32.totalorder %v646, %v1578
        %vm1609 = vcmp.eq.s32.totalorder %v647, %v1578
        %vm1610 = vcmp.eq.s32.totalorder %v648, %v1578
        %v1611 = vsel %vm1579, 1.0, 0.0
        %v1612 = vsel %vm1580, 1.0, 0.0
        %v1613 = vsel %vm1581, 1.0, 0.0
        %v1614 = vsel %vm1582, 1.0, 0.0
        %v1615 = vsel %vm1583, 1.0, 0.0
        %v1616 = vsel %vm1584, 1.0, 0.0
        %v1617 = vsel %vm1585, 1.0, 0.0
        %v1618 = vsel %vm1586, 1.0, 0.0
        %v1619 = vsel %vm1587, 1.0, 0.0
        %v1620 = vsel %vm1588, 1.0, 0.0
        %v1621 = vsel %vm1589, 1.0, 0.0
        %v1622 = vsel %vm1590, 1.0, 0.0
        %v1623 = vsel %vm1591, 1.0, 0.0
        %v1624 = vsel %vm1592, 1.0, 0.0
        %v1625 = vsel %vm1593, 1.0, 0.0
        %v1626 = vsel %vm1594, 1.0, 0.0
        %v1627 = vsel %vm1595, 1.0, 0.0
        %v1628 = vsel %vm1596, 1.0, 0.0
        %v1629 = vsel %vm1597, 1.0, 0.0
        %v1630 = vsel %vm1598, 1.0, 0.0
        %v1631 = vsel %vm1599, 1.0, 0.0
        %v1632 = vsel %vm1600, 1.0, 0.0
        %v1633 = vsel %vm1601, 1.0, 0.0
        %v1634 = vsel %vm1602, 1.0, 0.0
        %v1635 = vsel %vm1603, 1.0, 0.0
        %v1636 = vsel %vm1604, 1.0, 0.0
        %v1637 = vsel %vm1605, 1.0, 0.0
        %v1638 = vsel %vm1606, 1.0, 0.0
        %v1639 = vsel %vm1607, 1.0, 0.0
        %v1640 = vsel %vm1608, 1.0, 0.0
        %v1641 = vsel %vm1609, 1.0, 0.0
        %v1642 = vsel %vm1610, 1.0, 0.0
        %v1643 = vpack.c.bf16 %v1612, %v1611
        %v1644 = vpack.c.bf16 %v1614, %v1613
        %v1645 = vpack.c.bf16 %v1616, %v1615
        %v1646 = vpack.c.bf16 %v1618, %v1617
        %v1647 = vpack.c.bf16 %v1620, %v1619
        %v1648 = vpack.c.bf16 %v1622, %v1621
        %v1649 = vpack.c.bf16 %v1624, %v1623
        %v1650 = vpack.c.bf16 %v1626, %v1625
        %v1651 = vpack.c.bf16 %v1628, %v1627
        %v1652 = vpack.c.bf16 %v1630, %v1629
        %v1653 = vpack.c.bf16 %v1632, %v1631
        %v1654 = vpack.c.bf16 %v1634, %v1633
        %v1655 = vpack.c.bf16 %v1636, %v1635
        %v1656 = vpack.c.bf16 %v1638, %v1637
        %v1657 = vpack.c.bf16 %v1640, %v1639
        %v1658 = vpack.c.bf16 %v1642, %v1641
        %1659 = vmatpush.bf16.msra.mxu0 %v1650
        %1660 = vmatpush.bf16.msra.mxu0 %v1649
        %1661 = vmatpush.bf16.msra.mxu0 %v1648
        %1662 = vmatpush.bf16.msra.mxu0 %v1647
        %1663 = vmatpush.bf16.msra.mxu0 %v1646
        %1664 = vmatpush.bf16.msra.mxu0 %v1645
        %1665 = vmatpush.bf16.msra.mxu0 %v1644
        %1666 = vmatpush.bf16.msra.mxu0 %v1643
        %1667 = vmatmul.bf16.gmra.mxu0 %v608
        %v1668 = vpop.f32.mrf.mxu0
        %v1669 = vadd.f32 0.0, %v1668
        %v1670 = vpop.f32.mrf.mxu0
        %v1671 = vadd.f32 0.0, %v1670
        %1672 = vmatmul.bf16.gmra.mxu0 %v610
        %v1673 = vpop.f32.mrf.mxu0
        %v1674 = vadd.f32 0.0, %v1673
        %v1675 = vpop.f32.mrf.mxu0
        %v1676 = vadd.f32 0.0, %v1675
        %1677 = vdwg.mxu0
        %1678 = vmatpush.bf16.msra.mxu0 %v1658
        %1679 = vmatpush.bf16.msra.mxu0 %v1657
        %1680 = vmatpush.bf16.msra.mxu0 %v1656
        %1681 = vmatpush.bf16.msra.mxu0 %v1655
        %1682 = vmatpush.bf16.msra.mxu0 %v1654
        %1683 = vmatpush.bf16.msra.mxu0 %v1653
        %1684 = vmatpush.bf16.msra.mxu0 %v1652
        %1685 = vmatpush.bf16.msra.mxu0 %v1651
        %1686 = vmatmul.bf16.gmra.mxu0 %v609
        %v1687 = vpop.f32.mrf.mxu0
        %v1688 = vadd.f32 %v1669, %v1687
        %v1689 = vpop.f32.mrf.mxu0
        %v1690 = vadd.f32 %v1671, %v1689
        %1691 = vmatmul.bf16.gmra.mxu0 %v611
        %v1692 = vpop.f32.mrf.mxu0
        %v1693 = vadd.f32 %v1674, %v1692
        %v1694 = vpop.f32.mrf.mxu0
        %v1695 = vadd.f32 %v1676, %v1694
        %1696 = vdwg.mxu0
        %1697 = vmatpush.bf16.msra.mxu0 %v1650
        %1698 = vmatpush.bf16.msra.mxu0 %v1649
        %1699 = vmatpush.bf16.msra.mxu0 %v1648
        %1700 = vmatpush.bf16.msra.mxu0 %v1647
        %1701 = vmatpush.bf16.msra.mxu0 %v1646
        %1702 = vmatpush.bf16.msra.mxu0 %v1645
        %1703 = vmatpush.bf16.msra.mxu0 %v1644
        %1704 = vmatpush.bf16.msra.mxu0 %v1643
        %1705 = vmatmul.bf16.gmra.mxu0 %v612
        %v1706 = vpop.f32.mrf.mxu0
        %v1707 = vadd.f32 0.0, %v1706
        %v1708 = vpop.f32.mrf.mxu0
        %1709 = vdwg.mxu0
        %1710 = vmatpush.bf16.msra.mxu0 %v1658
        %1711 = vmatpush.bf16.msra.mxu0 %v1657
        %1712 = vmatpush.bf16.msra.mxu0 %v1656
        %1713 = vmatpush.bf16.msra.mxu0 %v1655
        %1714 = vmatpush.bf16.msra.mxu0 %v1654
        %1715 = vmatpush.bf16.msra.mxu0 %v1653
        %1716 = vmatpush.bf16.msra.mxu0 %v1652
        %1717 = vmatpush.bf16.msra.mxu0 %v1651
        %1718 = vmatmul.bf16.gmra.mxu0 %v613
        %v1719 = vpop.f32.mrf.mxu0
        %v1720 = vadd.f32 %v1707, %v1719
        %v1721 = vpop.f32.mrf.mxu0
        %1722 = vdwg.mxu0
        %v1723 = vpack.c.bf16 %v1688, %v1688
        %v1724 = vpack.c.bf16 %v1690, %v1690
        %v1725 = vpack.c.bf16 %v1693, %v1693
        %v1726 = vpack.c.bf16 %v1695, %v1695
        %s1727 = scalar_lea.vmem [#allocation2], 96
        %1728 = vst [vmem:[%s1727] sm:$0xf] %v1723
        %1729 = vst [vmem:[%s1727 + $0x4] sm:$0xf] %v1724
        %1730 = vst [vmem:[%s1727 + $0x8] sm:$0xf] %v1725
        %1731 = vst [vmem:[%s1727 + $0xc] sm:$0xf] %v1726
        %1732 = vst [vmem:[#allocation3 + $0x6] sm:$0x1] %v1720
        %v1733 = vperm.slane %v614, 7
        %vm1734 = vcmp.eq.s32.totalorder %v617, %v1733
        %vm1735 = vcmp.eq.s32.totalorder %v618, %v1733
        %vm1736 = vcmp.eq.s32.totalorder %v619, %v1733
        %vm1737 = vcmp.eq.s32.totalorder %v620, %v1733
        %vm1738 = vcmp.eq.s32.totalorder %v621, %v1733
        %vm1739 = vcmp.eq.s32.totalorder %v622, %v1733
        %vm1740 = vcmp.eq.s32.totalorder %v623, %v1733
        %vm1741 = vcmp.eq.s32.totalorder %v624, %v1733
        %vm1742 = vcmp.eq.s32.totalorder %v625, %v1733
        %vm1743 = vcmp.eq.s32.totalorder %v626, %v1733
        %vm1744 = vcmp.eq.s32.totalorder %v627, %v1733
        %vm1745 = vcmp.eq.s32.totalorder %v628, %v1733
        %vm1746 = vcmp.eq.s32.totalorder %v629, %v1733
        %vm1747 = vcmp.eq.s32.totalorder %v630, %v1733
        %vm1748 = vcmp.eq.s32.totalorder %v631, %v1733
        %vm1749 = vcmp.eq.s32.totalorder %v632, %v1733
        %vm1750 = vcmp.eq.s32.totalorder %v633, %v1733
        %vm1751 = vcmp.eq.s32.totalorder %v634, %v1733
        %vm1752 = vcmp.eq.s32.totalorder %v635, %v1733
        %vm1753 = vcmp.eq.s32.totalorder %v636, %v1733
        %vm1754 = vcmp.eq.s32.totalorder %v637, %v1733
        %vm1755 = vcmp.eq.s32.totalorder %v638, %v1733
        %vm1756 = vcmp.eq.s32.totalorder %v639, %v1733
        %vm1757 = vcmp.eq.s32.totalorder %v640, %v1733
        %vm1758 = vcmp.eq.s32.totalorder %v641, %v1733
        %vm1759 = vcmp.eq.s32.totalorder %v642, %v1733
        %vm1760 = vcmp.eq.s32.totalorder %v643, %v1733
        %vm1761 = vcmp.eq.s32.totalorder %v644, %v1733
        %vm1762 = vcmp.eq.s32.totalorder %v645, %v1733
        %vm1763 = vcmp.eq.s32.totalorder %v646, %v1733
        %vm1764 = vcmp.eq.s32.totalorder %v647, %v1733
        %vm1765 = vcmp.eq.s32.totalorder %v648, %v1733
        %v1766 = vsel %vm1734, 1.0, 0.0
        %v1767 = vsel %vm1735, 1.0, 0.0
        %v1768 = vsel %vm1736, 1.0, 0.0
        %v1769 = vsel %vm1737, 1.0, 0.0
        %v1770 = vsel %vm1738, 1.0, 0.0
        %v1771 = vsel %vm1739, 1.0, 0.0
        %v1772 = vsel %vm1740, 1.0, 0.0
        %v1773 = vsel %vm1741, 1.0, 0.0
        %v1774 = vsel %vm1742, 1.0, 0.0
        %v1775 = vsel %vm1743, 1.0, 0.0
        %v1776 = vsel %vm1744, 1.0, 0.0
        %v1777 = vsel %vm1745, 1.0, 0.0
        %v1778 = vsel %vm1746, 1.0, 0.0
        %v1779 = vsel %vm1747, 1.0, 0.0
        %v1780 = vsel %vm1748, 1.0, 0.0
        %v1781 = vsel %vm1749, 1.0, 0.0
        %v1782 = vsel %vm1750, 1.0, 0.0
        %v1783 = vsel %vm1751, 1.0, 0.0
        %v1784 = vsel %vm1752, 1.0, 0.0
        %v1785 = vsel %vm1753, 1.0, 0.0
        %v1786 = vsel %vm1754, 1.0, 0.0
        %v1787 = vsel %vm1755, 1.0, 0.0
        %v1788 = vsel %vm1756, 1.0, 0.0
        %v1789 = vsel %vm1757, 1.0, 0.0
        %v1790 = vsel %vm1758, 1.0, 0.0
        %v1791 = vsel %vm1759, 1.0, 0.0
        %v1792 = vsel %vm1760, 1.0, 0.0
        %v1793 = vsel %vm1761, 1.0, 0.0
        %v1794 = vsel %vm1762, 1.0, 0.0
        %v1795 = vsel %vm1763, 1.0, 0.0
        %v1796 = vsel %vm1764, 1.0, 0.0
        %v1797 = vsel %vm1765, 1.0, 0.0
        %v1798 = vpack.c.bf16 %v1767, %v1766
        %v1799 = vpack.c.bf16 %v1769, %v1768
        %v1800 = vpack.c.bf16 %v1771, %v1770
        %v1801 = vpack.c.bf16 %v1773, %v1772
        %v1802 = vpack.c.bf16 %v1775, %v1774
        %v1803 = vpack.c.bf16 %v1777, %v1776
        %v1804 = vpack.c.bf16 %v1779, %v1778
        %v1805 = vpack.c.bf16 %v1781, %v1780
        %v1806 = vpack.c.bf16 %v1783, %v1782
        %v1807 = vpack.c.bf16 %v1785, %v1784
        %v1808 = vpack.c.bf16 %v1787, %v1786
        %v1809 = vpack.c.bf16 %v1789, %v1788
        %v1810 = vpack.c.bf16 %v1791, %v1790
        %v1811 = vpack.c.bf16 %v1793, %v1792
        %v1812 = vpack.c.bf16 %v1795, %v1794
        %v1813 = vpack.c.bf16 %v1797, %v1796
        %1814 = vmatpush.bf16.msra.mxu0 %v1805
        %1815 = vmatpush.bf16.msra.mxu0 %v1804
        %1816 = vmatpush.bf16.msra.mxu0 %v1803
        %1817 = vmatpush.bf16.msra.mxu0 %v1802
        %1818 = vmatpush.bf16.msra.mxu0 %v1801
        %1819 = vmatpush.bf16.msra.mxu0 %v1800
        %1820 = vmatpush.bf16.msra.mxu0 %v1799
        %1821 = vmatpush.bf16.msra.mxu0 %v1798
        %1822 = vmatmul.bf16.gmra.mxu0 %v608
        %v1823 = vpop.f32.mrf.mxu0
        %v1824 = vadd.f32 0.0, %v1823
        %v1825 = vpop.f32.mrf.mxu0
        %v1826 = vadd.f32 0.0, %v1825
        %1827 = vmatmul.bf16.gmra.mxu0 %v610
        %v1828 = vpop.f32.mrf.mxu0
        %v1829 = vadd.f32 0.0, %v1828
        %v1830 = vpop.f32.mrf.mxu0
        %v1831 = vadd.f32 0.0, %v1830
        %1832 = vdwg.mxu0
        %1833 = vmatpush.bf16.msra.mxu0 %v1813
        %1834 = vmatpush.bf16.msra.mxu0 %v1812
        %1835 = vmatpush.bf16.msra.mxu0 %v1811
        %1836 = vmatpush.bf16.msra.mxu0 %v1810
        %1837 = vmatpush.bf16.msra.mxu0 %v1809
        %1838 = vmatpush.bf16.msra.mxu0 %v1808
        %1839 = vmatpush.bf16.msra.mxu0 %v1807
        %1840 = vmatpush.bf16.msra.mxu0 %v1806
        %1841 = vmatmul.bf16.gmra.mxu0 %v609
        %v1842 = vpop.f32.mrf.mxu0
        %v1843 = vadd.f32 %v1824, %v1842
        %v1844 = vpop.f32.mrf.mxu0
        %v1845 = vadd.f32 %v1826, %v1844
        %1846 = vmatmul.bf16.gmra.mxu0 %v611
        %v1847 = vpop.f32.mrf.mxu0
        %v1848 = vadd.f32 %v1829, %v1847
        %v1849 = vpop.f32.mrf.mxu0
        %v1850 = vadd.f32 %v1831, %v1849
        %1851 = vdwg.mxu0
        %1852 = vmatpush.bf16.msra.mxu0 %v1805
        %1853 = vmatpush.bf16.msra.mxu0 %v1804
        %1854 = vmatpush.bf16.msra.mxu0 %v1803
        %1855 = vmatpush.bf16.msra.mxu0 %v1802
        %1856 = vmatpush.bf16.msra.mxu0 %v1801
        %1857 = vmatpush.bf16.msra.mxu0 %v1800
        %1858 = vmatpush.bf16.msra.mxu0 %v1799
        %1859 = vmatpush.bf16.msra.mxu0 %v1798
        %1860 = vmatmul.bf16.gmra.mxu0 %v612
        %v1861 = vpop.f32.mrf.mxu0
        %v1862 = vadd.f32 0.0, %v1861
        %v1863 = vpop.f32.mrf.mxu0
        %1864 = vdwg.mxu0
        %1865 = vmatpush.bf16.msra.mxu0 %v1813
        %1866 = vmatpush.bf16.msra.mxu0 %v1812
        %1867 = vmatpush.bf16.msra.mxu0 %v1811
        %1868 = vmatpush.bf16.msra.mxu0 %v1810
        %1869 = vmatpush.bf16.msra.mxu0 %v1809
        %1870 = vmatpush.bf16.msra.mxu0 %v1808
        %1871 = vmatpush.bf16.msra.mxu0 %v1807
        %1872 = vmatpush.bf16.msra.mxu0 %v1806
        %1873 = vmatmul.bf16.gmra.mxu0 %v613
        %v1874 = vpop.f32.mrf.mxu0
        %v1875 = vadd.f32 %v1862, %v1874
        %v1876 = vpop.f32.mrf.mxu0
        %1877 = vdwg.mxu0
        %v1878 = vpack.c.bf16 %v1843, %v1843
        %v1879 = vpack.c.bf16 %v1845, %v1845
        %v1880 = vpack.c.bf16 %v1848, %v1848
        %v1881 = vpack.c.bf16 %v1850, %v1850
        %s1882 = scalar_lea.vmem [#allocation2], 112
        %1883 = vst [vmem:[%s1882] sm:$0xf] %v1878
        %1884 = vst [vmem:[%s1882 + $0x4] sm:$0xf] %v1879
        %1885 = vst [vmem:[%s1882 + $0x8] sm:$0xf] %v1880
        %1886 = vst [vmem:[%s1882 + $0xc] sm:$0xf] %v1881
        %1887 = vst [vmem:[#allocation3 + $0x7] sm:$0x1] %v1875
        %v1888 = vperm.slane %v615, 0
        %vm1889 = vcmp.eq.s32.totalorder %v617, %v1888
        %vm1890 = vcmp.eq.s32.totalorder %v618, %v1888
        %vm1891 = vcmp.eq.s32.totalorder %v619, %v1888
        %vm1892 = vcmp.eq.s32.totalorder %v620, %v1888
        %vm1893 = vcmp.eq.s32.totalorder %v621, %v1888
        %vm1894 = vcmp.eq.s32.totalorder %v622, %v1888
        %vm1895 = vcmp.eq.s32.totalorder %v623, %v1888
        %vm1896 = vcmp.eq.s32.totalorder %v624, %v1888
        %vm1897 = vcmp.eq.s32.totalorder %v625, %v1888
        %vm1898 = vcmp.eq.s32.totalorder %v626, %v1888
        %vm1899 = vcmp.eq.s32.totalorder %v627, %v1888
        %vm1900 = vcmp.eq.s32.totalorder %v628, %v1888
        %vm1901 = vcmp.eq.s32.totalorder %v629, %v1888
        %vm1902 = vcmp.eq.s32.totalorder %v630, %v1888
        %vm1903 = vcmp.eq.s32.totalorder %v631, %v1888
        %vm1904 = vcmp.eq.s32.totalorder %v632, %v1888
        %vm1905 = vcmp.eq.s32.totalorder %v633, %v1888
        %vm1906 = vcmp.eq.s32.totalorder %v634, %v1888
        %vm1907 = vcmp.eq.s32.totalorder %v635, %v1888
        %vm1908 = vcmp.eq.s32.totalorder %v636, %v1888
        %vm1909 = vcmp.eq.s32.totalorder %v637, %v1888
        %vm1910 = vcmp.eq.s32.totalorder %v638, %v1888
        %vm1911 = vcmp.eq.s32.totalorder %v639, %v1888
        %vm1912 = vcmp.eq.s32.totalorder %v640, %v1888
        %vm1913 = vcmp.eq.s32.totalorder %v641, %v1888
        %vm1914 = vcmp.eq.s32.totalorder %v642, %v1888
        %vm1915 = vcmp.eq.s32.totalorder %v643, %v1888
        %vm1916 = vcmp.eq.s32.totalorder %v644, %v1888
        %vm1917 = vcmp.eq.s32.totalorder %v645, %v1888
        %vm1918 = vcmp.eq.s32.totalorder %v646, %v1888
        %vm1919 = vcmp.eq.s32.totalorder %v647, %v1888
        %vm1920 = vcmp.eq.s32.totalorder %v648, %v1888
        %v1921 = vsel %vm1889, 1.0, 0.0
        %v1922 = vsel %vm1890, 1.0, 0.0
        %v1923 = vsel %vm1891, 1.0, 0.0
        %v1924 = vsel %vm1892, 1.0, 0.0
        %v1925 = vsel %vm1893, 1.0, 0.0
        %v1926 = vsel %vm1894, 1.0, 0.0
        %v1927 = vsel %vm1895, 1.0, 0.0
        %v1928 = vsel %vm1896, 1.0, 0.0
        %v1929 = vsel %vm1897, 1.0, 0.0
        %v1930 = vsel %vm1898, 1.0, 0.0
        %v1931 = vsel %vm1899, 1.0, 0.0
        %v1932 = vsel %vm1900, 1.0, 0.0
        %v1933 = vsel %vm1901, 1.0, 0.0
        %v1934 = vsel %vm1902, 1.0, 0.0
        %v1935 = vsel %vm1903, 1.0, 0.0
        %v1936 = vsel %vm1904, 1.0, 0.0
        %v1937 = vsel %vm1905, 1.0, 0.0
        %v1938 = vsel %vm1906, 1.0, 0.0
        %v1939 = vsel %vm1907, 1.0, 0.0
        %v1940 = vsel %vm1908, 1.0, 0.0
        %v1941 = vsel %vm1909, 1.0, 0.0
        %v1942 = vsel %vm1910, 1.0, 0.0
        %v1943 = vsel %vm1911, 1.0, 0.0
        %v1944 = vsel %vm1912, 1.0, 0.0
        %v1945 = vsel %vm1913, 1.0, 0.0
        %v1946 = vsel %vm1914, 1.0, 0.0
        %v1947 = vsel %vm1915, 1.0, 0.0
        %v1948 = vsel %vm1916, 1.0, 0.0
        %v1949 = vsel %vm1917, 1.0, 0.0
        %v1950 = vsel %vm1918, 1.0, 0.0
        %v1951 = vsel %vm1919, 1.0, 0.0
        %v1952 = vsel %vm1920, 1.0, 0.0
        %v1953 = vpack.c.bf16 %v1922, %v1921
        %v1954 = vpack.c.bf16 %v1924, %v1923
        %v1955 = vpack.c.bf16 %v1926, %v1925
        %v1956 = vpack.c.bf16 %v1928, %v1927
        %v1957 = vpack.c.bf16 %v1930, %v1929
        %v1958 = vpack.c.bf16 %v1932, %v1931
        %v1959 = vpack.c.bf16 %v1934, %v1933
        %v1960 = vpack.c.bf16 %v1936, %v1935
        %v1961 = vpack.c.bf16 %v1938, %v1937
        %v1962 = vpack.c.bf16 %v1940, %v1939
        %v1963 = vpack.c.bf16 %v1942, %v1941
        %v1964 = vpack.c.bf16 %v1944, %v1943
        %v1965 = vpack.c.bf16 %v1946, %v1945
        %v1966 = vpack.c.bf16 %v1948, %v1947
        %v1967 = vpack.c.bf16 %v1950, %v1949
        %v1968 = vpack.c.bf16 %v1952, %v1951
        %1969 = vmatpush.bf16.msra.mxu0 %v1960
        %1970 = vmatpush.bf16.msra.mxu0 %v1959
        %1971 = vmatpush.bf16.msra.mxu0 %v1958
        %1972 = vmatpush.bf16.msra.mxu0 %v1957
        %1973 = vmatpush.bf16.msra.mxu0 %v1956
        %1974 = vmatpush.bf16.msra.mxu0 %v1955
        %1975 = vmatpush.bf16.msra.mxu0 %v1954
        %1976 = vmatpush.bf16.msra.mxu0 %v1953
        %1977 = vmatmul.bf16.gmra.mxu0 %v608
        %v1978 = vpop.f32.mrf.mxu0
        %v1979 = vadd.f32 0.0, %v1978
        %v1980 = vpop.f32.mrf.mxu0
        %v1981 = vadd.f32 0.0, %v1980
        %1982 = vmatmul.bf16.gmra.mxu0 %v610
        %v1983 = vpop.f32.mrf.mxu0
        %v1984 = vadd.f32 0.0, %v1983
        %v1985 = vpop.f32.mrf.mxu0
        %v1986 = vadd.f32 0.0, %v1985
        %1987 = vdwg.mxu0
        %1988 = vmatpush.bf16.msra.mxu0 %v1968
        %1989 = vmatpush.bf16.msra.mxu0 %v1967
        %1990 = vmatpush.bf16.msra.mxu0 %v1966
        %1991 = vmatpush.bf16.msra.mxu0 %v1965
        %1992 = vmatpush.bf16.msra.mxu0 %v1964
        %1993 = vmatpush.bf16.msra.mxu0 %v1963
        %1994 = vmatpush.bf16.msra.mxu0 %v1962
        %1995 = vmatpush.bf16.msra.mxu0 %v1961
        %1996 = vmatmul.bf16.gmra.mxu0 %v609
        %v1997 = vpop.f32.mrf.mxu0
        %v1998 = vadd.f32 %v1979, %v1997
        %v1999 = vpop.f32.mrf.mxu0
        %v2000 = vadd.f32 %v1981, %v1999
        %2001 = vmatmul.bf16.gmra.mxu0 %v611
        %v2002 = vpop.f32.mrf.mxu0
        %v2003 = vadd.f32 %v1984, %v2002
        %v2004 = vpop.f32.mrf.mxu0
        %v2005 = vadd.f32 %v1986, %v2004
        %2006 = vdwg.mxu0
        %2007 = vmatpush.bf16.msra.mxu0 %v1960
        %2008 = vmatpush.bf16.msra.mxu0 %v1959
        %2009 = vmatpush.bf16.msra.mxu0 %v1958
        %2010 = vmatpush.bf16.msra.mxu0 %v1957
        %2011 = vmatpush.bf16.msra.mxu0 %v1956
        %2012 = vmatpush.bf16.msra.mxu0 %v1955
        %2013 = vmatpush.bf16.msra.mxu0 %v1954
        %2014 = vmatpush.bf16.msra.mxu0 %v1953
        %2015 = vmatmul.bf16.gmra.mxu0 %v612
        %v2016 = vpop.f32.mrf.mxu0
        %v2017 = vadd.f32 0.0, %v2016
        %v2018 = vpop.f32.mrf.mxu0
        %2019 = vdwg.mxu0
        %2020 = vmatpush.bf16.msra.mxu0 %v1968
        %2021 = vmatpush.bf16.msra.mxu0 %v1967
        %2022 = vmatpush.bf16.msra.mxu0 %v1966
        %2023 = vmatpush.bf16.msra.mxu0 %v1965
        %2024 = vmatpush.bf16.msra.mxu0 %v1964
        %2025 = vmatpush.bf16.msra.mxu0 %v1963
        %2026 = vmatpush.bf16.msra.mxu0 %v1962
        %2027 = vmatpush.bf16.msra.mxu0 %v1961
        %2028 = vmatmul.bf16.gmra.mxu0 %v613
        %v2029 = vpop.f32.mrf.mxu0
        %v2030 = vadd.f32 %v2017, %v2029
        %v2031 = vpop.f32.mrf.mxu0
        %2032 = vdwg.mxu0
        %v2033 = vpack.c.bf16 %v1998, %v1998
        %v2034 = vpack.c.bf16 %v2000, %v2000
        %v2035 = vpack.c.bf16 %v2003, %v2003
        %v2036 = vpack.c.bf16 %v2005, %v2005
        %s2037 = scalar_lea.vmem [#allocation2], 128
        %2038 = vst [vmem:[%s2037] sm:$0xf] %v2033
        %2039 = vst [vmem:[%s2037 + $0x4] sm:$0xf] %v2034
        %2040 = vst [vmem:[%s2037 + $0x8] sm:$0xf] %v2035
        %2041 = vst [vmem:[%s2037 + $0xc] sm:$0xf] %v2036
        %2042 = vst [vmem:[#allocation3 + $0x8] sm:$0x1] %v2030
        %v2043 = vld [vmem:[#allocation3] sm:$0xff]
        %v2044 = vld [vmem:[#allocation3 + $0x8] sm:$0x1]
        %v2045 = vperm.slane %v606, 0
        %v2046 = vadd.f32 %v2045, %v2043
        %v2047 = vadd.f32 %v2045, %v2044
        %vm2048 = vcmp.ge.f32.partialorder %v2046, 0.0
        %vm2049 = vcmp.ge.f32.partialorder %v2047, 0.0
        %v2050 = vmul.f32 %v2046, 0.2
        %v2051 = vmul.f32 %v2047, 0.2
        %v2052 = vsel %vm2048, %v2046, %v2050
        %v2053 = vsel %vm2049, %v2047, %v2051
        %vm2054 = vcmask 1040384
        %v2055 = vsel %vm2054, %v2053, -inf
        %v2056 = vmax.f32 %v2052, %v2055
        %v2057 = vrot.slane %v2056, 4
        %v2058 = vmax.f32 %v2056, %v2057
        %v2059 = vrot.slane %v2058, 2
        %v2060 = vmax.f32 %v2058, %v2059
        %v2061 = vrot.slane %v2060, 1
        %v2062 = vmax.f32 %v2060, %v2061
        %v2063 = vsub.f32 %v2052, %v2062
        %v2064 = vsub.f32 %v2053, %v2062
        %v2065 = vmul.f32 %v2063, 1.442695
        %v2066 = vpow.pop %v2065
        %v2067 = vmul.f32 %v2064, 1.442695
        %v2068 = vpow.pop %v2067
        %v2069 = vsel %vm2054, %v2068, 0.0
        %v2070 = vadd.f32 %v2066, %v2069
        %v2071 = vrot.slane %v2070, 4
        %v2072 = vadd.f32 %v2070, %v2071
        %v2073 = vrot.slane %v2072, 2
        %v2074 = vadd.f32 %v2072, %v2073
        %v2075 = vrot.slane %v2074, 1
        %v2076 = vadd.f32 %v2074, %v2075
        %v2077 = vrcp.pop %v2076
        %v2078 = vmul.f32 %v2066, %v2077
        %v2079 = vmul.f32 %v2068, %v2077
        %v2080 = vld [vmem:[#allocation2] sm:$0xf]
        %v2081 = vld [vmem:[#allocation2 + $0x4] sm:$0xf]
        %v2082 = vld [vmem:[#allocation2 + $0x8] sm:$0xf]
        %v2083 = vld [vmem:[#allocation2 + $0xc] sm:$0xf]
        %v2084 = vunpack.c.l.bf16 %v2080
        %v2085 = vunpack.c.l.bf16 %v2081
        %v2086 = vunpack.c.l.bf16 %v2082
        %v2087 = vunpack.c.l.bf16 %v2083
        %v2088 = vperm.slane %v2078, 0
        %v2089 = vmul.f32 %v2084, %v2088
        %v2090 = vmul.f32 %v2085, %v2088
        %v2091 = vmul.f32 %v2086, %v2088
        %v2092 = vmul.f32 %v2087, %v2088
        %v2093 = vld [vmem:[%s952] sm:$0xf]
        %v2094 = vld [vmem:[%s952 + $0x4] sm:$0xf]
        %v2095 = vld [vmem:[%s952 + $0x8] sm:$0xf]
        %v2096 = vld [vmem:[%s952 + $0xc] sm:$0xf]
        %v2097 = vunpack.c.l.bf16 %v2093
        %v2098 = vunpack.c.l.bf16 %v2094
        %v2099 = vunpack.c.l.bf16 %v2095
        %v2100 = vunpack.c.l.bf16 %v2096
        %v2101 = vperm.slane %v2078, 1
        %v2102 = vmul.f32 %v2097, %v2101
        %v2103 = vmul.f32 %v2098, %v2101
        %v2104 = vmul.f32 %v2099, %v2101
        %v2105 = vmul.f32 %v2100, %v2101
        %v2106 = vmax.f32 %v2089, %v2102
        %v2107 = vmax.f32 %v2090, %v2103
        %v2108 = vmax.f32 %v2091, %v2104
        %v2109 = vmax.f32 %v2092, %v2105
        %v2110 = vld [vmem:[%s1107] sm:$0xf]
        %v2111 = vld [vmem:[%s1107 + $0x4] sm:$0xf]
        %v2112 = vld [vmem:[%s1107 + $0x8] sm:$0xf]
        %v2113 = vld [vmem:[%s1107 + $0xc] sm:$0xf]
        %v2114 = vunpack.c.l.bf16 %v2110
        %v2115 = vunpack.c.l.bf16 %v2111
        %v2116 = vunpack.c.l.bf16 %v2112
        %v2117 = vunpack.c.l.bf16 %v2113
        %v2118 = vperm.slane %v2078, 2
        %v2119 = vmul.f32 %v2114, %v2118
        %v2120 = vmul.f32 %v2115, %v2118
        %v2121 = vmul.f32 %v2116, %v2118
        %v2122 = vmul.f32 %v2117, %v2118
        %v2123 = vmax.f32 %v2106, %v2119
        %v2124 = vmax.f32 %v2107, %v2120
        %v2125 = vmax.f32 %v2108, %v2121
        %v2126 = vmax.f32 %v2109, %v2122
        %v2127 = vld [vmem:[%s1262] sm:$0xf]
        %v2128 = vld [vmem:[%s1262 + $0x4] sm:$0xf]
        %v2129 = vld [vmem:[%s1262 + $0x8] sm:$0xf]
        %v2130 = vld [vmem:[%s1262 + $0xc] sm:$0xf]
        %v2131 = vunpack.c.l.bf16 %v2127
        %v2132 = vunpack.c.l.bf16 %v2128
        %v2133 = vunpack.c.l.bf16 %v2129
        %v2134 = vunpack.c.l.bf16 %v2130
        %v2135 = vperm.slane %v2078, 3
        %v2136 = vmul.f32 %v2131, %v2135
        %v2137 = vmul.f32 %v2132, %v2135
        %v2138 = vmul.f32 %v2133, %v2135
        %v2139 = vmul.f32 %v2134, %v2135
        %v2140 = vmax.f32 %v2123, %v2136
        %v2141 = vmax.f32 %v2124, %v2137
        %v2142 = vmax.f32 %v2125, %v2138
        %v2143 = vmax.f32 %v2126, %v2139
        %v2144 = vld [vmem:[%s1417] sm:$0xf]
        %v2145 = vld [vmem:[%s1417 + $0x4] sm:$0xf]
        %v2146 = vld [vmem:[%s1417 + $0x8] sm:$0xf]
        %v2147 = vld [vmem:[%s1417 + $0xc] sm:$0xf]
        %v2148 = vunpack.c.l.bf16 %v2144
        %v2149 = vunpack.c.l.bf16 %v2145
        %v2150 = vunpack.c.l.bf16 %v2146
        %v2151 = vunpack.c.l.bf16 %v2147
        %v2152 = vperm.slane %v2078, 4
        %v2153 = vmul.f32 %v2148, %v2152
        %v2154 = vmul.f32 %v2149, %v2152
        %v2155 = vmul.f32 %v2150, %v2152
        %v2156 = vmul.f32 %v2151, %v2152
        %v2157 = vmax.f32 %v2140, %v2153
        %v2158 = vmax.f32 %v2141, %v2154
        %v2159 = vmax.f32 %v2142, %v2155
        %v2160 = vmax.f32 %v2143, %v2156
        %v2161 = vld [vmem:[%s1572] sm:$0xf]
        %v2162 = vld [vmem:[%s1572 + $0x4] sm:$0xf]
        %v2163 = vld [vmem:[%s1572 + $0x8] sm:$0xf]
        %v2164 = vld [vmem:[%s1572 + $0xc] sm:$0xf]
        %v2165 = vunpack.c.l.bf16 %v2161
        %v2166 = vunpack.c.l.bf16 %v2162
        %v2167 = vunpack.c.l.bf16 %v2163
        %v2168 = vunpack.c.l.bf16 %v2164
        %v2169 = vperm.slane %v2078, 5
        %v2170 = vmul.f32 %v2165, %v2169
        %v2171 = vmul.f32 %v2166, %v2169
        %v2172 = vmul.f32 %v2167, %v2169
        %v2173 = vmul.f32 %v2168, %v2169
        %v2174 = vmax.f32 %v2157, %v2170
        %v2175 = vmax.f32 %v2158, %v2171
        %v2176 = vmax.f32 %v2159, %v2172
        %v2177 = vmax.f32 %v2160, %v2173
        %v2178 = vld [vmem:[%s1727] sm:$0xf]
        %v2179 = vld [vmem:[%s1727 + $0x4] sm:$0xf]
        %v2180 = vld [vmem:[%s1727 + $0x8] sm:$0xf]
        %v2181 = vld [vmem:[%s1727 + $0xc] sm:$0xf]
        %v2182 = vunpack.c.l.bf16 %v2178
        %v2183 = vunpack.c.l.bf16 %v2179
        %v2184 = vunpack.c.l.bf16 %v2180
        %v2185 = vunpack.c.l.bf16 %v2181
        %v2186 = vperm.slane %v2078, 6
        %v2187 = vmul.f32 %v2182, %v2186
        %v2188 = vmul.f32 %v2183, %v2186
        %v2189 = vmul.f32 %v2184, %v2186
        %v2190 = vmul.f32 %v2185, %v2186
        %v2191 = vmax.f32 %v2174, %v2187
        %v2192 = vmax.f32 %v2175, %v2188
        %v2193 = vmax.f32 %v2176, %v2189
        %v2194 = vmax.f32 %v2177, %v2190
        %v2195 = vld [vmem:[%s1882] sm:$0xf]
        %v2196 = vld [vmem:[%s1882 + $0x4] sm:$0xf]
        %v2197 = vld [vmem:[%s1882 + $0x8] sm:$0xf]
        %v2198 = vld [vmem:[%s1882 + $0xc] sm:$0xf]
        %v2199 = vunpack.c.l.bf16 %v2195
        %v2200 = vunpack.c.l.bf16 %v2196
        %v2201 = vunpack.c.l.bf16 %v2197
        %v2202 = vunpack.c.l.bf16 %v2198
        %v2203 = vperm.slane %v2078, 7
        %v2204 = vmul.f32 %v2199, %v2203
        %v2205 = vmul.f32 %v2200, %v2203
        %v2206 = vmul.f32 %v2201, %v2203
        %v2207 = vmul.f32 %v2202, %v2203
        %v2208 = vmax.f32 %v2191, %v2204
        %v2209 = vmax.f32 %v2192, %v2205
        %v2210 = vmax.f32 %v2193, %v2206
        %v2211 = vmax.f32 %v2194, %v2207
        %v2212 = vld [vmem:[%s2037] sm:$0xf]
        %v2213 = vld [vmem:[%s2037 + $0x4] sm:$0xf]
        %v2214 = vld [vmem:[%s2037 + $0x8] sm:$0xf]
        %v2215 = vld [vmem:[%s2037 + $0xc] sm:$0xf]
        %v2216 = vunpack.c.l.bf16 %v2212
        %v2217 = vunpack.c.l.bf16 %v2213
        %v2218 = vunpack.c.l.bf16 %v2214
        %v2219 = vunpack.c.l.bf16 %v2215
        %v2220 = vperm.slane %v2079, 0
        %v2221 = vmul.f32 %v2216, %v2220
        %v2222 = vmul.f32 %v2217, %v2220
        %v2223 = vmul.f32 %v2218, %v2220
        %v2224 = vmul.f32 %v2219, %v2220
        %v2225 = vmax.f32 %v2208, %v2221
        %v2226 = vmax.f32 %v2209, %v2222
        %v2227 = vmax.f32 %v2210, %v2223
        %v2228 = vmax.f32 %v2211, %v2224
        %v2229 = vld [vmem:[%s5] sm:$0xff]
        %v2230 = vld [vmem:[%s5 + $0x8] sm:$0xff]
        %v2231 = vld [vmem:[%s5 + $0x10] sm:$0xff]
        %v2232 = vld [vmem:[%s5 + $0x18] sm:$0xff]
        %2234 = vset.pattern.permute.xlu0 0
        %2235 = vperm.xlu0 %2234, %v2229
        %v2236 = vpop.permute.xlu0 %2235
        %2239 = vset.pattern.permute.xlu0 0
        %2240 = vperm.xlu0 %2239, %v2230
        %v2241 = vpop.permute.xlu0 %2240
        %2244 = vset.pattern.permute.xlu0 0
        %2245 = vperm.xlu0 %2244, %v2231
        %v2246 = vpop.permute.xlu0 %2245
        %2249 = vset.pattern.permute.xlu0 0
        %2250 = vperm.xlu0 %2249, %v2232
        %v2251 = vpop.permute.xlu0 %2250
        %v2253 = vadd.f32 %v2225, %v2236
        %v2254 = vadd.f32 %v2226, %v2241
        %v2255 = vadd.f32 %v2227, %v2246
        %v2256 = vadd.f32 %v2228, %v2251
        %2257 = vst [vmem:[%s411] sm:$0xff] %v2253
        %2258 = vst [vmem:[%s411 + $0x8] sm:$0xff] %v2254
        %2259 = vst [vmem:[%s411 + $0x10] sm:$0xff] %v2255
        %2260 = vst [vmem:[%s411 + $0x18] sm:$0xff] %v2256
        %s2261 = sand.u32 %s209, 1
        %s2262 = scalar_lea.sflag [#allocation7], %s2261
        %s2263 = sand.u32 %s209, 1
        %s2264 = smul.addr %s2263, 32
        %s2265 = scalar_lea.vmem [#allocation6], %s2264
        // Predicated region
        $region125: #{tpu_custom_call.1} parent=115 // pred_check
          %p2266 = pneg %p219
        $region126: #{tpu_custom_call.1} parent=115 // pred_check_branch
          %2268 = sbr.rel (%p2266) target = $region128
        $region127: #{tpu_custom_call.1} parent=115 // pred_region
          %2270 = vsyncadd %s2262, 0
          %s2271 = smul.addr %s25, 8
          %s2272 = sadd.s32 %s26, %s2271
          %s2273 = smul.addr %s2272, 8
          %s2274 = scalar_lea.hbm %s7, %s2273
          %s2275 = sshll.u32 %s2265, 4
          %s2276 = int_to_ptr.vmem [resolvable:$true] %s2275
          %s2277 = sshll.u32 %s2274, 4
          %s2278 = int_to_ptr.hbm [resolvable:$true] %s2277
          %2283 = dma.vmem_to_hbm [thread:$0]  %s2276, 512, %s2278, %s2262, 128, 256, 8
        $region128: #{tpu_custom_call.1} parent=115 // pred_fallthru
          _
      $region116: #{tpu_custom_call.1} parent=5 // pred_fallthru
        _
      %p2284 = scmp.le.s32.totalorder 2, %s16
      // Predicated region
      $region129: #{tpu_custom_call.1} parent=5 // pred_check
        %p2285 = pneg %p2284
      $region130: #{tpu_custom_call.1} parent=5 // pred_check_branch
        %2287 = sbr.rel (%p2285) target = $region132
      $region131: #{tpu_custom_call.1} parent=5 // pred_region
        %s2288 = ssub.s32 %s16, 2
        // Predicated region
        $region133: #{tpu_custom_call.1} parent=131 // pred_check
          %p2289 = pneg %p225
        $region134: #{tpu_custom_call.1} parent=131 // pred_check_branch
          %2291 = sbr.rel (%p2289) target = $region136
        $region135: #{tpu_custom_call.1} parent=131 // pred_region
          %s2292 = sand.u32 %s210, 1
          %s2293 = scalar_lea.sflag [#allocation7], %s2292
          %s2294 = sand.u32 %s210, 1
          %s2295 = smul.addr %s2294, 32
          %s2296 = scalar_lea.vmem [#allocation6], %s2295
          %2298 = dma.done %s2293, 512
        $region136: #{tpu_custom_call.1} parent=131 // pred_fallthru
          _
      $region132: #{tpu_custom_call.1} parent=5 // pred_fallthru
        _
    $region6: #{tpu_custom_call.1} parent=1 // loop_footer
      %s20 = sadd.s32 1, %s16
    $region7: #{tpu_custom_call.1} parent=1 // loop_footer_branch
      %15 = sbr.rel target = $region3
    $region8: #{tpu_custom_call.1} parent=1 // loop_exit
      _
    %2299 = vsyncpa [#allocation7], 1
    %s2300 = scalar_lea.sflag [#allocation7], 1
    %2301 = vsyncpa %s2300, 1

</llo_original>
